<compile_context>
chip_gen: v6e
topology: v6e:2x2x1
jax: 0.10.0
libtpu: 0.0.40
codegen_flags: <defaults>
</compile_context>

<pallas_src>
import functools

import jax
import jax.numpy as jnp
from jax.experimental import pallas as pl
from jax.experimental.pallas import tpu as pltpu


# ----------------------------------------------------------------------------
# Kernel 1: GroupNorm statistics (per-channel sum / sumsq), tiled over rows.
# ----------------------------------------------------------------------------

def _gn_stats_kernel(x_ref, sum_ref, ssq_ref):
    @pl.when(pl.program_id(1) == 0)
    def _():
        sum_ref[...] = jnp.zeros_like(sum_ref)
        ssq_ref[...] = jnp.zeros_like(ssq_ref)

    x = x_ref[0].astype(jnp.float32)                       # (TH, W, C)
    sum_ref[...] += jnp.sum(x, axis=(0, 1), keepdims=True)
    ssq_ref[...] += jnp.sum(x * x, axis=(0, 1), keepdims=True)


def _row_tile(h, w, c, bytes_per_elem, budget=1 << 20):
    rows = max(1, min(h, budget // max(1, w * c * bytes_per_elem)))
    while h % rows:
        rows -= 1
    return rows


def gn_scale_shift(x, gamma, beta, *, groups=32, eps=1e-6):
    """Per-(sample, channel) affine (scale, shift) implementing GroupNorm stats."""
    n, h, w, c = x.shape
    th = _row_tile(h, w, c, x.dtype.itemsize)
    sums, ssqs = pl.pallas_call(
        _gn_stats_kernel,
        out_shape=(jax.ShapeDtypeStruct((n, 1, c), jnp.float32),
                   jax.ShapeDtypeStruct((n, 1, c), jnp.float32)),
        grid=(n, h // th),
        in_specs=[pl.BlockSpec((1, th, w, c), lambda i, t: (i, t, 0, 0))],
        out_specs=(pl.BlockSpec((1, 1, c), lambda i, t: (i, 0, 0)),
                   pl.BlockSpec((1, 1, c), lambda i, t: (i, 0, 0))),
        compiler_params=pltpu.CompilerParams(
            dimension_semantics=("parallel", "arbitrary")),
    )(x)

    # Tiny (N, C)-sized aggregation over groups done in plain JAX glue.
    cg = c // groups
    cnt = h * w * cg
    sum_g = sums.reshape(n, groups, cg).sum(-1)
    ssq_g = ssqs.reshape(n, groups, cg).sum(-1)
    mean_g = sum_g / cnt
    var_g = jnp.maximum(ssq_g / cnt - mean_g * mean_g, 0.0)
    rstd_g = jax.lax.rsqrt(var_g + eps)
    mean_c = jnp.repeat(mean_g, cg, axis=1)                # (N, C)
    rstd_c = jnp.repeat(rstd_g, cg, axis=1)
    scale = rstd_c * gamma[None, :]
    shift = beta[None, :] - mean_c * scale
    return scale[:, None, :], shift[:, None, :]            # (N, 1, C) f32


# ----------------------------------------------------------------------------
# Kernel 2: fused GroupNorm-affine + SiLU + 3x3 conv (+ bias + residual / nin).
# ----------------------------------------------------------------------------

def _gn_silu_conv_kernel(*refs, mode, h_in, w_out):
    if mode == "plain":
        x_ref, w_ref, b_ref, sc_ref, sh_ref, o_ref, acc_ref = refs
    elif mode == "res_id":
        x_ref, w_ref, b_ref, sc_ref, sh_ref, r_ref, o_ref, acc_ref = refs
    else:  # "res_nin"
        (x_ref, w_ref, b_ref, sc_ref, sh_ref, r_ref, wn_ref, bn_ref,
         o_ref, acc_ref) = refs

    ho = pl.program_id(1)          # output row
    ki = pl.program_id(2)          # vertical tap index (0, 1, 2)

    @pl.when(ki == 0)
    def _():
        acc_ref[...] = jnp.zeros_like(acc_ref)

    hi = ho + ki - 1               # input row feeding this tap (pad = 1)

    @pl.when(jnp.logical_and(hi >= 0, hi < h_in))
    def _():
        # Fused GroupNorm affine + SiLU on the input row (f32 epilogue math),
        # then cast to bf16 for the MXU.
        x = x_ref[0, 0].astype(jnp.float32)                      # (W, Cin)
        xn = x * sc_ref[0, 0] + sh_ref[0, 0]
        xn = (xn * jax.nn.sigmoid(xn)).astype(jnp.bfloat16)

        c_left = jnp.dot(xn, w_ref[ki * 3 + 0],
                         preferred_element_type=jnp.float32)     # (W, Cout)
        c_mid = jnp.dot(xn, w_ref[ki * 3 + 1],
                        preferred_element_type=jnp.float32)
        c_right = jnp.dot(xn, w_ref[ki * 3 + 2],
                          preferred_element_type=jnp.float32)

        # Horizontal taps: shift results by +/-1 row (XLU roll) and zero the
        # wrapped border column (== zero padding of the normalized activation).
        col = jax.lax.broadcasted_iota(jnp.int32, (w_out, 1), 0)
        c_left = jnp.where(col >= 1, pltpu.roll(c_left, shift=1, axis=0), 0.0)
        c_right = jnp.where(col <= w_out - 2,
                            pltpu.roll(c_right, shift=w_out - 1, axis=0), 0.0)
        acc_ref[...] = acc_ref[...] + c_left + c_mid + c_right

    @pl.when(ki == 2)
    def _():
        y = acc_ref[...] + b_ref[0]
        if mode == "res_id":
            y = y + r_ref[0, 0].astype(jnp.float32)
        elif mode == "res_nin":
            y = (y + bn_ref[0]
                 + jnp.dot(r_ref[0, 0], wn_ref[...],
                           preferred_element_type=jnp.float32))
        o_ref[0, 0] = y.astype(o_ref.dtype)


def gn_silu_conv3x3(x, scale, shift, w9, bias, *, residual=None,
                    out_dtype=jnp.bfloat16):
    """out = conv3x3(silu(x * scale + shift)) + bias (+ residual | + 1x1 nin(res))."""
    n, h, w, cin = x.shape
    cout = w9.shape[-1]

    in_specs = [
        # Input row for the current vertical tap (index clamped; invalid taps are
        # skipped inside the kernel, which implements the zero padding).
        pl.BlockSpec(
            (1, 1, w, cin),
            lambda i, j, k: (i, jnp.minimum(jnp.maximum(j + k - 1, 0), h - 1), 0, 0)),
        # Full 3x3 weight, resident in VMEM for the whole call (constant index).
        pl.BlockSpec((9, cin, cout), lambda i, j, k: (0, 0, 0)),
        pl.BlockSpec((1, cout), lambda i, j, k: (0, 0)),
        # Per-(sample, channel) GroupNorm scale / shift.
        pl.BlockSpec((1, 1, cin), lambda i, j, k: (i, 0, 0)),
        pl.BlockSpec((1, 1, cin), lambda i, j, k: (i, 0, 0)),
    ]
    operands = [x, w9, bias, scale, shift]

    if residual is None:
        mode = "plain"
    elif residual[0] == "identity":
        mode = "res_id"
        res = residual[1]
        in_specs.append(pl.BlockSpec((1, 1, w, res.shape[-1]),
                                     lambda i, j, k: (i, j, 0, 0)))
        operands.append(res)
    else:  # fused 1x1 nin_shortcut
        mode = "res_nin"
        _, res, wn, bn = residual
        in_specs += [
            pl.BlockSpec((1, 1, w, res.shape[-1]), lambda i, j, k: (i, j, 0, 0)),
            pl.BlockSpec(wn.shape, lambda i, j, k: (0, 0)),
            pl.BlockSpec((1, cout), lambda i, j, k: (0, 0)),
        ]
        operands += [res, wn, bn]

    kernel = functools.partial(_gn_silu_conv_kernel, mode=mode, h_in=h, w_out=w)
    return pl.pallas_call(
        kernel,
        out_shape=jax.ShapeDtypeStruct((n, h, w, cout), out_dtype),
        grid=(n, h, 3),
        in_specs=in_specs,
        out_specs=pl.BlockSpec((1, 1, w, cout), lambda i, j, k: (i, j, 0, 0)),
        scratch_shapes=[pltpu.VMEM((w, cout), jnp.float32)],
        compiler_params=pltpu.CompilerParams(
            dimension_semantics=("parallel", "parallel", "arbitrary")),
    )(*operands)


# ----------------------------------------------------------------------------
# ResnetBlock forward (matches the PyTorch module in eval mode).
# ----------------------------------------------------------------------------

def resnet_block_forward(params, x, *, groups=32, eps=1e-6):
    in_c = x.shape[1]
    out_c = params["conv1"]["b"].shape[-1]

    xh = jnp.transpose(x, (0, 2, 3, 1)).astype(jnp.bfloat16)   # NHWC, bf16

    sc1, sh1 = gn_scale_shift(xh, params["norm1"]["g"], params["norm1"]["b"],
                              groups=groups, eps=eps)
    h = gn_silu_conv3x3(xh, sc1, sh1, params["conv1"]["w9"], params["conv1"]["b"],
                        out_dtype=jnp.bfloat16)

    sc2, sh2 = gn_scale_shift(h, params["norm2"]["g"], params["norm2"]["b"],
                              groups=groups, eps=eps)
    # TODO(synk): nn.Dropout(dropout=0.0) is the identity at inference — omitted.
    if in_c == out_c:
        residual = ("identity", xh)
    else:
        # TODO(synk): conv_shortcut=True (3x3 shortcut) variant not implemented;
        # the module default (1x1 nin_shortcut) is fused into the conv2 epilogue.
        residual = ("nin", xh, params["nin_shortcut"]["w"],
                    params["nin_shortcut"]["b"])
    out = gn_silu_conv3x3(h, sc2, sh2, params["conv2"]["w9"], params["conv2"]["b"],
                          residual=residual, out_dtype=jnp.float32)
    return jnp.transpose(out, (0, 3, 1, 2))


# ----------------------------------------------------------------------------
# Parameters (pre-transposed / pre-packed once) and a pure-JAX reference.
# ----------------------------------------------------------------------------

def make_resnet_params(key, in_channels, out_channels=None):
    out_channels = in_channels if out_channels is None else out_channels
    counter = [0]

    def nk():
        counter[0] += 1
        return jax.random.fold_in(key, counter[0])

    def norm(c):
        return {"g": 1.0 + 0.1 * jax.random.normal(nk(), (c,), jnp.float32),
                "b": 0.05 * jax.random.normal(nk(), (c,), jnp.float32)}

    def conv3x3(cin, cout):
        w = 0.05 * jax.random.normal(nk(), (cout, cin, 3, 3), jnp.float32)
        b = 0.01 * jax.random.normal(nk(), (cout,), jnp.float32)
        # Pre-transpose OIHW -> (kh*kw, Cin, Cout) and pre-cast to bf16 once.
        w9 = jnp.transpose(w, (2, 3, 1, 0)).reshape(9, cin, cout).astype(jnp.bfloat16)
        return {"w_ref": w, "w9": w9, "b": b.reshape(1, cout)}

    def conv1x1(cin, cout):
        w = 0.05 * jax.random.normal(nk(), (cout, cin, 1, 1), jnp.float32)
        b = 0.01 * jax.random.normal(nk(), (cout,), jnp.float32)
        wn = jnp.transpose(w[:, :, 0, 0], (1, 0)).astype(jnp.bfloat16)   # (Cin, Cout)
        return {"w_ref": w, "w": wn, "b": b.reshape(1, cout)}

    p = {"norm1": norm(in_channels),
         "conv1": conv3x3(in_channels, out_channels),
         "norm2": norm(out_channels),
         "conv2": conv3x3(out_channels, out_channels)}
    if in_channels != out_channels:
        p["nin_shortcut"] = conv1x1(in_channels, out_channels)
    return p


def resnet_block_reference(params, x, *, groups=32, eps=1e-6):
    def gn_silu(v, g, b):
        n, c, hh, ww = v.shape
        vg = v.reshape(n, groups, c // groups, hh * ww)
        m = vg.mean(axis=(2, 3), keepdims=True)
        var = vg.var(axis=(2, 3), keepdims=True)
        vn = (vg - m) * jax.lax.rsqrt(var + eps)
        vn = vn.reshape(n, c, hh, ww) * g[None, :, None, None] + b[None, :, None, None]
        return vn * jax.nn.sigmoid(vn)

    def conv(v, w, b, pad):
        y = jax.lax.conv_general_dilated(
            v, w, (1, 1), ((pad, pad), (pad, pad)),
            dimension_numbers=("NCHW", "OIHW", "NCHW"))
        return y + b.reshape(1, -1, 1, 1)

    in_c = x.shape[1]
    h = gn_silu(x, params["norm1"]["g"], params["norm1"]["b"])
    h = conv(h, params["conv1"]["w_ref"], params["conv1"]["b"], 1)
    h = gn_silu(h, params["norm2"]["g"], params["norm2"]["b"])
    h = conv(h, params["conv2"]["w_ref"], params["conv2"]["b"], 1)
    xs = x
    if in_c != h.shape[1]:
        xs = conv(x, params["nin_shortcut"]["w_ref"], params["nin_shortcut"]["b"], 0)
    return xs + h


# ----------------------------------------------------------------------------

if __name__ == "__main__":
    key = jax.random.PRNGKey(0)
    N, H, W = 2, 16, 16
    IN_C, OUT_C = 64, 128          # GroupNorm(32) requires channels % 32 == 0

    fwd = jax.jit(resnet_block_forward)

    # Case 1: in_channels != out_channels -> fused 1x1 nin_shortcut path.
    p1 = make_resnet_params(jax.random.fold_in(key, 1), IN_C, OUT_C)
    x1 = jax.random.normal(jax.random.fold_in(key, 2), (N, IN_C, H, W), jnp.float32)
    y1 = fwd(p1, x1)
    jax.block_until_ready(y1)
    assert y1.shape == (N, OUT_C, H, W), y1.shape
    err1 = float(jnp.max(jnp.abs(y1 - resnet_block_reference(p1, x1))))
    assert err1 < 0.1, f"nin-shortcut path mismatch: max abs err = {err1}"

    # Case 2: in_channels == out_channels -> identity residual path.
    p2 = make_resnet_params(jax.random.fold_in(key, 3), IN_C, IN_C)
    x2 = jax.random.normal(jax.random.fold_in(key, 4), (N, IN_C, H, W), jnp.float32)
    y2 = fwd(p2, x2)
    jax.block_until_ready(y2)
    assert y2.shape == (N, IN_C, H, W), y2.shape
    err2 = float(jnp.max(jnp.abs(y2 - resnet_block_reference(p2, x2))))
    assert err2 < 0.1, f"identity path mismatch: max abs err = {err2}"

    print("KERNEL_OK")
</pallas_src>

<mosaic_0001>
module attributes {stable_mosaic.version = 11 : i64} {
  func.func @_gn_stats_kernel(%arg0: i32, %arg1: i32, %arg2: memref<1x16x16x64xbf16, #tpu.memory_space<vmem>>, %arg3: memref<1x1x64xf32, #tpu.memory_space<vmem>>, %arg4: memref<1x1x64xf32, #tpu.memory_space<vmem>>) attributes {dimension_semantics = [#tpu.dimension_semantics<parallel>, #tpu.dimension_semantics<arbitrary>], iteration_bounds = array<i64: 2, 1>, scalar_prefetch = 0 : i64, scratch_operands = 0 : i64, tpu.core_type = #tpu.core_type<tc>, window_params = [{transform_indices = @transform_0, window_bounds = array<i64: 1, 16, 16, 64>}, {transform_indices = @transform_1, window_bounds = array<i64: 1, 1, 64>}, {transform_indices = @transform_2, window_bounds = array<i64: 1, 1, 64>}]} {
    %c0_i32 = arith.constant 0 : i32
    %0 = arith.cmpi eq, %arg1, %c0_i32 : i32
    %1 = arith.extui %0 : i1 to i32
    %c0_i32_0 = arith.constant 0 : i32
    %2 = arith.cmpi ne, %1, %c0_i32_0 : i32
    scf.if %2 {
      %cst_17 = arith.constant 0.000000e+00 : f32
      %17 = vector.broadcast %cst_17 : f32 to vector<1x1x64xf32>
      %c0_18 = arith.constant 0 : index
      %c0_19 = arith.constant 0 : index
      %c0_20 = arith.constant 0 : index
      %18 = vector.load %arg3[%c0_18, %c0_19, %c0_20] : memref<1x1x64xf32, #tpu.memory_space<vmem>>, vector<1x1x64xf32>
      tpu.vector_store %arg3[%c0_18, %c0_19, %c0_20], %17 {strides = array<i32>} : memref<1x1x64xf32, #tpu.memory_space<vmem>>, vector<1x1x64xf32>,
      %cst_21 = arith.constant 0.000000e+00 : f32
      %19 = vector.broadcast %cst_21 : f32 to vector<1x1x64xf32>
      %c0_22 = arith.constant 0 : index
      %c0_23 = arith.constant 0 : index
      %c0_24 = arith.constant 0 : index
      %20 = vector.load %arg4[%c0_22, %c0_23, %c0_24] : memref<1x1x64xf32, #tpu.memory_space<vmem>>, vector<1x1x64xf32>
      tpu.vector_store %arg4[%c0_22, %c0_23, %c0_24], %19 {strides = array<i32>} : memref<1x1x64xf32, #tpu.memory_space<vmem>>, vector<1x1x64xf32>,
    } else {
    }
    %c0 = arith.constant 0 : index
    %c0_1 = arith.constant 0 : index
    %c0_2 = arith.constant 0 : index
    %c0_3 = arith.constant 0 : index
    %3 = vector.load %arg2[%c0, %c0_1, %c0_2, %c0_3] : memref<1x16x16x64xbf16, #tpu.memory_space<vmem>>, vector<1x16x16x64xbf16>
    %4 = vector.shape_cast %3 : vector<1x16x16x64xbf16> to vector<16x16x64xbf16>
    %5 = arith.extf %4 : vector<16x16x64xbf16> to vector<16x16x64xf32>
    %c0_4 = arith.constant 0 : index
    %c0_5 = arith.constant 0 : index
    %c0_6 = arith.constant 0 : index
    %6 = vector.load %arg3[%c0_4, %c0_5, %c0_6] : memref<1x1x64xf32, #tpu.memory_space<vmem>>, vector<1x1x64xf32>
    %cst = arith.constant dense<0.000000e+00> : vector<64xf32>
    %7 = vector.multi_reduction <add>, %5, %cst [0, 1] : vector<16x16x64xf32> to vector<64xf32>
    %8 = vector.shape_cast %7 : vector<64xf32> to vector<1x1x64xf32>
    %9 = arith.addf %6, %8 : vector<1x1x64xf32>
    %c0_7 = arith.constant 0 : index
    %c0_8 = arith.constant 0 : index
    %c0_9 = arith.constant 0 : index
    %10 = vector.load %arg3[%c0_7, %c0_8, %c0_9] : memref<1x1x64xf32, #tpu.memory_space<vmem>>, vector<1x1x64xf32>
    tpu.vector_store %arg3[%c0_7, %c0_8, %c0_9], %9 {strides = array<i32>} : memref<1x1x64xf32, #tpu.memory_space<vmem>>, vector<1x1x64xf32>,
    %c0_10 = arith.constant 0 : index
    %c0_11 = arith.constant 0 : index
    %c0_12 = arith.constant 0 : index
    %11 = vector.load %arg4[%c0_10, %c0_11, %c0_12] : memref<1x1x64xf32, #tpu.memory_space<vmem>>, vector<1x1x64xf32>
    %12 = arith.mulf %5, %5 : vector<16x16x64xf32>
    %cst_13 = arith.constant dense<0.000000e+00> : vector<64xf32>
    %13 = vector.multi_reduction <add>, %12, %cst_13 [0, 1] : vector<16x16x64xf32> to vector<64xf32>
    %14 = vector.shape_cast %13 : vector<64xf32> to vector<1x1x64xf32>
    %15 = arith.addf %11, %14 : vector<1x1x64xf32>
    %c0_14 = arith.constant 0 : index
    %c0_15 = arith.constant 0 : index
    %c0_16 = arith.constant 0 : index
    %16 = vector.load %arg4[%c0_14, %c0_15, %c0_16] : memref<1x1x64xf32, #tpu.memory_space<vmem>>, vector<1x1x64xf32>
    tpu.vector_store %arg4[%c0_14, %c0_15, %c0_16], %15 {strides = array<i32>} : memref<1x1x64xf32, #tpu.memory_space<vmem>>, vector<1x1x64xf32>,
    return
  }
  func.func @transform_0(%arg0: i32, %arg1: i32) -> (i32, i32, i32, i32) {
    %c0_i32 = arith.constant 0 : i32
    %c0_i32_0 = arith.constant 0 : i32
    %c0_i32_1 = arith.constant 0 : i32
    return %arg0, %arg1, %c0_i32, %c0_i32_0 : i32, i32, i32, i32
  }
  func.func @transform_1(%arg0: i32, %arg1: i32) -> (i32, i32, i32) {
    %c0_i32 = arith.constant 0 : i32
    %c0_i32_0 = arith.constant 0 : i32
    %c0_i32_1 = arith.constant 0 : i32
    return %arg0, %c0_i32, %c0_i32_0 : i32, i32, i32
  }
  func.func @transform_2(%arg0: i32, %arg1: i32) -> (i32, i32, i32) {
    %c0_i32 = arith.constant 0 : i32
    %c0_i32_0 = arith.constant 0 : i32
    %c0_i32_1 = arith.constant 0 : i32
    return %arg0, %c0_i32, %c0_i32_0 : i32, i32, i32
  }
}

module attributes {stable_mosaic.version = 11 : i64} {
  func.func @_gn_stats_kernel(%arg0: i32, %arg1: i32, %arg2: memref<1x16x16x128xbf16, #tpu.memory_space<vmem>>, %arg3: memref<1x1x128xf32, #tpu.memory_space<vmem>>, %arg4: memref<1x1x128xf32, #tpu.memory_space<vmem>>) attributes {dimension_semantics = [#tpu.dimension_semantics<parallel>, #tpu.dimension_semantics<arbitrary>], iteration_bounds = array<i64: 2, 1>, scalar_prefetch = 0 : i64, scratch_operands = 0 : i64, tpu.core_type = #tpu.core_type<tc>, window_params = [{transform_indices = @transform_0, window_bounds = array<i64: 1, 16, 16, 128>}, {transform_indices = @transform_1, window_bounds = array<i64: 1, 1, 128>}, {transform_indices = @transform_2, window_bounds = array<i64: 1, 1, 128>}]} {
    %c0_i32 = arith.constant 0 : i32
    %0 = arith.cmpi eq, %arg1, %c0_i32 : i32
    %1 = arith.extui %0 : i1 to i32
    %c0_i32_0 = arith.constant 0 : i32
    %2 = arith.cmpi ne, %1, %c0_i32_0 : i32
    scf.if %2 {
      %cst_17 = arith.constant 0.000000e+00 : f32
      %17 = vector.broadcast %cst_17 : f32 to vector<1x1x128xf32>
      %c0_18 = arith.constant 0 : index
      %c0_19 = arith.constant 0 : index
      %c0_20 = arith.constant 0 : index
      %18 = vector.load %arg3[%c0_18, %c0_19, %c0_20] : memref<1x1x128xf32, #tpu.memory_space<vmem>>, vector<1x1x128xf32>
      tpu.vector_store %arg3[%c0_18, %c0_19, %c0_20], %17 {strides = array<i32>} : memref<1x1x128xf32, #tpu.memory_space<vmem>>, vector<1x1x128xf32>,
      %cst_21 = arith.constant 0.000000e+00 : f32
      %19 = vector.broadcast %cst_21 : f32 to vector<1x1x128xf32>
      %c0_22 = arith.constant 0 : index
      %c0_23 = arith.constant 0 : index
      %c0_24 = arith.constant 0 : index
      %20 = vector.load %arg4[%c0_22, %c0_23, %c0_24] : memref<1x1x128xf32, #tpu.memory_space<vmem>>, vector<1x1x128xf32>
      tpu.vector_store %arg4[%c0_22, %c0_23, %c0_24], %19 {strides = array<i32>} : memref<1x1x128xf32, #tpu.memory_space<vmem>>, vector<1x1x128xf32>,
    } else {
    }
    %c0 = arith.constant 0 : index
    %c0_1 = arith.constant 0 : index
    %c0_2 = arith.constant 0 : index
    %c0_3 = arith.constant 0 : index
    %3 = vector.load %arg2[%c0, %c0_1, %c0_2, %c0_3] : memref<1x16x16x128xbf16, #tpu.memory_space<vmem>>, vector<1x16x16x128xbf16>
    %4 = vector.shape_cast %3 : vector<1x16x16x128xbf16> to vector<16x16x128xbf16>
    %5 = arith.extf %4 : vector<16x16x128xbf16> to vector<16x16x128xf32>
    %c0_4 = arith.constant 0 : index
    %c0_5 = arith.constant 0 : index
    %c0_6 = arith.constant 0 : index
    %6 = vector.load %arg3[%c0_4, %c0_5, %c0_6] : memref<1x1x128xf32, #tpu.memory_space<vmem>>, vector<1x1x128xf32>
    %cst = arith.constant dense<0.000000e+00> : vector<128xf32>
    %7 = vector.multi_reduction <add>, %5, %cst [0, 1] : vector<16x16x128xf32> to vector<128xf32>
    %8 = vector.shape_cast %7 : vector<128xf32> to vector<1x1x128xf32>
    %9 = arith.addf %6, %8 : vector<1x1x128xf32>
    %c0_7 = arith.constant 0 : index
    %c0_8 = arith.constant 0 : index
    %c0_9 = arith.constant 0 : index
    %10 = vector.load %arg3[%c0_7, %c0_8, %c0_9] : memref<1x1x128xf32, #tpu.memory_space<vmem>>, vector<1x1x128xf32>
    tpu.vector_store %arg3[%c0_7, %c0_8, %c0_9], %9 {strides = array<i32>} : memref<1x1x128xf32, #tpu.memory_space<vmem>>, vector<1x1x128xf32>,
    %c0_10 = arith.constant 0 : index
    %c0_11 = arith.constant 0 : index
    %c0_12 = arith.constant 0 : index
    %11 = vector.load %arg4[%c0_10, %c0_11, %c0_12] : memref<1x1x128xf32, #tpu.memory_space<vmem>>, vector<1x1x128xf32>
    %12 = arith.mulf %5, %5 : vector<16x16x128xf32>
    %cst_13 = arith.constant dense<0.000000e+00> : vector<128xf32>
    %13 = vector.multi_reduction <add>, %12, %cst_13 [0, 1] : vector<16x16x128xf32> to vector<128xf32>
    %14 = vector.shape_cast %13 : vector<128xf32> to vector<1x1x128xf32>
    %15 = arith.addf %11, %14 : vector<1x1x128xf32>
    %c0_14 = arith.constant 0 : index
    %c0_15 = arith.constant 0 : index
    %c0_16 = arith.constant 0 : index
    %16 = vector.load %arg4[%c0_14, %c0_15, %c0_16] : memref<1x1x128xf32, #tpu.memory_space<vmem>>, vector<1x1x128xf32>
    tpu.vector_store %arg4[%c0_14, %c0_15, %c0_16], %15 {strides = array<i32>} : memref<1x1x128xf32, #tpu.memory_space<vmem>>, vector<1x1x128xf32>,
    return
  }
  func.func @transform_0(%arg0: i32, %arg1: i32) -> (i32, i32, i32, i32) {
    %c0_i32 = arith.constant 0 : i32
    %c0_i32_0 = arith.constant 0 : i32
    %c0_i32_1 = arith.constant 0 : i32
    return %arg0, %arg1, %c0_i32, %c0_i32_0 : i32, i32, i32, i32
  }
  func.func @transform_1(%arg0: i32, %arg1: i32) -> (i32, i32, i32) {
    %c0_i32 = arith.constant 0 : i32
    %c0_i32_0 = arith.constant 0 : i32
    %c0_i32_1 = arith.constant 0 : i32
    return %arg0, %c0_i32, %c0_i32_0 : i32, i32, i32
  }
  func.func @transform_2(%arg0: i32, %arg1: i32) -> (i32, i32, i32) {
    %c0_i32 = arith.constant 0 : i32
    %c0_i32_0 = arith.constant 0 : i32
    %c0_i32_1 = arith.constant 0 : i32
    return %arg0, %c0_i32, %c0_i32_0 : i32, i32, i32
  }
}

module attributes {stable_mosaic.version = 11 : i64} {
  func.func @_gn_silu_conv_kernel(%arg0: i32, %arg1: i32, %arg2: i32, %arg3: memref<1x1x16x64xbf16, #tpu.memory_space<vmem>>, %arg4: memref<9x64x128xbf16, #tpu.memory_space<vmem>>, %arg5: memref<1x128xf32, #tpu.memory_space<vmem>>, %arg6: memref<1x1x64xf32, #tpu.memory_space<vmem>>, %arg7: memref<1x1x64xf32, #tpu.memory_space<vmem>>, %arg8: memref<1x1x16x128xbf16, #tpu.memory_space<vmem>>, %arg9: memref<16x128xf32, #tpu.memory_space<vmem>>) attributes {dimension_semantics = [#tpu.dimension_semantics<parallel>, #tpu.dimension_semantics<parallel>, #tpu.dimension_semantics<arbitrary>], iteration_bounds = array<i64: 2, 16, 3>, scalar_prefetch = 0 : i64, scratch_operands = 1 : i64, tpu.core_type = #tpu.core_type<tc>, window_params = [{transform_indices = @transform_0, window_bounds = array<i64: 1, 1, 16, 64>}, {pipeline_mode = #tpu.pipeline_mode<synchronous>, transform_indices = @transform_1, window_bounds = array<i64: 9, 64, 128>}, {pipeline_mode = #tpu.pipeline_mode<synchronous>, transform_indices = @transform_2, window_bounds = array<i64: 1, 128>}, {transform_indices = @transform_3, window_bounds = array<i64: 1, 1, 64>}, {transform_indices = @transform_4, window_bounds = array<i64: 1, 1, 64>}, {transform_indices = @transform_5, window_bounds = array<i64: 1, 1, 16, 128>}]} {
    %c0_i32 = arith.constant 0 : i32
    %0 = arith.cmpi eq, %arg2, %c0_i32 : i32
    %1 = arith.extui %0 : i1 to i32
    %c0_i32_0 = arith.constant 0 : i32
    %2 = arith.cmpi ne, %1, %c0_i32_0 : i32
    scf.if %2 {
      %cst = arith.constant 0.000000e+00 : f32
      %13 = vector.broadcast %cst : f32 to vector<16x128xf32>
      %c0 = arith.constant 0 : index
      %c0_4 = arith.constant 0 : index
      %14 = vector.load %arg9[%c0, %c0_4] : memref<16x128xf32, #tpu.memory_space<vmem>>, vector<16x128xf32>
      tpu.vector_store %arg9[%c0, %c0_4], %13 {strides = array<i32>} : memref<16x128xf32, #tpu.memory_space<vmem>>, vector<16x128xf32>,
    } else {
    }
    %3 = arith.addi %arg1, %arg2 : i32
    %c1_i32 = arith.constant 1 : i32
    %4 = arith.subi %3, %c1_i32 : i32
    %c0_i32_1 = arith.constant 0 : i32
    %5 = arith.cmpi sge, %4, %c0_i32_1 : i32
    %c16_i32 = arith.constant 16 : i32
    %6 = arith.cmpi slt, %4, %c16_i32 : i32
    %7 = arith.andi %5, %6 : i1
    %8 = arith.extui %7 : i1 to i32
    %c0_i32_2 = arith.constant 0 : i32
    %9 = arith.cmpi ne, %8, %c0_i32_2 : i32
    scf.if %9 {
      %c0 = arith.constant 0 : index
      %c0_4 = arith.constant 0 : index
      %c0_5 = arith.constant 0 : index
      %c0_6 = arith.constant 0 : index
      %13 = vector.load %arg3[%c0, %c0_4, %c0_5, %c0_6] : memref<1x1x16x64xbf16, #tpu.memory_space<vmem>>, vector<1x1x16x64xbf16>
      %14 = vector.shape_cast %13 : vector<1x1x16x64xbf16> to vector<16x64xbf16>
      %15 = arith.extf %14 : vector<16x64xbf16> to vector<16x64xf32>
      %c0_7 = arith.constant 0 : index
      %c0_8 = arith.constant 0 : index
      %c0_9 = arith.constant 0 : index
      %16 = vector.load %arg6[%c0_7, %c0_8, %c0_9] : memref<1x1x64xf32, #tpu.memory_space<vmem>>, vector<1x1x64xf32>
      %17 = vector.shape_cast %16 : vector<1x1x64xf32> to vector<64xf32>
      %18 = vector.shape_cast %17 : vector<64xf32> to vector<1x64xf32>
      %19 = vector.broadcast %18 : vector<1x64xf32> to vector<16x64xf32>
      %20 = arith.mulf %15, %19 : vector<16x64xf32>
      %c0_10 = arith.constant 0 : index
      %c0_11 = arith.constant 0 : index
      %c0_12 = arith.constant 0 : index
      %21 = vector.load %arg7[%c0_10, %c0_11, %c0_12] : memref<1x1x64xf32, #tpu.memory_space<vmem>>, vector<1x1x64xf32>
      %22 = vector.shape_cast %21 : vector<1x1x64xf32> to vector<64xf32>
      %23 = vector.shape_cast %22 : vector<64xf32> to vector<1x64xf32>
      %24 = vector.broadcast %23 : vector<1x64xf32> to vector<16x64xf32>
      %25 = arith.addf %20, %24 : vector<16x64xf32>
      %26 = arith.negf %25 : vector<16x64xf32>
      %27 = math.exp %26 : vector<16x64xf32>
      %cst = arith.constant 1.000000e+00 : f32
      %28 = vector.broadcast %cst : f32 to vector<16x64xf32>
      %29 = arith.addf %28, %27 : vector<16x64xf32>
      %30 = arith.divf %28, %29 : vector<16x64xf32>
      %31 = arith.mulf %25, %30 : vector<16x64xf32>
      %32 = arith.truncf %31 : vector<16x64xf32> to vector<16x64xbf16>
      %c3_i32 = arith.constant 3 : i32
      %33 = arith.muli %arg2, %c3_i32 : i32
      %c0_i32_13 = arith.constant 0 : i32
      %34 = arith.addi %33, %c0_i32_13 : i32
      %35 = arith.index_cast %34 : i32 to index
      %c0_14 = arith.constant 0 : index
      %c0_15 = arith.constant 0 : index
      %36 = vector.load %arg4[%35, %c0_14, %c0_15] : memref<9x64x128xbf16, #tpu.memory_space<vmem>>, vector<1x64x128xbf16>
      %37 = vector.shape_cast %36 : vector<1x64x128xbf16> to vector<64x128xbf16>
      %cst_16 = arith.constant dense<0.000000e+00> : vector<16x128xf32>
      %38 = tpu.matmul %32, %37, %cst_16 {dimension_numbers = #tpu.dot_dimension_numbers<[1], [0], [0], [1], [0, 0, 1, 1], [], []>} : vector<16x64xbf16>, vector<64x128xbf16>, vector<16x128xf32> -> vector<16x128xf32>
      %c3_i32_17 = arith.constant 3 : i32
      %39 = arith.muli %arg2, %c3_i32_17 : i32
      %c1_i32_18 = arith.constant 1 : i32
      %40 = arith.addi %39, %c1_i32_18 : i32
      %41 = arith.index_cast %40 : i32 to index
      %c0_19 = arith.constant 0 : index
      %c0_20 = arith.constant 0 : index
      %42 = vector.load %arg4[%41, %c0_19, %c0_20] : memref<9x64x128xbf16, #tpu.memory_space<vmem>>, vector<1x64x128xbf16>
      %43 = vector.shape_cast %42 : vector<1x64x128xbf16> to vector<64x128xbf16>
      %cst_21 = arith.constant dense<0.000000e+00> : vector<16x128xf32>
      %44 = tpu.matmul %32, %43, %cst_21 {dimension_numbers = #tpu.dot_dimension_numbers<[1], [0], [0], [1], [0, 0, 1, 1], [], []>} : vector<16x64xbf16>, vector<64x128xbf16>, vector<16x128xf32> -> vector<16x128xf32>
      %c3_i32_22 = arith.constant 3 : i32
      %45 = arith.muli %arg2, %c3_i32_22 : i32
      %c2_i32_23 = arith.constant 2 : i32
      %46 = arith.addi %45, %c2_i32_23 : i32
      %47 = arith.index_cast %46 : i32 to index
      %c0_24 = arith.constant 0 : index
      %c0_25 = arith.constant 0 : index
      %48 = vector.load %arg4[%47, %c0_24, %c0_25] : memref<9x64x128xbf16, #tpu.memory_space<vmem>>, vector<1x64x128xbf16>
      %49 = vector.shape_cast %48 : vector<1x64x128xbf16> to vector<64x128xbf16>
      %cst_26 = arith.constant dense<0.000000e+00> : vector<16x128xf32>
      %50 = tpu.matmul %32, %49, %cst_26 {dimension_numbers = #tpu.dot_dimension_numbers<[1], [0], [0], [1], [0, 0, 1, 1], [], []>} : vector<16x64xbf16>, vector<64x128xbf16>, vector<16x128xf32> -> vector<16x128xf32>
      %51 = tpu.iota {dimensions = array<i32: 0>} : vector<16x1xi32>
      %c1_i32_27 = arith.constant 1 : i32
      %52 = vector.broadcast %c1_i32_27 : i32 to vector<16x1xi32>
      %53 = arith.cmpi sge, %51, %52 : vector<16x1xi32>
      %c1_i32_28 = arith.constant 1 : i32
      %54 = tpu.dynamic_rotate %38 by %c1_i32_28 dim 0 : vector<16x128xf32>, i32 -> vector<16x128xf32>
      %cst_29 = arith.constant 0.000000e+00 : f32
      %55 = vector.shape_cast %53 : vector<16x1xi1> to vector<16x1xi1>
      %56 = vector.broadcast %55 : vector<16x1xi1> to vector<16x128xi1>
      %57 = vector.broadcast %cst_29 : f32 to vector<16x128xf32>
      %58 = arith.select %56, %54, %57 : vector<16x128xi1>, vector<16x128xf32>
      %c14_i32 = arith.constant 14 : i32
      %59 = vector.broadcast %c14_i32 : i32 to vector<16x1xi32>
      %60 = arith.cmpi sle, %51, %59 : vector<16x1xi32>
      %c15_i32 = arith.constant 15 : i32
      %61 = tpu.dynamic_rotate %50 by %c15_i32 dim 0 : vector<16x128xf32>, i32 -> vector<16x128xf32>
      %cst_30 = arith.constant 0.000000e+00 : f32
      %62 = vector.shape_cast %60 : vector<16x1xi1> to vector<16x1xi1>
      %63 = vector.broadcast %62 : vector<16x1xi1> to vector<16x128xi1>
      %64 = vector.broadcast %cst_30 : f32 to vector<16x128xf32>
      %65 = arith.select %63, %61, %64 : vector<16x128xi1>, vector<16x128xf32>
      %c0_31 = arith.constant 0 : index
      %c0_32 = arith.constant 0 : index
      %66 = vector.load %arg9[%c0_31, %c0_32] : memref<16x128xf32, #tpu.memory_space<vmem>>, vector<16x128xf32>
      %67 = arith.addf %66, %58 : vector<16x128xf32>
      %68 = arith.addf %67, %44 : vector<16x128xf32>
      %69 = arith.addf %68, %65 : vector<16x128xf32>
      %c0_33 = arith.constant 0 : index
      %c0_34 = arith.constant 0 : index
      %70 = vector.load %arg9[%c0_33, %c0_34] : memref<16x128xf32, #tpu.memory_space<vmem>>, vector<16x128xf32>
      tpu.vector_store %arg9[%c0_33, %c0_34], %69 {strides = array<i32>} : memref<16x128xf32, #tpu.memory_space<vmem>>, vector<16x128xf32>,
    } else {
    }
    %c2_i32 = arith.constant 2 : i32
    %10 = arith.cmpi eq, %arg2, %c2_i32 : i32
    %11 = arith.extui %10 : i1 to i32
    %c0_i32_3 = arith.constant 0 : i32
    %12 = arith.cmpi ne, %11, %c0_i32_3 : i32
    scf.if %12 {
      %c0 = arith.constant 0 : index
      %c0_4 = arith.constant 0 : index
      %13 = vector.load %arg9[%c0, %c0_4] : memref<16x128xf32, #tpu.memory_space<vmem>>, vector<16x128xf32>
      %c0_5 = arith.constant 0 : index
      %c0_6 = arith.constant 0 : index
      %14 = vector.load %arg5[%c0_5, %c0_6] : memref<1x128xf32, #tpu.memory_space<vmem>>, vector<1x128xf32>
      %15 = vector.shape_cast %14 : vector<1x128xf32> to vector<128xf32>
      %16 = vector.shape_cast %15 : vector<128xf32> to vector<1x128xf32>
      %17 = vector.broadcast %16 : vector<1x128xf32> to vector<16x128xf32>
      %18 = arith.addf %13, %17 : vector<16x128xf32>
      %19 = arith.truncf %18 : vector<16x128xf32> to vector<16x128xbf16>
      %c0_7 = arith.constant 0 : index
      %c0_8 = arith.constant 0 : index
      %c0_9 = arith.constant 0 : index
      %c0_10 = arith.constant 0 : index
      %20 = vector.load %arg8[%c0_7, %c0_8, %c0_9, %c0_10] : memref<1x1x16x128xbf16, #tpu.memory_space<vmem>>, vector<1x1x16x128xbf16>
      %21 = vector.shape_cast %20 : vector<1x1x16x128xbf16> to vector<16x128xbf16>
      %22 = vector.shape_cast %19 : vector<16x128xbf16> to vector<1x1x16x128xbf16>
      tpu.vector_store %arg8[%c0_7, %c0_8, %c0_9, %c0_10], %22 {strides = array<i32>} : memref<1x1x16x128xbf16, #tpu.memory_space<vmem>>, vector<1x1x16x128xbf16>,
    } else {
    }
    return
  }
  func.func @transform_0(%arg0: i32, %arg1: i32, %arg2: i32) -> (i32, i32, i32, i32) {
    %0 = arith.addi %arg1, %arg2 : i32
    %c1_i32 = arith.constant 1 : i32
    %1 = arith.subi %0, %c1_i32 : i32
    %c0_i32 = arith.constant 0 : i32
    %2 = arith.maxsi %1, %c0_i32 : i32
    %c15_i32 = arith.constant 15 : i32
    %3 = arith.minsi %2, %c15_i32 : i32
    %c0_i32_0 = arith.constant 0 : i32
    %c0_i32_1 = arith.constant 0 : i32
    %c0_i32_2 = arith.constant 0 : i32
    return %arg0, %3, %c0_i32_0, %c0_i32_1 : i32, i32, i32, i32
  }
  func.func @transform_1(%arg0: i32, %arg1: i32, %arg2: i32) -> (i32, i32, i32) {
    %c0_i32 = arith.constant 0 : i32
    %c0_i32_0 = arith.constant 0 : i32
    %c0_i32_1 = arith.constant 0 : i32
    %c0_i32_2 = arith.constant 0 : i32
    return %c0_i32, %c0_i32_0, %c0_i32_1 : i32, i32, i32
  }
  func.func @transform_2(%arg0: i32, %arg1: i32, %arg2: i32) -> (i32, i32) {
    %c0_i32 = arith.constant 0 : i32
    %c0_i32_0 = arith.constant 0 : i32
    %c0_i32_1 = arith.constant 0 : i32
    return %c0_i32, %c0_i32_0 : i32, i32
  }
  func.func @transform_3(%arg0: i32, %arg1: i32, %arg2: i32) -> (i32, i32, i32) {
    %c0_i32 = arith.constant 0 : i32
    %c0_i32_0 = arith.constant 0 : i32
    %c0_i32_1 = arith.constant 0 : i32
    return %arg0, %c0_i32, %c0_i32_0 : i32, i32, i32
  }
  func.func @transform_4(%arg0: i32, %arg1: i32, %arg2: i32) -> (i32, i32, i32) {
    %c0_i32 = arith.constant 0 : i32
    %c0_i32_0 = arith.constant 0 : i32
    %c0_i32_1 = arith.constant 0 : i32
    return %arg0, %c0_i32, %c0_i32_0 : i32, i32, i32
  }
  func.func @transform_5(%arg0: i32, %arg1: i32, %arg2: i32) -> (i32, i32, i32, i32) {
    %c0_i32 = arith.constant 0 : i32
    %c0_i32_0 = arith.constant 0 : i32
    %c0_i32_1 = arith.constant 0 : i32
    return %arg0, %arg1, %c0_i32, %c0_i32_0 : i32, i32, i32, i32
  }
}

module attributes {stable_mosaic.version = 11 : i64} {
  func.func @_gn_silu_conv_kernel(%arg0: i32, %arg1: i32, %arg2: i32, %arg3: memref<1x1x16x128xbf16, #tpu.memory_space<vmem>>, %arg4: memref<9x128x128xbf16, #tpu.memory_space<vmem>>, %arg5: memref<1x128xf32, #tpu.memory_space<vmem>>, %arg6: memref<1x1x128xf32, #tpu.memory_space<vmem>>, %arg7: memref<1x1x128xf32, #tpu.memory_space<vmem>>, %arg8: memref<1x1x16x64xbf16, #tpu.memory_space<vmem>>, %arg9: memref<64x128xbf16, #tpu.memory_space<vmem>>, %arg10: memref<1x128xf32, #tpu.memory_space<vmem>>, %arg11: memref<1x1x16x128xf32, #tpu.memory_space<vmem>>, %arg12: memref<16x128xf32, #tpu.memory_space<vmem>>) attributes {dimension_semantics = [#tpu.dimension_semantics<parallel>, #tpu.dimension_semantics<parallel>, #tpu.dimension_semantics<arbitrary>], iteration_bounds = array<i64: 2, 16, 3>, scalar_prefetch = 0 : i64, scratch_operands = 1 : i64, tpu.core_type = #tpu.core_type<tc>, window_params = [{transform_indices = @transform_0, window_bounds = array<i64: 1, 1, 16, 128>}, {pipeline_mode = #tpu.pipeline_mode<synchronous>, transform_indices = @transform_1, window_bounds = array<i64: 9, 128, 128>}, {pipeline_mode = #tpu.pipeline_mode<synchronous>, transform_indices = @transform_2, window_bounds = array<i64: 1, 128>}, {transform_indices = @transform_3, window_bounds = array<i64: 1, 1, 128>}, {transform_indices = @transform_4, window_bounds = array<i64: 1, 1, 128>}, {transform_indices = @transform_5, window_bounds = array<i64: 1, 1, 16, 64>}, {pipeline_mode = #tpu.pipeline_mode<synchronous>, transform_indices = @transform_6, window_bounds = array<i64: 64, 128>}, {pipeline_mode = #tpu.pipeline_mode<synchronous>, transform_indices = @transform_7, window_bounds = array<i64: 1, 128>}, {transform_indices = @transform_8, window_bounds = array<i64: 1, 1, 16, 128>}]} {
    %c0_i32 = arith.constant 0 : i32
    %0 = arith.cmpi eq, %arg2, %c0_i32 : i32
    %1 = arith.extui %0 : i1 to i32
    %c0_i32_0 = arith.constant 0 : i32
    %2 = arith.cmpi ne, %1, %c0_i32_0 : i32
    scf.if %2 {
      %cst = arith.constant 0.000000e+00 : f32
      %13 = vector.broadcast %cst : f32 to vector<16x128xf32>
      %c0 = arith.constant 0 : index
      %c0_4 = arith.constant 0 : index
      %14 = vector.load %arg12[%c0, %c0_4] : memref<16x128xf32, #tpu.memory_space<vmem>>, vector<16x128xf32>
      tpu.vector_store %arg12[%c0, %c0_4], %13 {strides = array<i32>} : memref<16x128xf32, #tpu.memory_space<vmem>>, vector<16x128xf32>,
    } else {
    }
    %3 = arith.addi %arg1, %arg2 : i32
    %c1_i32 = arith.constant 1 : i32
    %4 = arith.subi %3, %c1_i32 : i32
    %c0_i32_1 = arith.constant 0 : i32
    %5 = arith.cmpi sge, %4, %c0_i32_1 : i32
    %c16_i32 = arith.constant 16 : i32
    %6 = arith.cmpi slt, %4, %c16_i32 : i32
    %7 = arith.andi %5, %6 : i1
    %8 = arith.extui %7 : i1 to i32
    %c0_i32_2 = arith.constant 0 : i32
    %9 = arith.cmpi ne, %8, %c0_i32_2 : i32
    scf.if %9 {
      %c0 = arith.constant 0 : index
      %c0_4 = arith.constant 0 : index
      %c0_5 = arith.constant 0 : index
      %c0_6 = arith.constant 0 : index
      %13 = vector.load %arg3[%c0, %c0_4, %c0_5, %c0_6] : memref<1x1x16x128xbf16, #tpu.memory_space<vmem>>, vector<1x1x16x128xbf16>
      %14 = vector.shape_cast %13 : vector<1x1x16x128xbf16> to vector<16x128xbf16>
      %15 = arith.extf %14 : vector<16x128xbf16> to vector<16x128xf32>
      %c0_7 = arith.constant 0 : index
      %c0_8 = arith.constant 0 : index
      %c0_9 = arith.constant 0 : index
      %16 = vector.load %arg6[%c0_7, %c0_8, %c0_9] : memref<1x1x128xf32, #tpu.memory_space<vmem>>, vector<1x1x128xf32>
      %17 = vector.shape_cast %16 : vector<1x1x128xf32> to vector<128xf32>
      %18 = vector.shape_cast %17 : vector<128xf32> to vector<1x128xf32>
      %19 = vector.broadcast %18 : vector<1x128xf32> to vector<16x128xf32>
      %20 = arith.mulf %15, %19 : vector<16x128xf32>
      %c0_10 = arith.constant 0 : index
      %c0_11 = arith.constant 0 : index
      %c0_12 = arith.constant 0 : index
      %21 = vector.load %arg7[%c0_10, %c0_11, %c0_12] : memref<1x1x128xf32, #tpu.memory_space<vmem>>, vector<1x1x128xf32>
      %22 = vector.shape_cast %21 : vector<1x1x128xf32> to vector<128xf32>
      %23 = vector.shape_cast %22 : vector<128xf32> to vector<1x128xf32>
      %24 = vector.broadcast %23 : vector<1x128xf32> to vector<16x128xf32>
      %25 = arith.addf %20, %24 : vector<16x128xf32>
      %26 = arith.negf %25 : vector<16x128xf32>
      %27 = math.exp %26 : vector<16x128xf32>
      %cst = arith.constant 1.000000e+00 : f32
      %28 = vector.broadcast %cst : f32 to vector<16x128xf32>
      %29 = arith.addf %28, %27 : vector<16x128xf32>
      %30 = arith.divf %28, %29 : vector<16x128xf32>
      %31 = arith.mulf %25, %30 : vector<16x128xf32>
      %32 = arith.truncf %31 : vector<16x128xf32> to vector<16x128xbf16>
      %c3_i32 = arith.constant 3 : i32
      %33 = arith.muli %arg2, %c3_i32 : i32
      %c0_i32_13 = arith.constant 0 : i32
      %34 = arith.addi %33, %c0_i32_13 : i32
      %35 = arith.index_cast %34 : i32 to index
      %c0_14 = arith.constant 0 : index
      %c0_15 = arith.constant 0 : index
      %36 = vector.load %arg4[%35, %c0_14, %c0_15] : memref<9x128x128xbf16, #tpu.memory_space<vmem>>, vector<1x128x128xbf16>
      %37 = vector.shape_cast %36 : vector<1x128x128xbf16> to vector<128x128xbf16>
      %cst_16 = arith.constant dense<0.000000e+00> : vector<16x128xf32>
      %38 = tpu.matmul %32, %37, %cst_16 {dimension_numbers = #tpu.dot_dimension_numbers<[1], [0], [0], [1], [0, 0, 1, 1], [], []>} : vector<16x128xbf16>, vector<128x128xbf16>, vector<16x128xf32> -> vector<16x128xf32>
      %c3_i32_17 = arith.constant 3 : i32
      %39 = arith.muli %arg2, %c3_i32_17 : i32
      %c1_i32_18 = arith.constant 1 : i32
      %40 = arith.addi %39, %c1_i32_18 : i32
      %41 = arith.index_cast %40 : i32 to index
      %c0_19 = arith.constant 0 : index
      %c0_20 = arith.constant 0 : index
      %42 = vector.load %arg4[%41, %c0_19, %c0_20] : memref<9x128x128xbf16, #tpu.memory_space<vmem>>, vector<1x128x128xbf16>
      %43 = vector.shape_cast %42 : vector<1x128x128xbf16> to vector<128x128xbf16>
      %cst_21 = arith.constant dense<0.000000e+00> : vector<16x128xf32>
      %44 = tpu.matmul %32, %43, %cst_21 {dimension_numbers = #tpu.dot_dimension_numbers<[1], [0], [0], [1], [0, 0, 1, 1], [], []>} : vector<16x128xbf16>, vector<128x128xbf16>, vector<16x128xf32> -> vector<16x128xf32>
      %c3_i32_22 = arith.constant 3 : i32
      %45 = arith.muli %arg2, %c3_i32_22 : i32
      %c2_i32_23 = arith.constant 2 : i32
      %46 = arith.addi %45, %c2_i32_23 : i32
      %47 = arith.index_cast %46 : i32 to index
      %c0_24 = arith.constant 0 : index
      %c0_25 = arith.constant 0 : index
      %48 = vector.load %arg4[%47, %c0_24, %c0_25] : memref<9x128x128xbf16, #tpu.memory_space<vmem>>, vector<1x128x128xbf16>
      %49 = vector.shape_cast %48 : vector<1x128x128xbf16> to vector<128x128xbf16>
      %cst_26 = arith.constant dense<0.000000e+00> : vector<16x128xf32>
      %50 = tpu.matmul %32, %49, %cst_26 {dimension_numbers = #tpu.dot_dimension_numbers<[1], [0], [0], [1], [0, 0, 1, 1], [], []>} : vector<16x128xbf16>, vector<128x128xbf16>, vector<16x128xf32> -> vector<16x128xf32>
      %51 = tpu.iota {dimensions = array<i32: 0>} : vector<16x1xi32>
      %c1_i32_27 = arith.constant 1 : i32
      %52 = vector.broadcast %c1_i32_27 : i32 to vector<16x1xi32>
      %53 = arith.cmpi sge, %51, %52 : vector<16x1xi32>
      %c1_i32_28 = arith.constant 1 : i32
      %54 = tpu.dynamic_rotate %38 by %c1_i32_28 dim 0 : vector<16x128xf32>, i32 -> vector<16x128xf32>
      %cst_29 = arith.constant 0.000000e+00 : f32
      %55 = vector.shape_cast %53 : vector<16x1xi1> to vector<16x1xi1>
      %56 = vector.broadcast %55 : vector<16x1xi1> to vector<16x128xi1>
      %57 = vector.broadcast %cst_29 : f32 to vector<16x128xf32>
      %58 = arith.select %56, %54, %57 : vector<16x128xi1>, vector<16x128xf32>
      %c14_i32 = arith.constant 14 : i32
      %59 = vector.broadcast %c14_i32 : i32 to vector<16x1xi32>
      %60 = arith.cmpi sle, %51, %59 : vector<16x1xi32>
      %c15_i32 = arith.constant 15 : i32
      %61 = tpu.dynamic_rotate %50 by %c15_i32 dim 0 : vector<16x128xf32>, i32 -> vector<16x128xf32>
      %cst_30 = arith.constant 0.000000e+00 : f32
      %62 = vector.shape_cast %60 : vector<16x1xi1> to vector<16x1xi1>
      %63 = vector.broadcast %62 : vector<16x1xi1> to vector<16x128xi1>
      %64 = vector.broadcast %cst_30 : f32 to vector<16x128xf32>
      %65 = arith.select %63, %61, %64 : vector<16x128xi1>, vector<16x128xf32>
      %c0_31 = arith.constant 0 : index
      %c0_32 = arith.constant 0 : index
      %66 = vector.load %arg12[%c0_31, %c0_32] : memref<16x128xf32, #tpu.memory_space<vmem>>, vector<16x128xf32>
      %67 = arith.addf %66, %58 : vector<16x128xf32>
      %68 = arith.addf %67, %44 : vector<16x128xf32>
      %69 = arith.addf %68, %65 : vector<16x128xf32>
      %c0_33 = arith.constant 0 : index
      %c0_34 = arith.constant 0 : index
      %70 = vector.load %arg12[%c0_33, %c0_34] : memref<16x128xf32, #tpu.memory_space<vmem>>, vector<16x128xf32>
      tpu.vector_store %arg12[%c0_33, %c0_34], %69 {strides = array<i32>} : memref<16x128xf32, #tpu.memory_space<vmem>>, vector<16x128xf32>,
    } else {
    }
    %c2_i32 = arith.constant 2 : i32
    %10 = arith.cmpi eq, %arg2, %c2_i32 : i32
    %11 = arith.extui %10 : i1 to i32
    %c0_i32_3 = arith.constant 0 : i32
    %12 = arith.cmpi ne, %11, %c0_i32_3 : i32
    scf.if %12 {
      %c0 = arith.constant 0 : index
      %c0_4 = arith.constant 0 : index
      %13 = vector.load %arg12[%c0, %c0_4] : memref<16x128xf32, #tpu.memory_space<vmem>>, vector<16x128xf32>
      %c0_5 = arith.constant 0 : index
      %c0_6 = arith.constant 0 : index
      %14 = vector.load %arg5[%c0_5, %c0_6] : memref<1x128xf32, #tpu.memory_space<vmem>>, vector<1x128xf32>
      %15 = vector.shape_cast %14 : vector<1x128xf32> to vector<128xf32>
      %16 = vector.shape_cast %15 : vector<128xf32> to vector<1x128xf32>
      %17 = vector.broadcast %16 : vector<1x128xf32> to vector<16x128xf32>
      %18 = arith.addf %13, %17 : vector<16x128xf32>
      %c0_7 = arith.constant 0 : index
      %c0_8 = arith.constant 0 : index
      %19 = vector.load %arg10[%c0_7, %c0_8] : memref<1x128xf32, #tpu.memory_space<vmem>>, vector<1x128xf32>
      %20 = vector.shape_cast %19 : vector<1x128xf32> to vector<128xf32>
      %21 = vector.shape_cast %20 : vector<128xf32> to vector<1x128xf32>
      %22 = vector.broadcast %21 : vector<1x128xf32> to vector<16x128xf32>
      %23 = arith.addf %18, %22 : vector<16x128xf32>
      %c0_9 = arith.constant 0 : index
      %c0_10 = arith.constant 0 : index
      %c0_11 = arith.constant 0 : index
      %c0_12 = arith.constant 0 : index
      %24 = vector.load %arg8[%c0_9, %c0_10, %c0_11, %c0_12] : memref<1x1x16x64xbf16, #tpu.memory_space<vmem>>, vector<1x1x16x64xbf16>
      %25 = vector.shape_cast %24 : vector<1x1x16x64xbf16> to vector<16x64xbf16>
      %c0_13 = arith.constant 0 : index
      %c0_14 = arith.constant 0 : index
      %26 = vector.load %arg9[%c0_13, %c0_14] : memref<64x128xbf16, #tpu.memory_space<vmem>>, vector<64x128xbf16>
      %cst = arith.constant dense<0.000000e+00> : vector<16x128xf32>
      %27 = tpu.matmul %25, %26, %cst {dimension_numbers = #tpu.dot_dimension_numbers<[1], [0], [0], [1], [0, 0, 1, 1], [], []>} : vector<16x64xbf16>, vector<64x128xbf16>, vector<16x128xf32> -> vector<16x128xf32>
      %28 = arith.addf %23, %27 : vector<16x128xf32>
      %c0_15 = arith.constant 0 : index
      %c0_16 = arith.constant 0 : index
      %c0_17 = arith.constant 0 : index
      %c0_18 = arith.constant 0 : index
      %29 = vector.load %arg11[%c0_15, %c0_16, %c0_17, %c0_18] : memref<1x1x16x128xf32, #tpu.memory_space<vmem>>, vector<1x1x16x128xf32>
      %30 = vector.shape_cast %29 : vector<1x1x16x128xf32> to vector<16x128xf32>
      %31 = vector.shape_cast %28 : vector<16x128xf32> to vector<1x1x16x128xf32>
      tpu.vector_store %arg11[%c0_15, %c0_16, %c0_17, %c0_18], %31 {strides = array<i32>} : memref<1x1x16x128xf32, #tpu.memory_space<vmem>>, vector<1x1x16x128xf32>,
    } else {
    }
    return
  }
  func.func @transform_0(%arg0: i32, %arg1: i32, %arg2: i32) -> (i32, i32, i32, i32) {
    %0 = arith.addi %arg1, %arg2 : i32
    %c1_i32 = arith.constant 1 : i32
    %1 = arith.subi %0, %c1_i32 : i32
    %c0_i32 = arith.constant 0 : i32
    %2 = arith.maxsi %1, %c0_i32 : i32
    %c15_i32 = arith.constant 15 : i32
    %3 = arith.minsi %2, %c15_i32 : i32
    %c0_i32_0 = arith.constant 0 : i32
    %c0_i32_1 = arith.constant 0 : i32
    %c0_i32_2 = arith.constant 0 : i32
    return %arg0, %3, %c0_i32_0, %c0_i32_1 : i32, i32, i32, i32
  }
  func.func @transform_1(%arg0: i32, %arg1: i32, %arg2: i32) -> (i32, i32, i32) {
    %c0_i32 = arith.constant 0 : i32
    %c0_i32_0 = arith.constant 0 : i32
    %c0_i32_1 = arith.constant 0 : i32
    %c0_i32_2 = arith.constant 0 : i32
    return %c0_i32, %c0_i32_0, %c0_i32_1 : i32, i32, i32
  }
  func.func @transform_2(%arg0: i32, %arg1: i32, %arg2: i32) -> (i32, i32) {
    %c0_i32 = arith.constant 0 : i32
    %c0_i32_0 = arith.constant 0 : i32
    %c0_i32_1 = arith.constant 0 : i32
    return %c0_i32, %c0_i32_0 : i32, i32
  }
  func.func @transform_3(%arg0: i32, %arg1: i32, %arg2: i32) -> (i32, i32, i32) {
    %c0_i32 = arith.constant 0 : i32
    %c0_i32_0 = arith.constant 0 : i32
    %c0_i32_1 = arith.constant 0 : i32
    return %arg0, %c0_i32, %c0_i32_0 : i32, i32, i32
  }
  func.func @transform_4(%arg0: i32, %arg1: i32, %arg2: i32) -> (i32, i32, i32) {
    %c0_i32 = arith.constant 0 : i32
    %c0_i32_0 = arith.constant 0 : i32
    %c0_i32_1 = arith.constant 0 : i32
    return %arg0, %c0_i32, %c0_i32_0 : i32, i32, i32
  }
  func.func @transform_5(%arg0: i32, %arg1: i32, %arg2: i32) -> (i32, i32, i32, i32) {
    %c0_i32 = arith.constant 0 : i32
    %c0_i32_0 = arith.constant 0 : i32
    %c0_i32_1 = arith.constant 0 : i32
    return %arg0, %arg1, %c0_i32, %c0_i32_0 : i32, i32, i32, i32
  }
  func.func @transform_6(%arg0: i32, %arg1: i32, %arg2: i32) -> (i32, i32) {
    %c0_i32 = arith.constant 0 : i32
    %c0_i32_0 = arith.constant 0 : i32
    %c0_i32_1 = arith.constant 0 : i32
    return %c0_i32, %c0_i32_0 : i32, i32
  }
  func.func @transform_7(%arg0: i32, %arg1: i32, %arg2: i32) -> (i32, i32) {
    %c0_i32 = arith.constant 0 : i32
    %c0_i32_0 = arith.constant 0 : i32
    %c0_i32_1 = arith.constant 0 : i32
    return %c0_i32, %c0_i32_0 : i32, i32
  }
  func.func @transform_8(%arg0: i32, %arg1: i32, %arg2: i32) -> (i32, i32, i32, i32) {
    %c0_i32 = arith.constant 0 : i32
    %c0_i32_0 = arith.constant 0 : i32
    %c0_i32_1 = arith.constant 0 : i32
    return %arg0, %arg1, %c0_i32, %c0_i32_0 : i32, i32, i32, i32
  }
}

</mosaic_0001>

<llo_original>
// kernel: resnet_block_forward.4
$region0: #{resnet_block_forward.4}
  #allocation0 [shape = 'u32[]', space=smem, size = 0x4, offset = 0x4, fixed_abs, tag = 'smem constant byte address 0x4 - core index']
  #allocation1 [shape = 'u32[144,128]{1,0:T(1,128)}', space=vmem, size = 0x12000, scoped, tag = 'internal scratch']
  %s0 = inlined_call_operand.vmem [shape: bf16[2,16,16,64], index: 0, kind: input, shape index: {}]
  %s1 = inlined_call_operand.vmem [shape: f32[2,1,64], index: 1, kind: output, shape index: {0}]
  %s2 = inlined_call_operand.vmem [shape: f32[2,1,64], index: 2, kind: output, shape index: {1}]
  %3 = xla_tuple %s1, %s2
  %s4 = sld [smem:[#allocation0]]
  $region49: #{resnet_block_forward.4} parent=0
    _
  %s6 = ssub.s32 1, %s4
  %s7 = scalar_select 0, %s6, %s4
  loop: start=0, step=1, limit=4
  $region2: #{resnet_block_forward.4} parent=0 // loop_pre_header
    _
  $region3: #{resnet_block_forward.4} parent=0 // loop_header
    %s9 = sphi 0, %s13
    %p10 = scmp.ge.s32.totalorder %s9, 4
    %s16 = sphi 0, %s28
    %s17 = sphi 0, %s24
    %s18 = sphi 0, %s16
    %s19 = sphi 0, %s17
    %s20 = sphi 0, %s18
    %s21 = sphi 0, %s19
    %s33 = sphi 0, %s35
    %s36 = sphi 0, %s33
    %s37 = sphi 0, %s36
    %s53 = sphi 0, %s37
    %s59 = sphi 0, %s61
    %s62 = sphi 0, %s59
    %s63 = sphi 0, %s62
    %s79 = sphi 0, %s63
    %s85 = sphi 0, %s87
    %s88 = sphi 0, %s85
    %s89 = sphi 0, %s88
    %s105 = sphi 0, %s89
  $region4: #{resnet_block_forward.4} parent=0 // loop_header_branch
    %12 = sbr.rel (%p10) target = $region8
  $region5: #{resnet_block_forward.4} parent=0 // loop_body
    %s14 = ssub.s32 %s9, 1
    %s15 = ssub.s32 %s9, 2
    %s22 = sadd.s32 1, %s17
    %p23 = scmp.ge.s32.totalorder %s22, 1
    %s24 = scalar_select %p23, 0, %s22
    %s25 = sadd.s32 1, %s16
    %s26 = scalar_select %p23, %s25, %s16
    %p27 = scmp.ge.s32.totalorder %s26, 2
    %s28 = scalar_select %p27, 0, %s26
    %s29 = ssub.s32 %s16, %s28
    %s30 = ssub.s32 %s17, %s24
    %s31 = sor.u32 %s29, %s30
    %p32 = scmp.eq.s32.totalorder %s31, 0
    %s34 = sadd.s32 %s33, 1
    %s35 = scalar_select %p32, %s33, %s34
    %p38 = pneg %p32
    %p39 = scmp.eq.s32.totalorder %s9, 1
    %p40 = por %p38, %p39
    %p41 = scmp.ne.s32.totalorder %s33, %s36
    %p42 = scmp.eq.s32.totalorder %s9, 0
    %p43 = por %p41, %p42
    %p44 = scmp.ne.s32.totalorder %s33, %s36
    %p45 = scmp.eq.s32.totalorder %s14, 1
    %p46 = por %p44, %p45
    %p47 = scmp.ne.s32.totalorder %s36, %s37
    %p48 = scmp.eq.s32.totalorder %s14, 0
    %p49 = por %p47, %p48
    %p50 = scmp.ne.s32.totalorder %s36, %s37
    %p51 = scmp.eq.s32.totalorder %s15, 1
    %p52 = por %p50, %p51
    %p54 = scmp.ne.s32.totalorder %s37, %s53
    %p55 = scmp.eq.s32.totalorder %s15, 0
    %p56 = por %p54, %p55
    %s57 = ssub.s32 %s16, %s28
    %p58 = scmp.eq.s32.totalorder %s57, 0
    %s60 = sadd.s32 %s59, 1
    %s61 = scalar_select %p58, %s59, %s60
    %p64 = pneg %p58
    %p65 = scmp.eq.s32.totalorder %s9, 1
    %p66 = por %p64, %p65
    %p67 = scmp.ne.s32.totalorder %s59, %s62
    %p68 = scmp.eq.s32.totalorder %s9, 0
    %p69 = por %p67, %p68
    %p70 = scmp.ne.s32.totalorder %s59, %s62
    %p71 = scmp.eq.s32.totalorder %s14, 1
    %p72 = por %p70, %p71
    %p73 = scmp.ne.s32.totalorder %s62, %s63
    %p74 = scmp.eq.s32.totalorder %s14, 0
    %p75 = por %p73, %p74
    %p76 = scmp.ne.s32.totalorder %s62, %s63
    %p77 = scmp.eq.s32.totalorder %s15, 1
    %p78 = por %p76, %p77
    %p80 = scmp.ne.s32.totalorder %s63, %s79
    %p81 = scmp.eq.s32.totalorder %s15, 0
    %p82 = por %p80, %p81
    %s83 = ssub.s32 %s16, %s28
    %p84 = scmp.eq.s32.totalorder %s83, 0
    %s86 = sadd.s32 %s85, 1
    %s87 = scalar_select %p84, %s85, %s86
    %p90 = pneg %p84
    %p91 = scmp.eq.s32.totalorder %s9, 1
    %p92 = por %p90, %p91
    %p93 = scmp.ne.s32.totalorder %s85, %s88
    %p94 = scmp.eq.s32.totalorder %s9, 0
    %p95 = por %p93, %p94
    %p96 = scmp.ne.s32.totalorder %s85, %s88
    %p97 = scmp.eq.s32.totalorder %s14, 1
    %p98 = por %p96, %p97
    %p99 = scmp.ne.s32.totalorder %s88, %s89
    %p100 = scmp.eq.s32.totalorder %s14, 0
    %p101 = por %p99, %p100
    %p102 = scmp.ne.s32.totalorder %s88, %s89
    %p103 = scmp.eq.s32.totalorder %s15, 1
    %p104 = por %p102, %p103
    %p106 = scmp.ne.s32.totalorder %s89, %s105
    %p107 = scmp.eq.s32.totalorder %s15, 0
    %p108 = por %p106, %p107
    %p109 = scmp.le.s32.totalorder 1, %s9
    %p110 = scmp.lt.s32.totalorder %s9, 3
    %p111 = pnand %p109, %p110
    %p112 = pneg %p111
    // Predicated region
    $region9: #{resnet_block_forward.4} parent=5 // pred_check
      _
    $region10: #{resnet_block_forward.4} parent=5 // pred_check_branch
      %114 = sbr.rel (%p111) target = $region12
    $region11: #{resnet_block_forward.4} parent=5 // pred_region
      %s115 = ssub.s32 %s9, 1
    $region12: #{resnet_block_forward.4} parent=5 // pred_fallthru
      _
    %p116 = scmp.lt.s32.totalorder %s9, 2
    // Predicated region
    $region13: #{resnet_block_forward.4} parent=5 // pred_check
      %p117 = pneg %p116
    $region14: #{resnet_block_forward.4} parent=5 // pred_check_branch
      %119 = sbr.rel (%p117) target = $region16
    $region15: #{resnet_block_forward.4} parent=5 // pred_region
      // Predicated region
      $region17: #{resnet_block_forward.4} parent=15 // pred_check
        %p120 = pneg %p43
      $region18: #{resnet_block_forward.4} parent=15 // pred_check_branch
        %122 = sbr.rel (%p120) target = $region20
      $region19: #{resnet_block_forward.4} parent=15 // pred_region
        %s123 = smul.u32 16, %s17
        %p124 = scmp.lt.s32.totalorder %s16, 1
        %s125 = scalar_select %p124, %s16, 1
        %p126 = scmp.lt.s32.totalorder %s123, 15
        %s127 = scalar_select %p126, %s123, 15
        %s128 = smul.addr %s127, 2
        %s129 = smul.addr %s125, 32
        %s130 = sadd.s32 %s128, %s129
        %s131 = smul.addr %s130, 4
        %s132 = scalar_lea.vmem %s0, %s131
        %s133 = smul.u32 16, %s17
      $region20: #{resnet_block_forward.4} parent=15 // pred_fallthru
        _
    $region16: #{resnet_block_forward.4} parent=5 // pred_fallthru
      _
    %p134 = scmp.le.s32.totalorder 1, %s9
    %p135 = scmp.lt.s32.totalorder %s9, 3
    %p136 = pnand %p134, %p135
    %p137 = pneg %p136
    // Predicated region
    $region21: #{resnet_block_forward.4} parent=5 // pred_check
      _
    $region22: #{resnet_block_forward.4} parent=5 // pred_check_branch
      %139 = sbr.rel (%p136) target = $region24
    $region23: #{resnet_block_forward.4} parent=5 // pred_region
      %s140 = ssub.s32 %s9, 1
      %s141 = smul.u32 16, %s19
      %p142 = scmp.lt.s32.totalorder %s18, 1
      %s143 = scalar_select %p142, %s18, 1
      %p144 = scmp.lt.s32.totalorder %s141, 15
      %s145 = scalar_select %p144, %s141, 15
      %s146 = smul.addr %s145, 2
      %s147 = smul.addr %s143, 32
      %s148 = sadd.s32 %s146, %s147
      %s149 = smul.addr %s148, 4
      %s150 = scalar_lea.vmem %s0, %s149
      %p151 = pneg %p49
      %p152 = pneg %p46
      %p153 = pneg %p75
      %p154 = pneg %p72
      %p155 = scmp.lt.s32.totalorder %s18, 1
      %s156 = scalar_select %p155, %s18, 1
      %s157 = scalar_lea.vmem %s1, %s156
      %p158 = pneg %p101
      %p159 = pneg %p98
      %p160 = scmp.lt.s32.totalorder %s18, 1
      %s161 = scalar_select %p160, %s18, 1
      %s162 = scalar_lea.vmem %s2, %s161
      %s163 = smul.u32 16, %s19
      %p164 = scmp.lt.s32.totalorder %s18, 1
      %s165 = scalar_select %p164, %s18, 1
      %p166 = scmp.lt.s32.totalorder %s163, 15
      %s167 = scalar_select %p166, %s163, 15
      %s168 = smul.addr %s167, 2
      %s169 = smul.addr %s165, 32
      %s170 = sadd.s32 %s168, %s169
      %s171 = smul.addr %s170, 4
      %s172 = scalar_lea.vmem %s0, %s171
      %s173 = smul.u32 16, %s19
      %p174 = scmp.lt.s32.totalorder %s18, 1
      %s175 = scalar_select %p174, %s18, 1
      %s176 = scalar_lea.vmem %s1, %s175
      %p177 = scmp.lt.s32.totalorder %s18, 1
      %s178 = scalar_select %p177, %s18, 1
      %s179 = scalar_lea.vmem %s2, %s178
      %p180 = scmp.eq.s32.totalorder %s19, 0
      // Predicated region
      $region25: #{resnet_block_forward.4} parent=23 // pred_check
        %p181 = pneg %p180
      $region26: #{resnet_block_forward.4} parent=23 // pred_check_branch
        %183 = sbr.rel (%p181) target = $region28
      $region27: #{resnet_block_forward.4} parent=23 // pred_region
        %vm184 = vcmask 516096
        %185 = vst.msk [vmem:[%s176] sm:$0x1] %vm184, 0.0
        %186 = vst.msk [vmem:[%s179] sm:$0x1] %vm184, 0.0
      $region28: #{resnet_block_forward.4} parent=23 // pred_fallthru
        _
      %v187 = vld [vmem:[%s172] sm:$0xf]
      %v188 = vld [vmem:[%s172 + $0x4] sm:$0xf]
      %v189 = vld [vmem:[%s172 + $0x8] sm:$0xf]
      %v190 = vld [vmem:[%s172 + $0xc] sm:$0xf]
      %v191 = vld [vmem:[%s172 + $0x10] sm:$0xf]
      %v192 = vld [vmem:[%s172 + $0x14] sm:$0xf]
      %v193 = vld [vmem:[%s172 + $0x18] sm:$0xf]
      %v194 = vld [vmem:[%s172 + $0x1c] sm:$0xf]
      %v195 = vld [vmem:[%s172 + $0x20] sm:$0xf]
      %v196 = vld [vmem:[%s172 + $0x24] sm:$0xf]
      %v197 = vld [vmem:[%s172 + $0x28] sm:$0xf]
      %v198 = vld [vmem:[%s172 + $0x2c] sm:$0xf]
      %v199 = vld [vmem:[%s172 + $0x30] sm:$0xf]
      %v200 = vld [vmem:[%s172 + $0x34] sm:$0xf]
      %v201 = vld [vmem:[%s172 + $0x38] sm:$0xf]
      %v202 = vld [vmem:[%s172 + $0x3c] sm:$0xf]
      %v203 = vld [vmem:[%s172 + $0x40] sm:$0xf]
      %v204 = vld [vmem:[%s172 + $0x44] sm:$0xf]
      %v205 = vld [vmem:[%s172 + $0x48] sm:$0xf]
      %v206 = vld [vmem:[%s172 + $0x4c] sm:$0xf]
      %v207 = vld [vmem:[%s172 + $0x50] sm:$0xf]
      %v208 = vld [vmem:[%s172 + $0x54] sm:$0xf]
      %v209 = vld [vmem:[%s172 + $0x58] sm:$0xf]
      %v210 = vld [vmem:[%s172 + $0x5c] sm:$0xf]
      %v211 = vld [vmem:[%s172 + $0x60] sm:$0xf]
      %v212 = vld [vmem:[%s172 + $0x64] sm:$0xf]
      %v213 = vld [vmem:[%s172 + $0x68] sm:$0xf]
      %v214 = vld [vmem:[%s172 + $0x6c] sm:$0xf]
      %v215 = vld [vmem:[%s172 + $0x70] sm:$0xf]
      %v216 = vld [vmem:[%s172 + $0x74] sm:$0xf]
      %v217 = vld [vmem:[%s172 + $0x78] sm:$0xf]
      %v218 = vld [vmem:[%s172 + $0x7c] sm:$0xf]
      %v219 = vunpack.c.l.bf16 %v187
      %v220 = vunpack.c.l.bf16 %v188
      %v221 = vunpack.c.l.bf16 %v189
      %v222 = vunpack.c.l.bf16 %v190
      %v223 = vunpack.c.l.bf16 %v191
      %v224 = vunpack.c.l.bf16 %v192
      %v225 = vunpack.c.l.bf16 %v193
      %v226 = vunpack.c.l.bf16 %v194
      %v227 = vunpack.c.l.bf16 %v195
      %v228 = vunpack.c.l.bf16 %v196
      %v229 = vunpack.c.l.bf16 %v197
      %v230 = vunpack.c.l.bf16 %v198
      %v231 = vunpack.c.l.bf16 %v199
      %v232 = vunpack.c.l.bf16 %v200
      %v233 = vunpack.c.l.bf16 %v201
      %v234 = vunpack.c.l.bf16 %v202
      %v235 = vunpack.c.l.bf16 %v203
      %v236 = vunpack.c.l.bf16 %v204
      %v237 = vunpack.c.l.bf16 %v205
      %v238 = vunpack.c.l.bf16 %v206
      %v239 = vunpack.c.l.bf16 %v207
      %v240 = vunpack.c.l.bf16 %v208
      %v241 = vunpack.c.l.bf16 %v209
      %v242 = vunpack.c.l.bf16 %v210
      %v243 = vunpack.c.l.bf16 %v211
      %v244 = vunpack.c.l.bf16 %v212
      %v245 = vunpack.c.l.bf16 %v213
      %v246 = vunpack.c.l.bf16 %v214
      %v247 = vunpack.c.l.bf16 %v215
      %v248 = vunpack.c.l.bf16 %v216
      %v249 = vunpack.c.l.bf16 %v217
      %v250 = vunpack.c.l.bf16 %v218
      %v251 = vld [vmem:[%s176] sm:$0x1]
      %vm252 = vcmask 523264
      %v253 = vsel %vm252, %v219, 0.0
      %v254 = vsel %vm252, %v220, 0.0
      %v255 = vadd.f32 %v253, %v254
      %v256 = vsel %vm252, %v221, 0.0
      %v257 = vadd.f32 %v255, %v256
      %v258 = vsel %vm252, %v222, 0.0
      %v259 = vadd.f32 %v257, %v258
      %v260 = vsel %vm252, %v223, 0.0
      %v261 = vadd.f32 %v259, %v260
      %v262 = vsel %vm252, %v224, 0.0
      %v263 = vadd.f32 %v261, %v262
      %v264 = vsel %vm252, %v225, 0.0
      %v265 = vadd.f32 %v263, %v264
      %v266 = vsel %vm252, %v226, 0.0
      %v267 = vadd.f32 %v265, %v266
      %v268 = vsel %vm252, %v227, 0.0
      %v269 = vadd.f32 %v267, %v268
      %v270 = vsel %vm252, %v228, 0.0
      %v271 = vadd.f32 %v269, %v270
      %v272 = vsel %vm252, %v229, 0.0
      %v273 = vadd.f32 %v271, %v272
      %v274 = vsel %vm252, %v230, 0.0
      %v275 = vadd.f32 %v273, %v274
      %v276 = vsel %vm252, %v231, 0.0
      %v277 = vadd.f32 %v275, %v276
      %v278 = vsel %vm252, %v232, 0.0
      %v279 = vadd.f32 %v277, %v278
      %v280 = vsel %vm252, %v233, 0.0
      %v281 = vadd.f32 %v279, %v280
      %v282 = vsel %vm252, %v234, 0.0
      %v283 = vadd.f32 %v281, %v282
      %v284 = vsel %vm252, %v235, 0.0
      %v285 = vadd.f32 %v283, %v284
      %v286 = vsel %vm252, %v236, 0.0
      %v287 = vadd.f32 %v285, %v286
      %v288 = vsel %vm252, %v237, 0.0
      %v289 = vadd.f32 %v287, %v288
      %v290 = vsel %vm252, %v238, 0.0
      %v291 = vadd.f32 %v289, %v290
      %v292 = vsel %vm252, %v239, 0.0
      %v293 = vadd.f32 %v291, %v292
      %v294 = vsel %vm252, %v240, 0.0
      %v295 = vadd.f32 %v293, %v294
      %v296 = vsel %vm252, %v241, 0.0
      %v297 = vadd.f32 %v295, %v296
      %v298 = vsel %vm252, %v242, 0.0
      %v299 = vadd.f32 %v297, %v298
      %v300 = vsel %vm252, %v243, 0.0
      %v301 = vadd.f32 %v299, %v300
      %v302 = vsel %vm252, %v244, 0.0
      %v303 = vadd.f32 %v301, %v302
      %v304 = vsel %vm252, %v245, 0.0
      %v305 = vadd.f32 %v303, %v304
      %v306 = vsel %vm252, %v246, 0.0
      %v307 = vadd.f32 %v305, %v306
      %v308 = vsel %vm252, %v247, 0.0
      %v309 = vadd.f32 %v307, %v308
      %v310 = vsel %vm252, %v248, 0.0
      %v311 = vadd.f32 %v309, %v310
      %v312 = vsel %vm252, %v249, 0.0
      %v313 = vadd.f32 %v311, %v312
      %v314 = vsel %vm252, %v250, 0.0
      %v315 = vadd.f32 %v313, %v314
      %v316 = vrot.slane %v315, 4
      %v317 = vadd.f32 %v315, %v316
      %v318 = vrot.slane %v317, 2
      %v319 = vadd.f32 %v317, %v318
      %v320 = vrot.slane %v319, 1
      %v321 = vadd.f32 %v319, %v320
      %v322 = vadd.f32 %v251, %v321
      %vm323 = vcmask 516096
      %324 = vst.msk [vmem:[%s176] sm:$0x1] %vm323, %v322
      %v325 = vld [vmem:[%s179] sm:$0x1]
      %v326 = vmul.f32 %v219, %v219
      %v327 = vmul.f32 %v220, %v220
      %v328 = vmul.f32 %v221, %v221
      %v329 = vmul.f32 %v222, %v222
      %v330 = vmul.f32 %v223, %v223
      %v331 = vmul.f32 %v224, %v224
      %v332 = vmul.f32 %v225, %v225
      %v333 = vmul.f32 %v226, %v226
      %v334 = vmul.f32 %v227, %v227
      %v335 = vmul.f32 %v228, %v228
      %v336 = vmul.f32 %v229, %v229
      %v337 = vmul.f32 %v230, %v230
      %v338 = vmul.f32 %v231, %v231
      %v339 = vmul.f32 %v232, %v232
      %v340 = vmul.f32 %v233, %v233
      %v341 = vmul.f32 %v234, %v234
      %v342 = vmul.f32 %v235, %v235
      %v343 = vmul.f32 %v236, %v236
      %v344 = vmul.f32 %v237, %v237
      %v345 = vmul.f32 %v238, %v238
      %v346 = vmul.f32 %v239, %v239
      %v347 = vmul.f32 %v240, %v240
      %v348 = vmul.f32 %v241, %v241
      %v349 = vmul.f32 %v242, %v242
      %v350 = vmul.f32 %v243, %v243
      %v351 = vmul.f32 %v244, %v244
      %v352 = vmul.f32 %v245, %v245
      %v353 = vmul.f32 %v246, %v246
      %v354 = vmul.f32 %v247, %v247
      %v355 = vmul.f32 %v248, %v248
      %v356 = vmul.f32 %v249, %v249
      %v357 = vmul.f32 %v250, %v250
      %v358 = vsel %vm252, %v326, 0.0
      %v359 = vsel %vm252, %v327, 0.0
      %v360 = vadd.f32 %v358, %v359
      %v361 = vsel %vm252, %v328, 0.0
      %v362 = vadd.f32 %v360, %v361
      %v363 = vsel %vm252, %v329, 0.0
      %v364 = vadd.f32 %v362, %v363
      %v365 = vsel %vm252, %v330, 0.0
      %v366 = vadd.f32 %v364, %v365
      %v367 = vsel %vm252, %v331, 0.0
      %v368 = vadd.f32 %v366, %v367
      %v369 = vsel %vm252, %v332, 0.0
      %v370 = vadd.f32 %v368, %v369
      %v371 = vsel %vm252, %v333, 0.0
      %v372 = vadd.f32 %v370, %v371
      %v373 = vsel %vm252, %v334, 0.0
      %v374 = vadd.f32 %v372, %v373
      %v375 = vsel %vm252, %v335, 0.0
      %v376 = vadd.f32 %v374, %v375
      %v377 = vsel %vm252, %v336, 0.0
      %v378 = vadd.f32 %v376, %v377
      %v379 = vsel %vm252, %v337, 0.0
      %v380 = vadd.f32 %v378, %v379
      %v381 = vsel %vm252, %v338, 0.0
      %v382 = vadd.f32 %v380, %v381
      %v383 = vsel %vm252, %v339, 0.0
      %v384 = vadd.f32 %v382, %v383
      %v385 = vsel %vm252, %v340, 0.0
      %v386 = vadd.f32 %v384, %v385
      %v387 = vsel %vm252, %v341, 0.0
      %v388 = vadd.f32 %v386, %v387
      %v389 = vsel %vm252, %v342, 0.0
      %v390 = vadd.f32 %v388, %v389
      %v391 = vsel %vm252, %v343, 0.0
      %v392 = vadd.f32 %v390, %v391
      %v393 = vsel %vm252, %v344, 0.0
      %v394 = vadd.f32 %v392, %v393
      %v395 = vsel %vm252, %v345, 0.0
      %v396 = vadd.f32 %v394, %v395
      %v397 = vsel %vm252, %v346, 0.0
      %v398 = vadd.f32 %v396, %v397
      %v399 = vsel %vm252, %v347, 0.0
      %v400 = vadd.f32 %v398, %v399
      %v401 = vsel %vm252, %v348, 0.0
      %v402 = vadd.f32 %v400, %v401
      %v403 = vsel %vm252, %v349, 0.0
      %v404 = vadd.f32 %v402, %v403
      %v405 = vsel %vm252, %v350, 0.0
      %v406 = vadd.f32 %v404, %v405
      %v407 = vsel %vm252, %v351, 0.0
      %v408 = vadd.f32 %v406, %v407
      %v409 = vsel %vm252, %v352, 0.0
      %v410 = vadd.f32 %v408, %v409
      %v411 = vsel %vm252, %v353, 0.0
      %v412 = vadd.f32 %v410, %v411
      %v413 = vsel %vm252, %v354, 0.0
      %v414 = vadd.f32 %v412, %v413
      %v415 = vsel %vm252, %v355, 0.0
      %v416 = vadd.f32 %v414, %v415
      %v417 = vsel %vm252, %v356, 0.0
      %v418 = vadd.f32 %v416, %v417
      %v419 = vsel %vm252, %v357, 0.0
      %v420 = vadd.f32 %v418, %v419
      %v421 = vrot.slane %v420, 4
      %v422 = vadd.f32 %v420, %v421
      %v423 = vrot.slane %v422, 2
      %v424 = vadd.f32 %v422, %v423
      %v425 = vrot.slane %v424, 1
      %v426 = vadd.f32 %v424, %v425
      %v427 = vadd.f32 %v325, %v426
      %428 = vst.msk [vmem:[%s179] sm:$0x1] %vm323, %v427
      %p429 = scmp.lt.s32.totalorder %s18, 1
      %s430 = scalar_select %p429, %s18, 1
      %s431 = scalar_lea.vmem %s1, %s430
      %p432 = scmp.lt.s32.totalorder %s18, 1
      %s433 = scalar_select %p432, %s18, 1
      %s434 = scalar_lea.vmem %s2, %s433
      // Predicated region
      $region29: #{resnet_block_forward.4} parent=23 // pred_check
        %p435 = pneg %p72
      $region30: #{resnet_block_forward.4} parent=23 // pred_check_branch
        %437 = sbr.rel (%p435) target = $region32
      $region31: #{resnet_block_forward.4} parent=23 // pred_region
        _
      $region32: #{resnet_block_forward.4} parent=23 // pred_fallthru
        _
      // Predicated region
      $region33: #{resnet_block_forward.4} parent=23 // pred_check
        %p438 = pneg %p98
      $region34: #{resnet_block_forward.4} parent=23 // pred_check_branch
        %440 = sbr.rel (%p438) target = $region36
      $region35: #{resnet_block_forward.4} parent=23 // pred_region
        _
      $region36: #{resnet_block_forward.4} parent=23 // pred_fallthru
        _
    $region24: #{resnet_block_forward.4} parent=5 // pred_fallthru
      _
    %p441 = scmp.le.s32.totalorder 2, %s9
    // Predicated region
    $region37: #{resnet_block_forward.4} parent=5 // pred_check
      %p442 = pneg %p441
    $region38: #{resnet_block_forward.4} parent=5 // pred_check_branch
      %444 = sbr.rel (%p442) target = $region40
    $region39: #{resnet_block_forward.4} parent=5 // pred_region
      %s445 = ssub.s32 %s9, 2
      // Predicated region
      $region41: #{resnet_block_forward.4} parent=39 // pred_check
        %p446 = pneg %p78
      $region42: #{resnet_block_forward.4} parent=39 // pred_check_branch
        %448 = sbr.rel (%p446) target = $region44
      $region43: #{resnet_block_forward.4} parent=39 // pred_region
        %p449 = scmp.lt.s32.totalorder %s20, 1
        %s450 = scalar_select %p449, %s20, 1
        %s451 = scalar_lea.vmem %s1, %s450
      $region44: #{resnet_block_forward.4} parent=39 // pred_fallthru
        _
      // Predicated region
      $region45: #{resnet_block_forward.4} parent=39 // pred_check
        %p452 = pneg %p104
      $region46: #{resnet_block_forward.4} parent=39 // pred_check_branch
        %454 = sbr.rel (%p452) target = $region48
      $region47: #{resnet_block_forward.4} parent=39 // pred_region
        %p455 = scmp.lt.s32.totalorder %s20, 1
        %s456 = scalar_select %p455, %s20, 1
        %s457 = scalar_lea.vmem %s2, %s456
      $region48: #{resnet_block_forward.4} parent=39 // pred_fallthru
        _
    $region40: #{resnet_block_forward.4} parent=5 // pred_fallthru
      _
  $region6: #{resnet_block_forward.4} parent=0 // loop_footer
    %s13 = sadd.s32 1, %s9
  $region7: #{resnet_block_forward.4} parent=0 // loop_footer_branch
    %8 = sbr.rel target = $region3
  $region8: #{resnet_block_forward.4} parent=0 // loop_exit
    _

// kernel: resnet_block_forward.6
$region0: #{resnet_block_forward.6}
  #allocation0 [shape = 'u32[]', space=smem, size = 0x4, offset = 0x4, fixed_abs, tag = 'smem constant byte address 0x4 - core index']
  #allocation1 [shape = 'u32[144,128]{1,0:T(1,128)}', space=vmem, size = 0x12000, scoped, tag = 'internal scratch']
  %s0 = inlined_call_operand.vmem [shape: bf16[2,16,16,128], index: 0, kind: input, shape index: {}]
  %s1 = inlined_call_operand.vmem [shape: f32[2,1,128], index: 1, kind: output, shape index: {0}]
  %s2 = inlined_call_operand.vmem [shape: f32[2,1,128], index: 2, kind: output, shape index: {1}]
  %3 = xla_tuple %s1, %s2
  %s4 = sld [smem:[#allocation0]]
  $region49: #{resnet_block_forward.6} parent=0
    _
  %s6 = ssub.s32 1, %s4
  %s7 = scalar_select 0, %s6, %s4
  loop: start=0, step=1, limit=4
  $region2: #{resnet_block_forward.6} parent=0 // loop_pre_header
    _
  $region3: #{resnet_block_forward.6} parent=0 // loop_header
    %s9 = sphi 0, %s13
    %p10 = scmp.ge.s32.totalorder %s9, 4
    %s16 = sphi 0, %s28
    %s17 = sphi 0, %s24
    %s18 = sphi 0, %s16
    %s19 = sphi 0, %s17
    %s20 = sphi 0, %s18
    %s21 = sphi 0, %s19
    %s33 = sphi 0, %s35
    %s36 = sphi 0, %s33
    %s37 = sphi 0, %s36
    %s53 = sphi 0, %s37
    %s59 = sphi 0, %s61
    %s62 = sphi 0, %s59
    %s63 = sphi 0, %s62
    %s79 = sphi 0, %s63
    %s85 = sphi 0, %s87
    %s88 = sphi 0, %s85
    %s89 = sphi 0, %s88
    %s105 = sphi 0, %s89
  $region4: #{resnet_block_forward.6} parent=0 // loop_header_branch
    %12 = sbr.rel (%p10) target = $region8
  $region5: #{resnet_block_forward.6} parent=0 // loop_body
    %s14 = ssub.s32 %s9, 1
    %s15 = ssub.s32 %s9, 2
    %s22 = sadd.s32 1, %s17
    %p23 = scmp.ge.s32.totalorder %s22, 1
    %s24 = scalar_select %p23, 0, %s22
    %s25 = sadd.s32 1, %s16
    %s26 = scalar_select %p23, %s25, %s16
    %p27 = scmp.ge.s32.totalorder %s26, 2
    %s28 = scalar_select %p27, 0, %s26
    %s29 = ssub.s32 %s16, %s28
    %s30 = ssub.s32 %s17, %s24
    %s31 = sor.u32 %s29, %s30
    %p32 = scmp.eq.s32.totalorder %s31, 0
    %s34 = sadd.s32 %s33, 1
    %s35 = scalar_select %p32, %s33, %s34
    %p38 = pneg %p32
    %p39 = scmp.eq.s32.totalorder %s9, 1
    %p40 = por %p38, %p39
    %p41 = scmp.ne.s32.totalorder %s33, %s36
    %p42 = scmp.eq.s32.totalorder %s9, 0
    %p43 = por %p41, %p42
    %p44 = scmp.ne.s32.totalorder %s33, %s36
    %p45 = scmp.eq.s32.totalorder %s14, 1
    %p46 = por %p44, %p45
    %p47 = scmp.ne.s32.totalorder %s36, %s37
    %p48 = scmp.eq.s32.totalorder %s14, 0
    %p49 = por %p47, %p48
    %p50 = scmp.ne.s32.totalorder %s36, %s37
    %p51 = scmp.eq.s32.totalorder %s15, 1
    %p52 = por %p50, %p51
    %p54 = scmp.ne.s32.totalorder %s37, %s53
    %p55 = scmp.eq.s32.totalorder %s15, 0
    %p56 = por %p54, %p55
    %s57 = ssub.s32 %s16, %s28
    %p58 = scmp.eq.s32.totalorder %s57, 0
    %s60 = sadd.s32 %s59, 1
    %s61 = scalar_select %p58, %s59, %s60
    %p64 = pneg %p58
    %p65 = scmp.eq.s32.totalorder %s9, 1
    %p66 = por %p64, %p65
    %p67 = scmp.ne.s32.totalorder %s59, %s62
    %p68 = scmp.eq.s32.totalorder %s9, 0
    %p69 = por %p67, %p68
    %p70 = scmp.ne.s32.totalorder %s59, %s62
    %p71 = scmp.eq.s32.totalorder %s14, 1
    %p72 = por %p70, %p71
    %p73 = scmp.ne.s32.totalorder %s62, %s63
    %p74 = scmp.eq.s32.totalorder %s14, 0
    %p75 = por %p73, %p74
    %p76 = scmp.ne.s32.totalorder %s62, %s63
    %p77 = scmp.eq.s32.totalorder %s15, 1
    %p78 = por %p76, %p77
    %p80 = scmp.ne.s32.totalorder %s63, %s79
    %p81 = scmp.eq.s32.totalorder %s15, 0
    %p82 = por %p80, %p81
    %s83 = ssub.s32 %s16, %s28
    %p84 = scmp.eq.s32.totalorder %s83, 0
    %s86 = sadd.s32 %s85, 1
    %s87 = scalar_select %p84, %s85, %s86
    %p90 = pneg %p84
    %p91 = scmp.eq.s32.totalorder %s9, 1
    %p92 = por %p90, %p91
    %p93 = scmp.ne.s32.totalorder %s85, %s88
    %p94 = scmp.eq.s32.totalorder %s9, 0
    %p95 = por %p93, %p94
    %p96 = scmp.ne.s32.totalorder %s85, %s88
    %p97 = scmp.eq.s32.totalorder %s14, 1
    %p98 = por %p96, %p97
    %p99 = scmp.ne.s32.totalorder %s88, %s89
    %p100 = scmp.eq.s32.totalorder %s14, 0
    %p101 = por %p99, %p100
    %p102 = scmp.ne.s32.totalorder %s88, %s89
    %p103 = scmp.eq.s32.totalorder %s15, 1
    %p104 = por %p102, %p103
    %p106 = scmp.ne.s32.totalorder %s89, %s105
    %p107 = scmp.eq.s32.totalorder %s15, 0
    %p108 = por %p106, %p107
    %p109 = scmp.le.s32.totalorder 1, %s9
    %p110 = scmp.lt.s32.totalorder %s9, 3
    %p111 = pnand %p109, %p110
    %p112 = pneg %p111
    // Predicated region
    $region9: #{resnet_block_forward.6} parent=5 // pred_check
      _
    $region10: #{resnet_block_forward.6} parent=5 // pred_check_branch
      %114 = sbr.rel (%p111) target = $region12
    $region11: #{resnet_block_forward.6} parent=5 // pred_region
      %s115 = ssub.s32 %s9, 1
    $region12: #{resnet_block_forward.6} parent=5 // pred_fallthru
      _
    %p116 = scmp.lt.s32.totalorder %s9, 2
    // Predicated region
    $region13: #{resnet_block_forward.6} parent=5 // pred_check
      %p117 = pneg %p116
    $region14: #{resnet_block_forward.6} parent=5 // pred_check_branch
      %119 = sbr.rel (%p117) target = $region16
    $region15: #{resnet_block_forward.6} parent=5 // pred_region
      // Predicated region
      $region17: #{resnet_block_forward.6} parent=15 // pred_check
        %p120 = pneg %p43
      $region18: #{resnet_block_forward.6} parent=15 // pred_check_branch
        %122 = sbr.rel (%p120) target = $region20
      $region19: #{resnet_block_forward.6} parent=15 // pred_region
        %s123 = smul.u32 16, %s17
        %p124 = scmp.lt.s32.totalorder %s16, 1
        %s125 = scalar_select %p124, %s16, 1
        %p126 = scmp.lt.s32.totalorder %s123, 15
        %s127 = scalar_select %p126, %s123, 15
        %s128 = smul.addr %s127, 2
        %s129 = smul.addr %s125, 32
        %s130 = sadd.s32 %s128, %s129
        %s131 = smul.addr %s130, 4
        %s132 = scalar_lea.vmem %s0, %s131
        %s133 = smul.u32 16, %s17
      $region20: #{resnet_block_forward.6} parent=15 // pred_fallthru
        _
    $region16: #{resnet_block_forward.6} parent=5 // pred_fallthru
      _
    %p134 = scmp.le.s32.totalorder 1, %s9
    %p135 = scmp.lt.s32.totalorder %s9, 3
    %p136 = pnand %p134, %p135
    %p137 = pneg %p136
    // Predicated region
    $region21: #{resnet_block_forward.6} parent=5 // pred_check
      _
    $region22: #{resnet_block_forward.6} parent=5 // pred_check_branch
      %139 = sbr.rel (%p136) target = $region24
    $region23: #{resnet_block_forward.6} parent=5 // pred_region
      %s140 = ssub.s32 %s9, 1
      %s141 = smul.u32 16, %s19
      %p142 = scmp.lt.s32.totalorder %s18, 1
      %s143 = scalar_select %p142, %s18, 1
      %p144 = scmp.lt.s32.totalorder %s141, 15
      %s145 = scalar_select %p144, %s141, 15
      %s146 = smul.addr %s145, 2
      %s147 = smul.addr %s143, 32
      %s148 = sadd.s32 %s146, %s147
      %s149 = smul.addr %s148, 4
      %s150 = scalar_lea.vmem %s0, %s149
      %p151 = pneg %p49
      %p152 = pneg %p46
      %p153 = pneg %p75
      %p154 = pneg %p72
      %p155 = scmp.lt.s32.totalorder %s18, 1
      %s156 = scalar_select %p155, %s18, 1
      %s157 = scalar_lea.vmem %s1, %s156
      %p158 = pneg %p101
      %p159 = pneg %p98
      %p160 = scmp.lt.s32.totalorder %s18, 1
      %s161 = scalar_select %p160, %s18, 1
      %s162 = scalar_lea.vmem %s2, %s161
      %s163 = smul.u32 16, %s19
      %p164 = scmp.lt.s32.totalorder %s18, 1
      %s165 = scalar_select %p164, %s18, 1
      %p166 = scmp.lt.s32.totalorder %s163, 15
      %s167 = scalar_select %p166, %s163, 15
      %s168 = smul.addr %s167, 2
      %s169 = smul.addr %s165, 32
      %s170 = sadd.s32 %s168, %s169
      %s171 = smul.addr %s170, 4
      %s172 = scalar_lea.vmem %s0, %s171
      %s173 = smul.u32 16, %s19
      %p174 = scmp.lt.s32.totalorder %s18, 1
      %s175 = scalar_select %p174, %s18, 1
      %s176 = scalar_lea.vmem %s1, %s175
      %p177 = scmp.lt.s32.totalorder %s18, 1
      %s178 = scalar_select %p177, %s18, 1
      %s179 = scalar_lea.vmem %s2, %s178
      %p180 = scmp.eq.s32.totalorder %s19, 0
      // Predicated region
      $region25: #{resnet_block_forward.6} parent=23 // pred_check
        %p181 = pneg %p180
      $region26: #{resnet_block_forward.6} parent=23 // pred_check_branch
        %183 = sbr.rel (%p181) target = $region28
      $region27: #{resnet_block_forward.6} parent=23 // pred_region
        %184 = vst [vmem:[%s176] sm:$0x1] 0.0
        %185 = vst [vmem:[%s179] sm:$0x1] 0.0
      $region28: #{resnet_block_forward.6} parent=23 // pred_fallthru
        _
      %v186 = vld [vmem:[%s172] sm:$0xf]
      %v187 = vld [vmem:[%s172 + $0x4] sm:$0xf]
      %v188 = vld [vmem:[%s172 + $0x8] sm:$0xf]
      %v189 = vld [vmem:[%s172 + $0xc] sm:$0xf]
      %v190 = vld [vmem:[%s172 + $0x10] sm:$0xf]
      %v191 = vld [vmem:[%s172 + $0x14] sm:$0xf]
      %v192 = vld [vmem:[%s172 + $0x18] sm:$0xf]
      %v193 = vld [vmem:[%s172 + $0x1c] sm:$0xf]
      %v194 = vld [vmem:[%s172 + $0x20] sm:$0xf]
      %v195 = vld [vmem:[%s172 + $0x24] sm:$0xf]
      %v196 = vld [vmem:[%s172 + $0x28] sm:$0xf]
      %v197 = vld [vmem:[%s172 + $0x2c] sm:$0xf]
      %v198 = vld [vmem:[%s172 + $0x30] sm:$0xf]
      %v199 = vld [vmem:[%s172 + $0x34] sm:$0xf]
      %v200 = vld [vmem:[%s172 + $0x38] sm:$0xf]
      %v201 = vld [vmem:[%s172 + $0x3c] sm:$0xf]
      %v202 = vld [vmem:[%s172 + $0x40] sm:$0xf]
      %v203 = vld [vmem:[%s172 + $0x44] sm:$0xf]
      %v204 = vld [vmem:[%s172 + $0x48] sm:$0xf]
      %v205 = vld [vmem:[%s172 + $0x4c] sm:$0xf]
      %v206 = vld [vmem:[%s172 + $0x50] sm:$0xf]
      %v207 = vld [vmem:[%s172 + $0x54] sm:$0xf]
      %v208 = vld [vmem:[%s172 + $0x58] sm:$0xf]
      %v209 = vld [vmem:[%s172 + $0x5c] sm:$0xf]
      %v210 = vld [vmem:[%s172 + $0x60] sm:$0xf]
      %v211 = vld [vmem:[%s172 + $0x64] sm:$0xf]
      %v212 = vld [vmem:[%s172 + $0x68] sm:$0xf]
      %v213 = vld [vmem:[%s172 + $0x6c] sm:$0xf]
      %v214 = vld [vmem:[%s172 + $0x70] sm:$0xf]
      %v215 = vld [vmem:[%s172 + $0x74] sm:$0xf]
      %v216 = vld [vmem:[%s172 + $0x78] sm:$0xf]
      %v217 = vld [vmem:[%s172 + $0x7c] sm:$0xf]
      %v218 = vunpack.c.l.bf16 %v186
      %v219 = vunpack.c.l.bf16 %v187
      %v220 = vunpack.c.l.bf16 %v188
      %v221 = vunpack.c.l.bf16 %v189
      %v222 = vunpack.c.l.bf16 %v190
      %v223 = vunpack.c.l.bf16 %v191
      %v224 = vunpack.c.l.bf16 %v192
      %v225 = vunpack.c.l.bf16 %v193
      %v226 = vunpack.c.l.bf16 %v194
      %v227 = vunpack.c.l.bf16 %v195
      %v228 = vunpack.c.l.bf16 %v196
      %v229 = vunpack.c.l.bf16 %v197
      %v230 = vunpack.c.l.bf16 %v198
      %v231 = vunpack.c.l.bf16 %v199
      %v232 = vunpack.c.l.bf16 %v200
      %v233 = vunpack.c.l.bf16 %v201
      %v234 = vunpack.c.l.bf16 %v202
      %v235 = vunpack.c.l.bf16 %v203
      %v236 = vunpack.c.l.bf16 %v204
      %v237 = vunpack.c.l.bf16 %v205
      %v238 = vunpack.c.l.bf16 %v206
      %v239 = vunpack.c.l.bf16 %v207
      %v240 = vunpack.c.l.bf16 %v208
      %v241 = vunpack.c.l.bf16 %v209
      %v242 = vunpack.c.l.bf16 %v210
      %v243 = vunpack.c.l.bf16 %v211
      %v244 = vunpack.c.l.bf16 %v212
      %v245 = vunpack.c.l.bf16 %v213
      %v246 = vunpack.c.l.bf16 %v214
      %v247 = vunpack.c.l.bf16 %v215
      %v248 = vunpack.c.l.bf16 %v216
      %v249 = vunpack.c.l.bf16 %v217
      %v250 = vld [vmem:[%s176] sm:$0x1]
      %v251 = vadd.f32 %v218, %v219
      %v252 = vadd.f32 %v251, %v220
      %v253 = vadd.f32 %v252, %v221
      %v254 = vadd.f32 %v253, %v222
      %v255 = vadd.f32 %v254, %v223
      %v256 = vadd.f32 %v255, %v224
      %v257 = vadd.f32 %v256, %v225
      %v258 = vadd.f32 %v257, %v226
      %v259 = vadd.f32 %v258, %v227
      %v260 = vadd.f32 %v259, %v228
      %v261 = vadd.f32 %v260, %v229
      %v262 = vadd.f32 %v261, %v230
      %v263 = vadd.f32 %v262, %v231
      %v264 = vadd.f32 %v263, %v232
      %v265 = vadd.f32 %v264, %v233
      %v266 = vadd.f32 %v265, %v234
      %v267 = vadd.f32 %v266, %v235
      %v268 = vadd.f32 %v267, %v236
      %v269 = vadd.f32 %v268, %v237
      %v270 = vadd.f32 %v269, %v238
      %v271 = vadd.f32 %v270, %v239
      %v272 = vadd.f32 %v271, %v240
      %v273 = vadd.f32 %v272, %v241
      %v274 = vadd.f32 %v273, %v242
      %v275 = vadd.f32 %v274, %v243
      %v276 = vadd.f32 %v275, %v244
      %v277 = vadd.f32 %v276, %v245
      %v278 = vadd.f32 %v277, %v246
      %v279 = vadd.f32 %v278, %v247
      %v280 = vadd.f32 %v279, %v248
      %v281 = vadd.f32 %v280, %v249
      %v282 = vrot.slane %v281, 4
      %v283 = vadd.f32 %v281, %v282
      %v284 = vrot.slane %v283, 2
      %v285 = vadd.f32 %v283, %v284
      %v286 = vrot.slane %v285, 1
      %v287 = vadd.f32 %v285, %v286
      %v288 = vadd.f32 %v250, %v287
      %289 = vst [vmem:[%s176] sm:$0x1] %v288
      %v290 = vld [vmem:[%s179] sm:$0x1]
      %v291 = vmul.f32 %v218, %v218
      %v292 = vmul.f32 %v219, %v219
      %v293 = vmul.f32 %v220, %v220
      %v294 = vmul.f32 %v221, %v221
      %v295 = vmul.f32 %v222, %v222
      %v296 = vmul.f32 %v223, %v223
      %v297 = vmul.f32 %v224, %v224
      %v298 = vmul.f32 %v225, %v225
      %v299 = vmul.f32 %v226, %v226
      %v300 = vmul.f32 %v227, %v227
      %v301 = vmul.f32 %v228, %v228
      %v302 = vmul.f32 %v229, %v229
      %v303 = vmul.f32 %v230, %v230
      %v304 = vmul.f32 %v231, %v231
      %v305 = vmul.f32 %v232, %v232
      %v306 = vmul.f32 %v233, %v233
      %v307 = vmul.f32 %v234, %v234
      %v308 = vmul.f32 %v235, %v235
      %v309 = vmul.f32 %v236, %v236
      %v310 = vmul.f32 %v237, %v237
      %v311 = vmul.f32 %v238, %v238
      %v312 = vmul.f32 %v239, %v239
      %v313 = vmul.f32 %v240, %v240
      %v314 = vmul.f32 %v241, %v241
      %v315 = vmul.f32 %v242, %v242
      %v316 = vmul.f32 %v243, %v243
      %v317 = vmul.f32 %v244, %v244
      %v318 = vmul.f32 %v245, %v245
      %v319 = vmul.f32 %v246, %v246
      %v320 = vmul.f32 %v247, %v247
      %v321 = vmul.f32 %v248, %v248
      %v322 = vmul.f32 %v249, %v249
      %v323 = vadd.f32 %v291, %v292
      %v324 = vadd.f32 %v323, %v293
      %v325 = vadd.f32 %v324, %v294
      %v326 = vadd.f32 %v325, %v295
      %v327 = vadd.f32 %v326, %v296
      %v328 = vadd.f32 %v327, %v297
      %v329 = vadd.f32 %v328, %v298
      %v330 = vadd.f32 %v329, %v299
      %v331 = vadd.f32 %v330, %v300
      %v332 = vadd.f32 %v331, %v301
      %v333 = vadd.f32 %v332, %v302
      %v334 = vadd.f32 %v333, %v303
      %v335 = vadd.f32 %v334, %v304
      %v336 = vadd.f32 %v335, %v305
      %v337 = vadd.f32 %v336, %v306
      %v338 = vadd.f32 %v337, %v307
      %v339 = vadd.f32 %v338, %v308
      %v340 = vadd.f32 %v339, %v309
      %v341 = vadd.f32 %v340, %v310
      %v342 = vadd.f32 %v341, %v311
      %v343 = vadd.f32 %v342, %v312
      %v344 = vadd.f32 %v343, %v313
      %v345 = vadd.f32 %v344, %v314
      %v346 = vadd.f32 %v345, %v315
      %v347 = vadd.f32 %v346, %v316
      %v348 = vadd.f32 %v347, %v317
      %v349 = vadd.f32 %v348, %v318
      %v350 = vadd.f32 %v349, %v319
      %v351 = vadd.f32 %v350, %v320
      %v352 = vadd.f32 %v351, %v321
      %v353 = vadd.f32 %v352, %v322
      %v354 = vrot.slane %v353, 4
      %v355 = vadd.f32 %v353, %v354
      %v356 = vrot.slane %v355, 2
      %v357 = vadd.f32 %v355, %v356
      %v358 = vrot.slane %v357, 1
      %v359 = vadd.f32 %v357, %v358
      %v360 = vadd.f32 %v290, %v359
      %361 = vst [vmem:[%s179] sm:$0x1] %v360
      %p362 = scmp.lt.s32.totalorder %s18, 1
      %s363 = scalar_select %p362, %s18, 1
      %s364 = scalar_lea.vmem %s1, %s363
      %p365 = scmp.lt.s32.totalorder %s18, 1
      %s366 = scalar_select %p365, %s18, 1
      %s367 = scalar_lea.vmem %s2, %s366
      // Predicated region
      $region29: #{resnet_block_forward.6} parent=23 // pred_check
        %p368 = pneg %p72
      $region30: #{resnet_block_forward.6} parent=23 // pred_check_branch
        %370 = sbr.rel (%p368) target = $region32
      $region31: #{resnet_block_forward.6} parent=23 // pred_region
        _
      $region32: #{resnet_block_forward.6} parent=23 // pred_fallthru
        _
      // Predicated region
      $region33: #{resnet_block_forward.6} parent=23 // pred_check
        %p371 = pneg %p98
      $region34: #{resnet_block_forward.6} parent=23 // pred_check_branch
        %373 = sbr.rel (%p371) target = $region36
      $region35: #{resnet_block_forward.6} parent=23 // pred_region
        _
      $region36: #{resnet_block_forward.6} parent=23 // pred_fallthru
        _
    $region24: #{resnet_block_forward.6} parent=5 // pred_fallthru
      _
    %p374 = scmp.le.s32.totalorder 2, %s9
    // Predicated region
    $region37: #{resnet_block_forward.6} parent=5 // pred_check
      %p375 = pneg %p374
    $region38: #{resnet_block_forward.6} parent=5 // pred_check_branch
      %377 = sbr.rel (%p375) target = $region40
    $region39: #{resnet_block_forward.6} parent=5 // pred_region
      %s378 = ssub.s32 %s9, 2
      // Predicated region
      $region41: #{resnet_block_forward.6} parent=39 // pred_check
        %p379 = pneg %p78
      $region42: #{resnet_block_forward.6} parent=39 // pred_check_branch
        %381 = sbr.rel (%p379) target = $region44
      $region43: #{resnet_block_forward.6} parent=39 // pred_region
        %p382 = scmp.lt.s32.totalorder %s20, 1
        %s383 = scalar_select %p382, %s20, 1
        %s384 = scalar_lea.vmem %s1, %s383
      $region44: #{resnet_block_forward.6} parent=39 // pred_fallthru
        _
      // Predicated region
      $region45: #{resnet_block_forward.6} parent=39 // pred_check
        %p385 = pneg %p104
      $region46: #{resnet_block_forward.6} parent=39 // pred_check_branch
        %387 = sbr.rel (%p385) target = $region48
      $region47: #{resnet_block_forward.6} parent=39 // pred_region
        %p388 = scmp.lt.s32.totalorder %s20, 1
        %s389 = scalar_select %p388, %s20, 1
        %s390 = scalar_lea.vmem %s2, %s389
      $region48: #{resnet_block_forward.6} parent=39 // pred_fallthru
        _
    $region40: #{resnet_block_forward.6} parent=5 // pred_fallthru
      _
  $region6: #{resnet_block_forward.6} parent=0 // loop_footer
    %s13 = sadd.s32 1, %s9
  $region7: #{resnet_block_forward.6} parent=0 // loop_footer_branch
    %8 = sbr.rel target = $region3
  $region8: #{resnet_block_forward.6} parent=0 // loop_exit
    _

// kernel: resnet_block_forward.5
$region0: #{resnet_block_forward.5}
  #allocation0 [shape = 'u32[]', space=smem, size = 0x4, offset = 0x4, fixed_abs, tag = 'smem constant byte address 0x4 - core index']
  #allocation1 [shape = 'u32[144,128]{1,0:T(1,128)}', space=vmem, size = 0x12000, scoped, tag = 'internal scratch']
  #allocation2 [shape = 'f32[16,128]{1,0:T(8,128)}', space=vmem, size = 0x2000, scoped, tag = 'scratch operand']
  %s0 = inlined_call_operand.vmem [shape: bf16[2,16,16,64], index: 0, kind: input, shape index: {}]
  %s1 = inlined_call_operand.vmem [shape: bf16[9,64,128], index: 1, kind: input, shape index: {}]
  %s2 = inlined_call_operand.vmem [shape: f32[1,128], index: 2, kind: input, shape index: {}]
  %s3 = inlined_call_operand.vmem [shape: f32[2,1,64], index: 3, kind: input, shape index: {}]
  %s4 = inlined_call_operand.vmem [shape: f32[2,1,64], index: 4, kind: input, shape index: {}]
  %s5 = inlined_call_operand.vmem [shape: bf16[2,16,16,128], index: 5, kind: output, shape index: {}]
  %s6 = sld [smem:[#allocation0]]
  $region65: #{resnet_block_forward.5} parent=0
    _
  %s8 = ssub.s32 1, %s6
  %s9 = scalar_select 0, %s8, %s6
  loop: start=0, step=1, limit=98
  $region2: #{resnet_block_forward.5} parent=0 // loop_pre_header
    _
  $region3: #{resnet_block_forward.5} parent=0 // loop_header
    %s11 = sphi 0, %s15
    %p12 = scmp.ge.s32.totalorder %s11, 98
    %s18 = sphi 0, %s37
    %s19 = sphi 0, %s33
    %s20 = sphi 0, %s29
    %s21 = sphi 0, %s18
    %s22 = sphi 0, %s19
    %s23 = sphi 0, %s20
    %s24 = sphi 0, %s21
    %s25 = sphi 0, %s22
    %s26 = sphi 0, %s23
    %s54 = sphi 0, %s56
    %s57 = sphi 0, %s54
    %s58 = sphi 0, %s57
    %s74 = sphi 0, %s58
    %s78 = sphi 0, %s78
    %s80 = sphi 0, %s78
    %s81 = sphi 0, %s80
    %s95 = sphi 0, %s81
    %s99 = sphi 0, %s99
    %s101 = sphi 0, %s99
    %s102 = sphi 0, %s101
    %s116 = sphi 0, %s102
    %s122 = sphi 0, %s124
    %s125 = sphi 0, %s122
    %s126 = sphi 0, %s125
    %s142 = sphi 0, %s126
    %s148 = sphi 0, %s150
    %s151 = sphi 0, %s148
    %s152 = sphi 0, %s151
    %s168 = sphi 0, %s152
    %s176 = sphi 0, %s178
    %s179 = sphi 0, %s176
    %s180 = sphi 0, %s179
    %s196 = sphi 0, %s180
  $region4: #{resnet_block_forward.5} parent=0 // loop_header_branch
    %14 = sbr.rel (%p12) target = $region8
  $region5: #{resnet_block_forward.5} parent=0 // loop_body
    %s16 = ssub.s32 %s11, 1
    %s17 = ssub.s32 %s11, 2
    %s27 = sadd.s32 1, %s20
    %p28 = scmp.ge.s32.totalorder %s27, 3
    %s29 = scalar_select %p28, 0, %s27
    %s30 = sadd.s32 1, %s19
    %s31 = scalar_select %p28, %s30, %s19
    %p32 = scmp.ge.s32.totalorder %s31, 16
    %s33 = scalar_select %p32, 0, %s31
    %s34 = sadd.s32 1, %s18
    %s35 = scalar_select %p32, %s34, %s18
    %p36 = scmp.ge.s32.totalorder %s35, 2
    %s37 = scalar_select %p36, 0, %s35
    %s38 = sadd.s32 %s19, %s20
    %s39 = ssub.s32 %s38, 1
    %p40 = scmp.gt.s32.totalorder %s39, 0
    %s41 = scalar_select %p40, %s39, 0
    %p42 = scmp.lt.s32.totalorder %s41, 15
    %s43 = scalar_select %p42, %s41, 15
    %s44 = sadd.s32 %s33, %s29
    %s45 = ssub.s32 %s44, 1
    %p46 = scmp.gt.s32.totalorder %s45, 0
    %s47 = scalar_select %p46, %s45, 0
    %p48 = scmp.lt.s32.totalorder %s47, 15
    %s49 = scalar_select %p48, %s47, 15
    %s50 = ssub.s32 %s18, %s37
    %s51 = ssub.s32 %s43, %s49
    %s52 = sor.u32 %s50, %s51
    %p53 = scmp.eq.s32.totalorder %s52, 0
    %s55 = sadd.s32 %s54, 1
    %s56 = scalar_select %p53, %s54, %s55
    %p59 = pneg %p53
    %p60 = scmp.eq.s32.totalorder %s11, 95
    %p61 = por %p59, %p60
    %p62 = scmp.ne.s32.totalorder %s54, %s57
    %p63 = scmp.eq.s32.totalorder %s11, 0
    %p64 = por %p62, %p63
    %p65 = scmp.ne.s32.totalorder %s54, %s57
    %p66 = scmp.eq.s32.totalorder %s16, 95
    %p67 = por %p65, %p66
    %p68 = scmp.ne.s32.totalorder %s57, %s58
    %p69 = scmp.eq.s32.totalorder %s16, 0
    %p70 = por %p68, %p69
    %p71 = scmp.ne.s32.totalorder %s57, %s58
    %p72 = scmp.eq.s32.totalorder %s17, 95
    %p73 = por %p71, %p72
    %p75 = scmp.ne.s32.totalorder %s58, %s74
    %p76 = scmp.eq.s32.totalorder %s17, 0
    %p77 = por %p75, %p76
    %s79 = sadd.s32 %s78, 1
    %p82 = scmp.eq.s32.totalorder %s11, 95
    %p83 = scmp.ne.s32.totalorder %s78, %s80
    %p84 = scmp.eq.s32.totalorder %s11, 0
    %p85 = por %p83, %p84
    %p86 = scmp.ne.s32.totalorder %s78, %s80
    %p87 = scmp.eq.s32.totalorder %s16, 95
    %p88 = por %p86, %p87
    %p89 = scmp.ne.s32.totalorder %s80, %s81
    %p90 = scmp.eq.s32.totalorder %s16, 0
    %p91 = por %p89, %p90
    %p92 = scmp.ne.s32.totalorder %s80, %s81
    %p93 = scmp.eq.s32.totalorder %s17, 95
    %p94 = por %p92, %p93
    %p96 = scmp.ne.s32.totalorder %s81, %s95
    %p97 = scmp.eq.s32.totalorder %s17, 0
    %p98 = por %p96, %p97
    %s100 = sadd.s32 %s99, 1
    %p103 = scmp.eq.s32.totalorder %s11, 95
    %p104 = scmp.ne.s32.totalorder %s99, %s101
    %p105 = scmp.eq.s32.totalorder %s11, 0
    %p106 = por %p104, %p105
    %p107 = scmp.ne.s32.totalorder %s99, %s101
    %p108 = scmp.eq.s32.totalorder %s16, 95
    %p109 = por %p107, %p108
    %p110 = scmp.ne.s32.totalorder %s101, %s102
    %p111 = scmp.eq.s32.totalorder %s16, 0
    %p112 = por %p110, %p111
    %p113 = scmp.ne.s32.totalorder %s101, %s102
    %p114 = scmp.eq.s32.totalorder %s17, 95
    %p115 = por %p113, %p114
    %p117 = scmp.ne.s32.totalorder %s102, %s116
    %p118 = scmp.eq.s32.totalorder %s17, 0
    %p119 = por %p117, %p118
    %s120 = ssub.s32 %s18, %s37
    %p121 = scmp.eq.s32.totalorder %s120, 0
    %s123 = sadd.s32 %s122, 1
    %s124 = scalar_select %p121, %s122, %s123
    %p127 = pneg %p121
    %p128 = scmp.eq.s32.totalorder %s11, 95
    %p129 = por %p127, %p128
    %p130 = scmp.ne.s32.totalorder %s122, %s125
    %p131 = scmp.eq.s32.totalorder %s11, 0
    %p132 = por %p130, %p131
    %p133 = scmp.ne.s32.totalorder %s122, %s125
    %p134 = scmp.eq.s32.totalorder %s16, 95
    %p135 = por %p133, %p134
    %p136 = scmp.ne.s32.totalorder %s125, %s126
    %p137 = scmp.eq.s32.totalorder %s16, 0
    %p138 = por %p136, %p137
    %p139 = scmp.ne.s32.totalorder %s125, %s126
    %p140 = scmp.eq.s32.totalorder %s17, 95
    %p141 = por %p139, %p140
    %p143 = scmp.ne.s32.totalorder %s126, %s142
    %p144 = scmp.eq.s32.totalorder %s17, 0
    %p145 = por %p143, %p144
    %s146 = ssub.s32 %s18, %s37
    %p147 = scmp.eq.s32.totalorder %s146, 0
    %s149 = sadd.s32 %s148, 1
    %s150 = scalar_select %p147, %s148, %s149
    %p153 = pneg %p147
    %p154 = scmp.eq.s32.totalorder %s11, 95
    %p155 = por %p153, %p154
    %p156 = scmp.ne.s32.totalorder %s148, %s151
    %p157 = scmp.eq.s32.totalorder %s11, 0
    %p158 = por %p156, %p157
    %p159 = scmp.ne.s32.totalorder %s148, %s151
    %p160 = scmp.eq.s32.totalorder %s16, 95
    %p161 = por %p159, %p160
    %p162 = scmp.ne.s32.totalorder %s151, %s152
    %p163 = scmp.eq.s32.totalorder %s16, 0
    %p164 = por %p162, %p163
    %p165 = scmp.ne.s32.totalorder %s151, %s152
    %p166 = scmp.eq.s32.totalorder %s17, 95
    %p167 = por %p165, %p166
    %p169 = scmp.ne.s32.totalorder %s152, %s168
    %p170 = scmp.eq.s32.totalorder %s17, 0
    %p171 = por %p169, %p170
    %s172 = ssub.s32 %s18, %s37
    %s173 = ssub.s32 %s19, %s33
    %s174 = sor.u32 %s172, %s173
    %p175 = scmp.eq.s32.totalorder %s174, 0
    %s177 = sadd.s32 %s176, 1
    %s178 = scalar_select %p175, %s176, %s177
    %p181 = pneg %p175
    %p182 = scmp.eq.s32.totalorder %s11, 95
    %p183 = por %p181, %p182
    %p184 = scmp.ne.s32.totalorder %s176, %s179
    %p185 = scmp.eq.s32.totalorder %s11, 0
    %p186 = por %p184, %p185
    %p187 = scmp.ne.s32.totalorder %s176, %s179
    %p188 = scmp.eq.s32.totalorder %s16, 95
    %p189 = por %p187, %p188
    %p190 = scmp.ne.s32.totalorder %s179, %s180
    %p191 = scmp.eq.s32.totalorder %s16, 0
    %p192 = por %p190, %p191
    %p193 = scmp.ne.s32.totalorder %s179, %s180
    %p194 = scmp.eq.s32.totalorder %s17, 95
    %p195 = por %p193, %p194
    %p197 = scmp.ne.s32.totalorder %s180, %s196
    %p198 = scmp.eq.s32.totalorder %s17, 0
    %p199 = por %p197, %p198
    %p200 = scmp.le.s32.totalorder 1, %s11
    %p201 = scmp.lt.s32.totalorder %s11, 97
    %p202 = pnand %p200, %p201
    %p203 = pneg %p202
    // Predicated region
    $region9: #{resnet_block_forward.5} parent=5 // pred_check
      _
    $region10: #{resnet_block_forward.5} parent=5 // pred_check_branch
      %205 = sbr.rel (%p202) target = $region12
    $region11: #{resnet_block_forward.5} parent=5 // pred_region
      %s206 = ssub.s32 %s11, 1
      // Predicated region
      $region13: #{resnet_block_forward.5} parent=11 // pred_check
        %p207 = pneg %p91
      $region14: #{resnet_block_forward.5} parent=11 // pred_check_branch
        %209 = sbr.rel (%p207) target = $region16
      $region15: #{resnet_block_forward.5} parent=11 // pred_region
        _
      $region16: #{resnet_block_forward.5} parent=11 // pred_fallthru
        _
      // Predicated region
      $region17: #{resnet_block_forward.5} parent=11 // pred_check
        %p210 = pneg %p112
      $region18: #{resnet_block_forward.5} parent=11 // pred_check_branch
        %212 = sbr.rel (%p210) target = $region20
      $region19: #{resnet_block_forward.5} parent=11 // pred_region
        _
      $region20: #{resnet_block_forward.5} parent=11 // pred_fallthru
        _
    $region12: #{resnet_block_forward.5} parent=5 // pred_fallthru
      _
    %p213 = scmp.lt.s32.totalorder %s11, 96
    // Predicated region
    $region21: #{resnet_block_forward.5} parent=5 // pred_check
      %p214 = pneg %p213
    $region22: #{resnet_block_forward.5} parent=5 // pred_check_branch
      %216 = sbr.rel (%p214) target = $region24
    $region23: #{resnet_block_forward.5} parent=5 // pred_region
      // Predicated region
      $region25: #{resnet_block_forward.5} parent=23 // pred_check
        %p217 = pneg %p64
      $region26: #{resnet_block_forward.5} parent=23 // pred_check_branch
        %219 = sbr.rel (%p217) target = $region28
      $region27: #{resnet_block_forward.5} parent=23 // pred_region
        %s220 = sadd.s32 %s19, %s20
        %s221 = ssub.s32 %s220, 1
        %p222 = scmp.gt.s32.totalorder %s221, 0
        %s223 = scalar_select %p222, %s221, 0
        %p224 = scmp.lt.s32.totalorder %s223, 15
        %s225 = scalar_select %p224, %s223, 15
        %p226 = scmp.lt.s32.totalorder %s18, 1
        %s227 = scalar_select %p226, %s18, 1
        %p228 = scmp.lt.s32.totalorder %s225, 15
        %s229 = scalar_select %p228, %s225, 15
        %s230 = smul.addr %s229, 2
        %s231 = smul.addr %s227, 32
        %s232 = sadd.s32 %s230, %s231
        %s233 = smul.addr %s232, 4
        %s234 = scalar_lea.vmem %s0, %s233
        %s235 = sadd.s32 %s19, %s20
        %s236 = ssub.s32 %s235, 1
        %p237 = scmp.gt.s32.totalorder %s236, 0
        %s238 = scalar_select %p237, %s236, 0
        %p239 = scmp.lt.s32.totalorder %s238, 15
        %s240 = scalar_select %p239, %s238, 15
      $region28: #{resnet_block_forward.5} parent=23 // pred_fallthru
        _
      // Predicated region
      $region29: #{resnet_block_forward.5} parent=23 // pred_check
        %p241 = pneg %p132
      $region30: #{resnet_block_forward.5} parent=23 // pred_check_branch
        %243 = sbr.rel (%p241) target = $region32
      $region31: #{resnet_block_forward.5} parent=23 // pred_region
        %p244 = scmp.lt.s32.totalorder %s18, 1
        %s245 = scalar_select %p244, %s18, 1
        %s246 = scalar_lea.vmem %s3, %s245
      $region32: #{resnet_block_forward.5} parent=23 // pred_fallthru
        _
      // Predicated region
      $region33: #{resnet_block_forward.5} parent=23 // pred_check
        %p247 = pneg %p158
      $region34: #{resnet_block_forward.5} parent=23 // pred_check_branch
        %249 = sbr.rel (%p247) target = $region36
      $region35: #{resnet_block_forward.5} parent=23 // pred_region
        %p250 = scmp.lt.s32.totalorder %s18, 1
        %s251 = scalar_select %p250, %s18, 1
        %s252 = scalar_lea.vmem %s4, %s251
      $region36: #{resnet_block_forward.5} parent=23 // pred_fallthru
        _
    $region24: #{resnet_block_forward.5} parent=5 // pred_fallthru
      _
    %p253 = scmp.le.s32.totalorder 1, %s11
    %p254 = scmp.lt.s32.totalorder %s11, 97
    %p255 = pnand %p253, %p254
    %p256 = pneg %p255
    // Predicated region
    $region37: #{resnet_block_forward.5} parent=5 // pred_check
      _
    $region38: #{resnet_block_forward.5} parent=5 // pred_check_branch
      %258 = sbr.rel (%p255) target = $region40
    $region39: #{resnet_block_forward.5} parent=5 // pred_region
      %s259 = ssub.s32 %s11, 1
      %s260 = sadd.s32 %s22, %s23
      %s261 = ssub.s32 %s260, 1
      %p262 = scmp.gt.s32.totalorder %s261, 0
      %s263 = scalar_select %p262, %s261, 0
      %p264 = scmp.lt.s32.totalorder %s263, 15
      %s265 = scalar_select %p264, %s263, 15
      %p266 = scmp.lt.s32.totalorder %s21, 1
      %s267 = scalar_select %p266, %s21, 1
      %p268 = scmp.lt.s32.totalorder %s265, 15
      %s269 = scalar_select %p268, %s265, 15
      %s270 = smul.addr %s269, 2
      %s271 = smul.addr %s267, 32
      %s272 = sadd.s32 %s270, %s271
      %s273 = smul.addr %s272, 4
      %s274 = scalar_lea.vmem %s0, %s273
      %p275 = pneg %p70
      %p276 = pneg %p67
      %p277 = pneg %p91
      %p278 = pneg %p88
      %p279 = pneg %p112
      %p280 = pneg %p109
      %p281 = scmp.lt.s32.totalorder %s21, 1
      %s282 = scalar_select %p281, %s21, 1
      %s283 = scalar_lea.vmem %s3, %s282
      %p284 = pneg %p138
      %p285 = pneg %p135
      %p286 = scmp.lt.s32.totalorder %s21, 1
      %s287 = scalar_select %p286, %s21, 1
      %s288 = scalar_lea.vmem %s4, %s287
      %p289 = pneg %p164
      %p290 = pneg %p161
      %p291 = pneg %p192
      %p292 = pneg %p189
      %p293 = scmp.lt.s32.totalorder %s21, 1
      %s294 = scalar_select %p293, %s21, 1
      %p295 = scmp.lt.s32.totalorder %s22, 15
      %s296 = scalar_select %p295, %s22, 15
      %s297 = smul.addr %s296, 2
      %s298 = smul.addr %s294, 32
      %s299 = sadd.s32 %s297, %s298
      %s300 = smul.addr %s299, 4
      %s301 = scalar_lea.vmem %s5, %s300
      %s302 = sadd.s32 %s22, %s23
      %s303 = ssub.s32 %s302, 1
      %p304 = scmp.gt.s32.totalorder %s303, 0
      %s305 = scalar_select %p304, %s303, 0
      %p306 = scmp.lt.s32.totalorder %s305, 15
      %s307 = scalar_select %p306, %s305, 15
      %p308 = scmp.lt.s32.totalorder %s21, 1
      %s309 = scalar_select %p308, %s21, 1
      %p310 = scmp.lt.s32.totalorder %s307, 15
      %s311 = scalar_select %p310, %s307, 15
      %s312 = smul.addr %s311, 2
      %s313 = smul.addr %s309, 32
      %s314 = sadd.s32 %s312, %s313
      %s315 = smul.addr %s314, 4
      %s316 = scalar_lea.vmem %s0, %s315
      %s317 = sadd.s32 %s22, %s23
      %s318 = ssub.s32 %s317, 1
      %p319 = scmp.gt.s32.totalorder %s318, 0
      %s320 = scalar_select %p319, %s318, 0
      %p321 = scmp.lt.s32.totalorder %s320, 15
      %s322 = scalar_select %p321, %s320, 15
      %p323 = scmp.lt.s32.totalorder %s21, 1
      %s324 = scalar_select %p323, %s21, 1
      %s325 = scalar_lea.vmem %s3, %s324
      %p326 = scmp.lt.s32.totalorder %s21, 1
      %s327 = scalar_select %p326, %s21, 1
      %s328 = scalar_lea.vmem %s4, %s327
      %p329 = scmp.lt.s32.totalorder %s21, 1
      %s330 = scalar_select %p329, %s21, 1
      %p331 = scmp.lt.s32.totalorder %s22, 15
      %s332 = scalar_select %p331, %s22, 15
      %s333 = smul.addr %s332, 2
      %s334 = smul.addr %s330, 32
      %s335 = sadd.s32 %s333, %s334
      %s336 = smul.addr %s335, 4
      %s337 = scalar_lea.vmem %s5, %s336
      %p339 = scmp.eq.s32.totalorder %s23, 0
      // Predicated region
      $region41: #{resnet_block_forward.5} parent=39 // pred_check
        %p340 = pneg %p339
      $region42: #{resnet_block_forward.5} parent=39 // pred_check_branch
        %342 = sbr.rel (%p340) target = $region44
      $region43: #{resnet_block_forward.5} parent=39 // pred_region
        %343 = vst [vmem:[#allocation2] sm:$0xff] 0.0
        %344 = vst [vmem:[#allocation2 + $0x8] sm:$0xff] 0.0
      $region44: #{resnet_block_forward.5} parent=39 // pred_fallthru
        _
      %s345 = sadd.s32 %s22, %s23
      %s346 = ssub.s32 %s345, 1
      %p347 = scmp.ge.s32.totalorder %s346, 0
      %p348 = scmp.lt.s32.totalorder %s346, 16
      %p349 = pnand %p347, %p348
      %p350 = pneg %p349
      // Predicated region
      $region45: #{resnet_block_forward.5} parent=39 // pred_check
        _
      $region46: #{resnet_block_forward.5} parent=39 // pred_check_branch
        %352 = sbr.rel (%p349) target = $region48
      $region47: #{resnet_block_forward.5} parent=39 // pred_region
        %v353 = vld [vmem:[%s316] sm:$0xf]
        %v354 = vld [vmem:[%s316 + $0x4] sm:$0xf]
        %v355 = vunpack.c.l.bf16 %v353
        %v356 = vunpack.c.l.bf16 %v354
        %v357 = vld [vmem:[%s325] sm:$0x1]
        %v359 = vlaneseq
        %v360 = vshrl.u32 %v359, 7
        %v361 = vsub.s32 0, %v360
        %v362 = vrot.slane %v357, %v361
        %v364 = vmul.f32 %v355, %v362
        %v365 = vmul.f32 %v356, %v362
        %v366 = vld [vmem:[%s328] sm:$0x1]
        %v368 = vlaneseq
        %v369 = vshrl.u32 %v368, 7
        %v370 = vsub.s32 0, %v369
        %v371 = vrot.slane %v366, %v370
        %v373 = vadd.f32 %v364, %v371
        %v374 = vadd.f32 %v365, %v371
        %v375 = vxor.u32 %v373, 2147483648
        %v376 = vxor.u32 %v374, 2147483648
        %v377 = vmul.f32 %v375, 1.442695
        %v378 = vpow.pop %v377
        %v379 = vmul.f32 %v376, 1.442695
        %v380 = vpow.pop %v379
        %v381 = vadd.f32 %v378, 1.0
        %v382 = vadd.f32 %v380, 1.0
        %v383 = vrcp.pop %v381
        %v384 = vmul.f32 1.0, %v383
        %v385 = vrcp.pop %v382
        %v386 = vmul.f32 1.0, %v385
        %v387 = vmul.f32 %v373, %v384
        %v388 = vmul.f32 %v374, %v386
        %v389 = vpack.c.bf16 %v388, %v387
        %s390 = smul.u32 %s23, 3
        %s391 = smul.u32 %s390, 8
        %s392 = smul.addr %s391, 4
        %s393 = scalar_lea.vmem %s1, %s392
        %v394 = vld [vmem:[%s393] sm:$0xf]
        %v395 = vld [vmem:[%s393 + $0x4] sm:$0xf]
        %v396 = vld [vmem:[%s393 + $0x8] sm:$0xf]
        %v397 = vld [vmem:[%s393 + $0xc] sm:$0xf]
        %v398 = vld [vmem:[%s393 + $0x10] sm:$0xf]
        %v399 = vld [vmem:[%s393 + $0x14] sm:$0xf]
        %v400 = vld [vmem:[%s393 + $0x18] sm:$0xf]
        %v401 = vld [vmem:[%s393 + $0x1c] sm:$0xf]
        %v410 = vunpack.c.l.b16 %v394
        %v411 = vunpack.c.l.b16 %v395
        %v412 = vunpack.c.l.b16 %v396
        %v413 = vunpack.c.l.b16 %v397
        %v414 = vunpack.c.l.b16 %v398
        %v415 = vunpack.c.l.b16 %v399
        %v416 = vunpack.c.l.b16 %v400
        %v417 = vunpack.c.l.b16 %v401
        %v418 = vpack.c.b16 %v411, %v410
        %v419 = vpack.c.b16 %v413, %v412
        %v420 = vpack.c.b16 %v415, %v414
        %v421 = vpack.c.b16 %v417, %v416
        %vm426 = vcmask 523264
        %v428 = vsel %vm426, %v389, 0
        %430 = vmatprep.subr.bf16.mxu0 0
        %431 = vmatpush1.bf16.msra.mxu0 0
        %432 = vmatprep.subr.bf16.mxu0 0
        %433 = vmatpush1.bf16.msra.mxu0 0
        %434 = vmatprep.subr.bf16.mxu0 0
        %435 = vmatpush1.bf16.msra.mxu0 0
        %436 = vmatprep.subr.bf16.mxu0 0
        %437 = vmatpush1.bf16.msra.mxu0 0
        %438 = vmatprep.subr.bf16.mxu0 0
        %439 = vmatpush1.bf16.msra.mxu0 %v421
        %440 = vmatprep.subr.bf16.mxu0 0
        %441 = vmatpush1.bf16.msra.mxu0 %v420
        %442 = vmatprep.subr.bf16.mxu0 0
        %443 = vmatpush1.bf16.msra.mxu0 %v419
        %444 = vmatprep.subr.bf16.mxu0 0
        %445 = vmatpush1.bf16.msra.mxu0 %v418
        %446 = vmatprep.subr.bf16.mxu0 0
        %447 = vmatpush2.bf16.msra.mxu0 0
        %448 = vmatprep.subr.bf16.mxu0 0
        %449 = vmatpush2.bf16.msra.mxu0 0
        %450 = vmatprep.subr.bf16.mxu0 0
        %451 = vmatpush2.bf16.msra.mxu0 0
        %452 = vmatprep.subr.bf16.mxu0 0
        %453 = vmatpush2.bf16.msra.mxu0 0
        %454 = vmatprep.subr.bf16.mxu0 0
        %455 = vmatpush2.bf16.msra.mxu0 0
        %456 = vmatprep.subr.bf16.mxu0 0
        %457 = vmatpush2.bf16.msra.mxu0 0
        %458 = vmatprep.subr.bf16.mxu0 0
        %459 = vmatpush2.bf16.msra.mxu0 0
        %460 = vmatprep.subr.bf16.mxu0 0
        %461 = vmatpush2.bf16.msra.mxu0 0
        %462 = vmatprep.mubr.bf16.mxu0 0
        %463 = vmatmul.mubr.bf16.gmra.mxu0 %v428
        %v464 = vpop.f32.mrf.mxu0
        %v465 = vadd.f32 0.0, %v464
        %v466 = vpop.f32.mrf.mxu0
        %v467 = vpop.f32.mrf.mxu0
        %v468 = vadd.f32 0.0, %v467
        %v469 = vpop.f32.mrf.mxu0
        %470 = vdwg.mxu0
        %s471 = sadd.s32 %s390, 1
        %s472 = smul.u32 %s471, 8
        %s473 = smul.addr %s472, 4
        %s474 = scalar_lea.vmem %s1, %s473
        %v475 = vld [vmem:[%s474] sm:$0xf]
        %v476 = vld [vmem:[%s474 + $0x4] sm:$0xf]
        %v477 = vld [vmem:[%s474 + $0x8] sm:$0xf]
        %v478 = vld [vmem:[%s474 + $0xc] sm:$0xf]
        %v479 = vld [vmem:[%s474 + $0x10] sm:$0xf]
        %v480 = vld [vmem:[%s474 + $0x14] sm:$0xf]
        %v481 = vld [vmem:[%s474 + $0x18] sm:$0xf]
        %v482 = vld [vmem:[%s474 + $0x1c] sm:$0xf]
        %v491 = vunpack.c.l.b16 %v475
        %v492 = vunpack.c.l.b16 %v476
        %v493 = vunpack.c.l.b16 %v477
        %v494 = vunpack.c.l.b16 %v478
        %v495 = vunpack.c.l.b16 %v479
        %v496 = vunpack.c.l.b16 %v480
        %v497 = vunpack.c.l.b16 %v481
        %v498 = vunpack.c.l.b16 %v482
        %v499 = vpack.c.b16 %v492, %v491
        %v500 = vpack.c.b16 %v494, %v493
        %v501 = vpack.c.b16 %v496, %v495
        %v502 = vpack.c.b16 %v498, %v497
        %507 = vmatprep.subr.bf16.mxu0 0
        %508 = vmatpush1.bf16.msra.mxu0 0
        %509 = vmatprep.subr.bf16.mxu0 0
        %510 = vmatpush1.bf16.msra.mxu0 0
        %511 = vmatprep.subr.bf16.mxu0 0
        %512 = vmatpush1.bf16.msra.mxu0 0
        %513 = vmatprep.subr.bf16.mxu0 0
        %514 = vmatpush1.bf16.msra.mxu0 0
        %515 = vmatprep.subr.bf16.mxu0 0
        %516 = vmatpush1.bf16.msra.mxu0 %v502
        %517 = vmatprep.subr.bf16.mxu0 0
        %518 = vmatpush1.bf16.msra.mxu0 %v501
        %519 = vmatprep.subr.bf16.mxu0 0
        %520 = vmatpush1.bf16.msra.mxu0 %v500
        %521 = vmatprep.subr.bf16.mxu0 0
        %522 = vmatpush1.bf16.msra.mxu0 %v499
        %523 = vmatprep.subr.bf16.mxu0 0
        %524 = vmatpush2.bf16.msra.mxu0 0
        %525 = vmatprep.subr.bf16.mxu0 0
        %526 = vmatpush2.bf16.msra.mxu0 0
        %527 = vmatprep.subr.bf16.mxu0 0
        %528 = vmatpush2.bf16.msra.mxu0 0
        %529 = vmatprep.subr.bf16.mxu0 0
        %530 = vmatpush2.bf16.msra.mxu0 0
        %531 = vmatprep.subr.bf16.mxu0 0
        %532 = vmatpush2.bf16.msra.mxu0 0
        %533 = vmatprep.subr.bf16.mxu0 0
        %534 = vmatpush2.bf16.msra.mxu0 0
        %535 = vmatprep.subr.bf16.mxu0 0
        %536 = vmatpush2.bf16.msra.mxu0 0
        %537 = vmatprep.subr.bf16.mxu0 0
        %538 = vmatpush2.bf16.msra.mxu0 0
        %539 = vmatprep.mubr.bf16.mxu0 0
        %540 = vmatmul.mubr.bf16.gmra.mxu0 %v428
        %v541 = vpop.f32.mrf.mxu0
        %v542 = vadd.f32 0.0, %v541
        %v543 = vpop.f32.mrf.mxu0
        %v544 = vpop.f32.mrf.mxu0
        %v545 = vadd.f32 0.0, %v544
        %v546 = vpop.f32.mrf.mxu0
        %547 = vdwg.mxu0
        %s548 = sadd.s32 %s390, 2
        %s549 = smul.u32 %s548, 8
        %s550 = smul.addr %s549, 4
        %s551 = scalar_lea.vmem %s1, %s550
        %v552 = vld [vmem:[%s551] sm:$0xf]
        %v553 = vld [vmem:[%s551 + $0x4] sm:$0xf]
        %v554 = vld [vmem:[%s551 + $0x8] sm:$0xf]
        %v555 = vld [vmem:[%s551 + $0xc] sm:$0xf]
        %v556 = vld [vmem:[%s551 + $0x10] sm:$0xf]
        %v557 = vld [vmem:[%s551 + $0x14] sm:$0xf]
        %v558 = vld [vmem:[%s551 + $0x18] sm:$0xf]
        %v559 = vld [vmem:[%s551 + $0x1c] sm:$0xf]
        %v568 = vunpack.c.l.b16 %v552
        %v569 = vunpack.c.l.b16 %v553
        %v570 = vunpack.c.l.b16 %v554
        %v571 = vunpack.c.l.b16 %v555
        %v572 = vunpack.c.l.b16 %v556
        %v573 = vunpack.c.l.b16 %v557
        %v574 = vunpack.c.l.b16 %v558
        %v575 = vunpack.c.l.b16 %v559
        %v576 = vpack.c.b16 %v569, %v568
        %v577 = vpack.c.b16 %v571, %v570
        %v578 = vpack.c.b16 %v573, %v572
        %v579 = vpack.c.b16 %v575, %v574
        %584 = vmatprep.subr.bf16.mxu0 0
        %585 = vmatpush1.bf16.msra.mxu0 0
        %586 = vmatprep.subr.bf16.mxu0 0
        %587 = vmatpush1.bf16.msra.mxu0 0
        %588 = vmatprep.subr.bf16.mxu0 0
        %589 = vmatpush1.bf16.msra.mxu0 0
        %590 = vmatprep.subr.bf16.mxu0 0
        %591 = vmatpush1.bf16.msra.mxu0 0
        %592 = vmatprep.subr.bf16.mxu0 0
        %593 = vmatpush1.bf16.msra.mxu0 %v579
        %594 = vmatprep.subr.bf16.mxu0 0
        %595 = vmatpush1.bf16.msra.mxu0 %v578
        %596 = vmatprep.subr.bf16.mxu0 0
        %597 = vmatpush1.bf16.msra.mxu0 %v577
        %598 = vmatprep.subr.bf16.mxu0 0
        %599 = vmatpush1.bf16.msra.mxu0 %v576
        %600 = vmatprep.subr.bf16.mxu0 0
        %601 = vmatpush2.bf16.msra.mxu0 0
        %602 = vmatprep.subr.bf16.mxu0 0
        %603 = vmatpush2.bf16.msra.mxu0 0
        %604 = vmatprep.subr.bf16.mxu0 0
        %605 = vmatpush2.bf16.msra.mxu0 0
        %606 = vmatprep.subr.bf16.mxu0 0
        %607 = vmatpush2.bf16.msra.mxu0 0
        %608 = vmatprep.subr.bf16.mxu0 0
        %609 = vmatpush2.bf16.msra.mxu0 0
        %610 = vmatprep.subr.bf16.mxu0 0
        %611 = vmatpush2.bf16.msra.mxu0 0
        %612 = vmatprep.subr.bf16.mxu0 0
        %613 = vmatpush2.bf16.msra.mxu0 0
        %614 = vmatprep.subr.bf16.mxu0 0
        %615 = vmatpush2.bf16.msra.mxu0 0
        %616 = vmatprep.mubr.bf16.mxu0 0
        %617 = vmatmul.mubr.bf16.gmra.mxu0 %v428
        %v618 = vpop.f32.mrf.mxu0
        %v619 = vadd.f32 0.0, %v618
        %v620 = vpop.f32.mrf.mxu0
        %v621 = vpop.f32.mrf.mxu0
        %v622 = vadd.f32 0.0, %v621
        %v623 = vpop.f32.mrf.mxu0
        %624 = vdwg.mxu0
        %v625 = vlaneseq
        %v626 = vshrl.u32 %v625, 7
        %v627 = vadd.s32 %v626, 8
        %vm628 = vcmp.ge.s32.totalorder %v626, 1
        %vm629 = vcmp.ge.s32.totalorder %v627, 1
        %v630 = vrot.slane %v465, 7
        %v631 = vrot.slane %v468, 7
        %vm632 = vcmp.lt.s32.totalorder %v626, 1
        %v633 = vsel %vm632, %v630, %v631
        %v634 = vsel %vm632, %v631, %v630
        %v635 = vsel %vm628, 1, 0
        %v636 = vsel %vm629, 1, 0
        %vm637 = vcmp.eq.s32.totalorder %v635, 1
        %vm638 = vcmp.eq.s32.totalorder %v636, 1
        %v639 = vsel %vm637, %v634, 0.0
        %v640 = vsel %vm638, %v633, 0.0
        %vm641 = vcmp.le.s32.totalorder %v626, 14
        %vm642 = vcmp.le.s32.totalorder %v627, 14
        %v643 = vrot.slane %v619, 1
        %v644 = vrot.slane %v622, 1
        %vm645 = vcmp.lt.s32.totalorder %v626, 7
        %v646 = vsel %vm645, %v643, %v644
        %v647 = vsel %vm645, %v644, %v643
        %v648 = vsel %vm641, 1, 0
        %v649 = vsel %vm642, 1, 0
        %vm650 = vcmp.eq.s32.totalorder %v648, 1
        %vm651 = vcmp.eq.s32.totalorder %v649, 1
        %v652 = vsel %vm650, %v646, 0.0
        %v653 = vsel %vm651, %v647, 0.0
        %v654 = vld [vmem:[#allocation2] sm:$0xff]
        %v655 = vld [vmem:[#allocation2 + $0x8] sm:$0xff]
        %v656 = vadd.f32 %v654, %v639
        %v657 = vadd.f32 %v655, %v640
        %v658 = vadd.f32 %v656, %v542
        %v659 = vadd.f32 %v657, %v545
        %v660 = vadd.f32 %v658, %v652
        %v661 = vadd.f32 %v659, %v653
        %662 = vst [vmem:[#allocation2] sm:$0xff] %v660
        %663 = vst [vmem:[#allocation2 + $0x8] sm:$0xff] %v661
      $region48: #{resnet_block_forward.5} parent=39 // pred_fallthru
        _
      %p664 = scmp.eq.s32.totalorder %s23, 2
      // Predicated region
      $region49: #{resnet_block_forward.5} parent=39 // pred_check
        %p665 = pneg %p664
      $region50: #{resnet_block_forward.5} parent=39 // pred_check_branch
        %667 = sbr.rel (%p665) target = $region52
      $region51: #{resnet_block_forward.5} parent=39 // pred_region
        %v668 = vld [vmem:[#allocation2] sm:$0xff]
        %v669 = vld [vmem:[#allocation2 + $0x8] sm:$0xff]
        %v670 = vld [vmem:[%s2] sm:$0x1]
        %v672 = vlaneseq
        %v673 = vshrl.u32 %v672, 7
        %v674 = vsub.s32 0, %v673
        %v675 = vrot.slane %v670, %v674
        %v677 = vadd.f32 %v668, %v675
        %v678 = vadd.f32 %v669, %v675
        %v679 = vpack.c.bf16 %v678, %v677
        %v681 = vunpack.c.l.b16 %v679
        %v682 = vunpack.c.h.b16 %v679
        %v683 = vpack.c.b16 %v681, %v681
        %v684 = vpack.c.b16 %v682, %v682
        %687 = vst [vmem:[%s337] sm:$0xf] %v683
        %688 = vst [vmem:[%s337 + $0x4] sm:$0xf] %v684
      $region52: #{resnet_block_forward.5} parent=39 // pred_fallthru
        _
      %p689 = scmp.lt.s32.totalorder %s21, 1
      %s690 = scalar_select %p689, %s21, 1
      %p691 = scmp.lt.s32.totalorder %s22, 15
      %s692 = scalar_select %p691, %s22, 15
      %s693 = smul.addr %s692, 2
      %s694 = smul.addr %s690, 32
      %s695 = sadd.s32 %s693, %s694
      %s696 = smul.addr %s695, 4
      %s697 = scalar_lea.vmem %s5, %s696
      // Predicated region
      $region53: #{resnet_block_forward.5} parent=39 // pred_check
        %p698 = pneg %p189
      $region54: #{resnet_block_forward.5} parent=39 // pred_check_branch
        %700 = sbr.rel (%p698) target = $region56
      $region55: #{resnet_block_forward.5} parent=39 // pred_region
        _
      $region56: #{resnet_block_forward.5} parent=39 // pred_fallthru
        _
    $region40: #{resnet_block_forward.5} parent=5 // pred_fallthru
      _
    %p701 = scmp.le.s32.totalorder 2, %s11
    // Predicated region
    $region57: #{resnet_block_forward.5} parent=5 // pred_check
      %p702 = pneg %p701
    $region58: #{resnet_block_forward.5} parent=5 // pred_check_branch
      %704 = sbr.rel (%p702) target = $region60
    $region59: #{resnet_block_forward.5} parent=5 // pred_region
      %s705 = ssub.s32 %s11, 2
      // Predicated region
      $region61: #{resnet_block_forward.5} parent=59 // pred_check
        %p706 = pneg %p195
      $region62: #{resnet_block_forward.5} parent=59 // pred_check_branch
        %708 = sbr.rel (%p706) target = $region64
      $region63: #{resnet_block_forward.5} parent=59 // pred_region
        %p709 = scmp.lt.s32.totalorder %s24, 1
        %s710 = scalar_select %p709, %s24, 1
        %p711 = scmp.lt.s32.totalorder %s25, 15
        %s712 = scalar_select %p711, %s25, 15
        %s713 = smul.addr %s712, 2
        %s714 = smul.addr %s710, 32
        %s715 = sadd.s32 %s713, %s714
        %s716 = smul.addr %s715, 4
        %s717 = scalar_lea.vmem %s5, %s716
      $region64: #{resnet_block_forward.5} parent=59 // pred_fallthru
        _
    $region60: #{resnet_block_forward.5} parent=5 // pred_fallthru
      _
  $region6: #{resnet_block_forward.5} parent=0 // loop_footer
    %s15 = sadd.s32 1, %s11
  $region7: #{resnet_block_forward.5} parent=0 // loop_footer_branch
    %10 = sbr.rel target = $region3
  $region8: #{resnet_block_forward.5} parent=0 // loop_exit
    _

// kernel: resnet_block_forward.7
$region0: #{resnet_block_forward.7}
  #allocation0 [shape = 'u32[]', space=smem, size = 0x4, offset = 0x4, fixed_abs, tag = 'smem constant byte address 0x4 - core index']
  #allocation1 [shape = 'u32[144,128]{1,0:T(1,128)}', space=vmem, size = 0x12000, scoped, tag = 'internal scratch']
  #allocation2 [shape = 'f32[16,128]{1,0:T(8,128)}', space=vmem, size = 0x2000, scoped, tag = 'scratch operand']
  %s0 = inlined_call_operand.vmem [shape: bf16[2,16,16,128], index: 0, kind: input, shape index: {}]
  %s1 = inlined_call_operand.vmem [shape: bf16[9,128,128], index: 1, kind: input, shape index: {}]
  %s2 = inlined_call_operand.vmem [shape: f32[1,128], index: 2, kind: input, shape index: {}]
  %s3 = inlined_call_operand.vmem [shape: f32[2,1,128], index: 3, kind: input, shape index: {}]
  %s4 = inlined_call_operand.vmem [shape: f32[2,1,128], index: 4, kind: input, shape index: {}]
  %s5 = inlined_call_operand.vmem [shape: bf16[2,16,16,64], index: 5, kind: input, shape index: {}]
  %s6 = inlined_call_operand.vmem [shape: bf16[64,128], index: 6, kind: input, shape index: {}]
  %s7 = inlined_call_operand.vmem [shape: f32[1,128], index: 7, kind: input, shape index: {}]
  %s8 = inlined_call_operand.hbm [shape: f32[2,16,16,128], index: 8, kind: output, shape index: {}]
  %s9 = sld [smem:[#allocation0]]
  $region77: #{resnet_block_forward.7} parent=0
    _
  %s11 = ssub.s32 1, %s9
  %s12 = scalar_select 0, %s11, %s9
  $region1: #{resnet_block_forward.7} parent=0
    #allocation3 [shape = 'u8[16384]{0}', space=vmem, size = 0x4000, scoped, tag = 'output window, operand 0']
    #allocation4 [shape = 's32[2]{0}', space=sflag, size = 0x8, scoped, tag = 'scoped memory for resnet_block_forward.7']
    %13 = vsyncpa [#allocation4], 0
    %s14 = scalar_lea.sflag [#allocation4], 1
    %15 = vsyncpa %s14, 0
    loop: start=0, step=1, limit=98
    $region2: #{resnet_block_forward.7} parent=1 // loop_pre_header
      _
    $region3: #{resnet_block_forward.7} parent=1 // loop_header
      %s17 = sphi 0, %s21
      %p18 = scmp.ge.s32.totalorder %s17, 98
      %s24 = sphi 0, %s43
      %s25 = sphi 0, %s39
      %s26 = sphi 0, %s35
      %s27 = sphi 0, %s24
      %s28 = sphi 0, %s25
      %s29 = sphi 0, %s26
      %s30 = sphi 0, %s27
      %s31 = sphi 0, %s28
      %s32 = sphi 0, %s29
      %s60 = sphi 0, %s62
      %s63 = sphi 0, %s60
      %s64 = sphi 0, %s63
      %s80 = sphi 0, %s64
      %s84 = sphi 0, %s84
      %s86 = sphi 0, %s84
      %s87 = sphi 0, %s86
      %s101 = sphi 0, %s87
      %s105 = sphi 0, %s105
      %s107 = sphi 0, %s105
      %s108 = sphi 0, %s107
      %s122 = sphi 0, %s108
      %s128 = sphi 0, %s130
      %s131 = sphi 0, %s128
      %s132 = sphi 0, %s131
      %s148 = sphi 0, %s132
      %s154 = sphi 0, %s156
      %s157 = sphi 0, %s154
      %s158 = sphi 0, %s157
      %s174 = sphi 0, %s158
      %s182 = sphi 0, %s184
      %s185 = sphi 0, %s182
      %s186 = sphi 0, %s185
      %s202 = sphi 0, %s186
      %s206 = sphi 0, %s206
      %s208 = sphi 0, %s206
      %s209 = sphi 0, %s208
      %s223 = sphi 0, %s209
      %s227 = sphi 0, %s227
      %s229 = sphi 0, %s227
      %s230 = sphi 0, %s229
      %s244 = sphi 0, %s230
      %s252 = sphi 0, %s254
      %s255 = sphi 0, %s252
      %s256 = sphi 0, %s255
      %s272 = sphi 0, %s256
    $region4: #{resnet_block_forward.7} parent=1 // loop_header_branch
      %20 = sbr.rel (%p18) target = $region8
    $region5: #{resnet_block_forward.7} parent=1 // loop_body
      %s22 = ssub.s32 %s17, 1
      %s23 = ssub.s32 %s17, 2
      %s33 = sadd.s32 1, %s26
      %p34 = scmp.ge.s32.totalorder %s33, 3
      %s35 = scalar_select %p34, 0, %s33
      %s36 = sadd.s32 1, %s25
      %s37 = scalar_select %p34, %s36, %s25
      %p38 = scmp.ge.s32.totalorder %s37, 16
      %s39 = scalar_select %p38, 0, %s37
      %s40 = sadd.s32 1, %s24
      %s41 = scalar_select %p38, %s40, %s24
      %p42 = scmp.ge.s32.totalorder %s41, 2
      %s43 = scalar_select %p42, 0, %s41
      %s44 = sadd.s32 %s25, %s26
      %s45 = ssub.s32 %s44, 1
      %p46 = scmp.gt.s32.totalorder %s45, 0
      %s47 = scalar_select %p46, %s45, 0
      %p48 = scmp.lt.s32.totalorder %s47, 15
      %s49 = scalar_select %p48, %s47, 15
      %s50 = sadd.s32 %s39, %s35
      %s51 = ssub.s32 %s50, 1
      %p52 = scmp.gt.s32.totalorder %s51, 0
      %s53 = scalar_select %p52, %s51, 0
      %p54 = scmp.lt.s32.totalorder %s53, 15
      %s55 = scalar_select %p54, %s53, 15
      %s56 = ssub.s32 %s24, %s43
      %s57 = ssub.s32 %s49, %s55
      %s58 = sor.u32 %s56, %s57
      %p59 = scmp.eq.s32.totalorder %s58, 0
      %s61 = sadd.s32 %s60, 1
      %s62 = scalar_select %p59, %s60, %s61
      %p65 = pneg %p59
      %p66 = scmp.eq.s32.totalorder %s17, 95
      %p67 = por %p65, %p66
      %p68 = scmp.ne.s32.totalorder %s60, %s63
      %p69 = scmp.eq.s32.totalorder %s17, 0
      %p70 = por %p68, %p69
      %p71 = scmp.ne.s32.totalorder %s60, %s63
      %p72 = scmp.eq.s32.totalorder %s22, 95
      %p73 = por %p71, %p72
      %p74 = scmp.ne.s32.totalorder %s63, %s64
      %p75 = scmp.eq.s32.totalorder %s22, 0
      %p76 = por %p74, %p75
      %p77 = scmp.ne.s32.totalorder %s63, %s64
      %p78 = scmp.eq.s32.totalorder %s23, 95
      %p79 = por %p77, %p78
      %p81 = scmp.ne.s32.totalorder %s64, %s80
      %p82 = scmp.eq.s32.totalorder %s23, 0
      %p83 = por %p81, %p82
      %s85 = sadd.s32 %s84, 1
      %p88 = scmp.eq.s32.totalorder %s17, 95
      %p89 = scmp.ne.s32.totalorder %s84, %s86
      %p90 = scmp.eq.s32.totalorder %s17, 0
      %p91 = por %p89, %p90
      %p92 = scmp.ne.s32.totalorder %s84, %s86
      %p93 = scmp.eq.s32.totalorder %s22, 95
      %p94 = por %p92, %p93
      %p95 = scmp.ne.s32.totalorder %s86, %s87
      %p96 = scmp.eq.s32.totalorder %s22, 0
      %p97 = por %p95, %p96
      %p98 = scmp.ne.s32.totalorder %s86, %s87
      %p99 = scmp.eq.s32.totalorder %s23, 95
      %p100 = por %p98, %p99
      %p102 = scmp.ne.s32.totalorder %s87, %s101
      %p103 = scmp.eq.s32.totalorder %s23, 0
      %p104 = por %p102, %p103
      %s106 = sadd.s32 %s105, 1
      %p109 = scmp.eq.s32.totalorder %s17, 95
      %p110 = scmp.ne.s32.totalorder %s105, %s107
      %p111 = scmp.eq.s32.totalorder %s17, 0
      %p112 = por %p110, %p111
      %p113 = scmp.ne.s32.totalorder %s105, %s107
      %p114 = scmp.eq.s32.totalorder %s22, 95
      %p115 = por %p113, %p114
      %p116 = scmp.ne.s32.totalorder %s107, %s108
      %p117 = scmp.eq.s32.totalorder %s22, 0
      %p118 = por %p116, %p117
      %p119 = scmp.ne.s32.totalorder %s107, %s108
      %p120 = scmp.eq.s32.totalorder %s23, 95
      %p121 = por %p119, %p120
      %p123 = scmp.ne.s32.totalorder %s108, %s122
      %p124 = scmp.eq.s32.totalorder %s23, 0
      %p125 = por %p123, %p124
      %s126 = ssub.s32 %s24, %s43
      %p127 = scmp.eq.s32.totalorder %s126, 0
      %s129 = sadd.s32 %s128, 1
      %s130 = scalar_select %p127, %s128, %s129
      %p133 = pneg %p127
      %p134 = scmp.eq.s32.totalorder %s17, 95
      %p135 = por %p133, %p134
      %p136 = scmp.ne.s32.totalorder %s128, %s131
      %p137 = scmp.eq.s32.totalorder %s17, 0
      %p138 = por %p136, %p137
      %p139 = scmp.ne.s32.totalorder %s128, %s131
      %p140 = scmp.eq.s32.totalorder %s22, 95
      %p141 = por %p139, %p140
      %p142 = scmp.ne.s32.totalorder %s131, %s132
      %p143 = scmp.eq.s32.totalorder %s22, 0
      %p144 = por %p142, %p143
      %p145 = scmp.ne.s32.totalorder %s131, %s132
      %p146 = scmp.eq.s32.totalorder %s23, 95
      %p147 = por %p145, %p146
      %p149 = scmp.ne.s32.totalorder %s132, %s148
      %p150 = scmp.eq.s32.totalorder %s23, 0
      %p151 = por %p149, %p150
      %s152 = ssub.s32 %s24, %s43
      %p153 = scmp.eq.s32.totalorder %s152, 0
      %s155 = sadd.s32 %s154, 1
      %s156 = scalar_select %p153, %s154, %s155
      %p159 = pneg %p153
      %p160 = scmp.eq.s32.totalorder %s17, 95
      %p161 = por %p159, %p160
      %p162 = scmp.ne.s32.totalorder %s154, %s157
      %p163 = scmp.eq.s32.totalorder %s17, 0
      %p164 = por %p162, %p163
      %p165 = scmp.ne.s32.totalorder %s154, %s157
      %p166 = scmp.eq.s32.totalorder %s22, 95
      %p167 = por %p165, %p166
      %p168 = scmp.ne.s32.totalorder %s157, %s158
      %p169 = scmp.eq.s32.totalorder %s22, 0
      %p170 = por %p168, %p169
      %p171 = scmp.ne.s32.totalorder %s157, %s158
      %p172 = scmp.eq.s32.totalorder %s23, 95
      %p173 = por %p171, %p172
      %p175 = scmp.ne.s32.totalorder %s158, %s174
      %p176 = scmp.eq.s32.totalorder %s23, 0
      %p177 = por %p175, %p176
      %s178 = ssub.s32 %s24, %s43
      %s179 = ssub.s32 %s25, %s39
      %s180 = sor.u32 %s178, %s179
      %p181 = scmp.eq.s32.totalorder %s180, 0
      %s183 = sadd.s32 %s182, 1
      %s184 = scalar_select %p181, %s182, %s183
      %p187 = pneg %p181
      %p188 = scmp.eq.s32.totalorder %s17, 95
      %p189 = por %p187, %p188
      %p190 = scmp.ne.s32.totalorder %s182, %s185
      %p191 = scmp.eq.s32.totalorder %s17, 0
      %p192 = por %p190, %p191
      %p193 = scmp.ne.s32.totalorder %s182, %s185
      %p194 = scmp.eq.s32.totalorder %s22, 95
      %p195 = por %p193, %p194
      %p196 = scmp.ne.s32.totalorder %s185, %s186
      %p197 = scmp.eq.s32.totalorder %s22, 0
      %p198 = por %p196, %p197
      %p199 = scmp.ne.s32.totalorder %s185, %s186
      %p200 = scmp.eq.s32.totalorder %s23, 95
      %p201 = por %p199, %p200
      %p203 = scmp.ne.s32.totalorder %s186, %s202
      %p204 = scmp.eq.s32.totalorder %s23, 0
      %p205 = por %p203, %p204
      %s207 = sadd.s32 %s206, 1
      %p210 = scmp.eq.s32.totalorder %s17, 95
      %p211 = scmp.ne.s32.totalorder %s206, %s208
      %p212 = scmp.eq.s32.totalorder %s17, 0
      %p213 = por %p211, %p212
      %p214 = scmp.ne.s32.totalorder %s206, %s208
      %p215 = scmp.eq.s32.totalorder %s22, 95
      %p216 = por %p214, %p215
      %p217 = scmp.ne.s32.totalorder %s208, %s209
      %p218 = scmp.eq.s32.totalorder %s22, 0
      %p219 = por %p217, %p218
      %p220 = scmp.ne.s32.totalorder %s208, %s209
      %p221 = scmp.eq.s32.totalorder %s23, 95
      %p222 = por %p220, %p221
      %p224 = scmp.ne.s32.totalorder %s209, %s223
      %p225 = scmp.eq.s32.totalorder %s23, 0
      %p226 = por %p224, %p225
      %s228 = sadd.s32 %s227, 1
      %p231 = scmp.eq.s32.totalorder %s17, 95
      %p232 = scmp.ne.s32.totalorder %s227, %s229
      %p233 = scmp.eq.s32.totalorder %s17, 0
      %p234 = por %p232, %p233
      %p235 = scmp.ne.s32.totalorder %s227, %s229
      %p236 = scmp.eq.s32.totalorder %s22, 95
      %p237 = por %p235, %p236
      %p238 = scmp.ne.s32.totalorder %s229, %s230
      %p239 = scmp.eq.s32.totalorder %s22, 0
      %p240 = por %p238, %p239
      %p241 = scmp.ne.s32.totalorder %s229, %s230
      %p242 = scmp.eq.s32.totalorder %s23, 95
      %p243 = por %p241, %p242
      %p245 = scmp.ne.s32.totalorder %s230, %s244
      %p246 = scmp.eq.s32.totalorder %s23, 0
      %p247 = por %p245, %p246
      %s248 = ssub.s32 %s24, %s43
      %s249 = ssub.s32 %s25, %s39
      %s250 = sor.u32 %s248, %s249
      %p251 = scmp.eq.s32.totalorder %s250, 0
      %s253 = sadd.s32 %s252, 1
      %s254 = scalar_select %p251, %s252, %s253
      %p257 = pneg %p251
      %p258 = scmp.eq.s32.totalorder %s17, 95
      %p259 = por %p257, %p258
      %p260 = scmp.ne.s32.totalorder %s252, %s255
      %p261 = scmp.eq.s32.totalorder %s17, 0
      %p262 = por %p260, %p261
      %p263 = scmp.ne.s32.totalorder %s252, %s255
      %p264 = scmp.eq.s32.totalorder %s22, 95
      %p265 = por %p263, %p264
      %p266 = scmp.ne.s32.totalorder %s255, %s256
      %p267 = scmp.eq.s32.totalorder %s22, 0
      %p268 = por %p266, %p267
      %p269 = scmp.ne.s32.totalorder %s255, %s256
      %p270 = scmp.eq.s32.totalorder %s23, 95
      %p271 = por %p269, %p270
      %p273 = scmp.ne.s32.totalorder %s256, %s272
      %p274 = scmp.eq.s32.totalorder %s23, 0
      %p275 = por %p273, %p274
      %p276 = scmp.le.s32.totalorder 1, %s17
      %p277 = scmp.lt.s32.totalorder %s17, 97
      %p278 = pnand %p276, %p277
      %p279 = pneg %p278
      // Predicated region
      $region9: #{resnet_block_forward.7} parent=5 // pred_check
        _
      $region10: #{resnet_block_forward.7} parent=5 // pred_check_branch
        %281 = sbr.rel (%p278) target = $region12
      $region11: #{resnet_block_forward.7} parent=5 // pred_region
        %s282 = ssub.s32 %s17, 1
        // Predicated region
        $region13: #{resnet_block_forward.7} parent=11 // pred_check
          %p283 = pneg %p97
        $region14: #{resnet_block_forward.7} parent=11 // pred_check_branch
          %285 = sbr.rel (%p283) target = $region16
        $region15: #{resnet_block_forward.7} parent=11 // pred_region
          _
        $region16: #{resnet_block_forward.7} parent=11 // pred_fallthru
          _
        // Predicated region
        $region17: #{resnet_block_forward.7} parent=11 // pred_check
          %p286 = pneg %p118
        $region18: #{resnet_block_forward.7} parent=11 // pred_check_branch
          %288 = sbr.rel (%p286) target = $region20
        $region19: #{resnet_block_forward.7} parent=11 // pred_region
          _
        $region20: #{resnet_block_forward.7} parent=11 // pred_fallthru
          _
        // Predicated region
        $region21: #{resnet_block_forward.7} parent=11 // pred_check
          %p289 = pneg %p219
        $region22: #{resnet_block_forward.7} parent=11 // pred_check_branch
          %291 = sbr.rel (%p289) target = $region24
        $region23: #{resnet_block_forward.7} parent=11 // pred_region
          _
        $region24: #{resnet_block_forward.7} parent=11 // pred_fallthru
          _
        // Predicated region
        $region25: #{resnet_block_forward.7} parent=11 // pred_check
          %p292 = pneg %p240
        $region26: #{resnet_block_forward.7} parent=11 // pred_check_branch
          %294 = sbr.rel (%p292) target = $region28
        $region27: #{resnet_block_forward.7} parent=11 // pred_region
          _
        $region28: #{resnet_block_forward.7} parent=11 // pred_fallthru
          _
      $region12: #{resnet_block_forward.7} parent=5 // pred_fallthru
        _
      %p295 = scmp.lt.s32.totalorder %s17, 96
      // Predicated region
      $region29: #{resnet_block_forward.7} parent=5 // pred_check
        %p296 = pneg %p295
      $region30: #{resnet_block_forward.7} parent=5 // pred_check_branch
        %298 = sbr.rel (%p296) target = $region32
      $region31: #{resnet_block_forward.7} parent=5 // pred_region
        // Predicated region
        $region33: #{resnet_block_forward.7} parent=31 // pred_check
          %p299 = pneg %p70
        $region34: #{resnet_block_forward.7} parent=31 // pred_check_branch
          %301 = sbr.rel (%p299) target = $region36
        $region35: #{resnet_block_forward.7} parent=31 // pred_region
          %s302 = sadd.s32 %s25, %s26
          %s303 = ssub.s32 %s302, 1
          %p304 = scmp.gt.s32.totalorder %s303, 0
          %s305 = scalar_select %p304, %s303, 0
          %p306 = scmp.lt.s32.totalorder %s305, 15
          %s307 = scalar_select %p306, %s305, 15
          %p308 = scmp.lt.s32.totalorder %s24, 1
          %s309 = scalar_select %p308, %s24, 1
          %p310 = scmp.lt.s32.totalorder %s307, 15
          %s311 = scalar_select %p310, %s307, 15
          %s312 = smul.addr %s311, 2
          %s313 = smul.addr %s309, 32
          %s314 = sadd.s32 %s312, %s313
          %s315 = smul.addr %s314, 4
          %s316 = scalar_lea.vmem %s0, %s315
          %s317 = sadd.s32 %s25, %s26
          %s318 = ssub.s32 %s317, 1
          %p319 = scmp.gt.s32.totalorder %s318, 0
          %s320 = scalar_select %p319, %s318, 0
          %p321 = scmp.lt.s32.totalorder %s320, 15
          %s322 = scalar_select %p321, %s320, 15
        $region36: #{resnet_block_forward.7} parent=31 // pred_fallthru
          _
        // Predicated region
        $region37: #{resnet_block_forward.7} parent=31 // pred_check
          %p323 = pneg %p138
        $region38: #{resnet_block_forward.7} parent=31 // pred_check_branch
          %325 = sbr.rel (%p323) target = $region40
        $region39: #{resnet_block_forward.7} parent=31 // pred_region
          %p326 = scmp.lt.s32.totalorder %s24, 1
          %s327 = scalar_select %p326, %s24, 1
          %s328 = scalar_lea.vmem %s3, %s327
        $region40: #{resnet_block_forward.7} parent=31 // pred_fallthru
          _
        // Predicated region
        $region41: #{resnet_block_forward.7} parent=31 // pred_check
          %p329 = pneg %p164
        $region42: #{resnet_block_forward.7} parent=31 // pred_check_branch
          %331 = sbr.rel (%p329) target = $region44
        $region43: #{resnet_block_forward.7} parent=31 // pred_region
          %p332 = scmp.lt.s32.totalorder %s24, 1
          %s333 = scalar_select %p332, %s24, 1
          %s334 = scalar_lea.vmem %s4, %s333
        $region44: #{resnet_block_forward.7} parent=31 // pred_fallthru
          _
        // Predicated region
        $region45: #{resnet_block_forward.7} parent=31 // pred_check
          %p335 = pneg %p192
        $region46: #{resnet_block_forward.7} parent=31 // pred_check_branch
          %337 = sbr.rel (%p335) target = $region48
        $region47: #{resnet_block_forward.7} parent=31 // pred_region
          %p338 = scmp.lt.s32.totalorder %s24, 1
          %s339 = scalar_select %p338, %s24, 1
          %p340 = scmp.lt.s32.totalorder %s25, 15
          %s341 = scalar_select %p340, %s25, 15
          %s342 = smul.addr %s341, 2
          %s343 = smul.addr %s339, 32
          %s344 = sadd.s32 %s342, %s343
          %s345 = smul.addr %s344, 4
          %s346 = scalar_lea.vmem %s5, %s345
        $region48: #{resnet_block_forward.7} parent=31 // pred_fallthru
          _
      $region32: #{resnet_block_forward.7} parent=5 // pred_fallthru
        _
      %p347 = scmp.le.s32.totalorder 1, %s17
      %p348 = scmp.lt.s32.totalorder %s17, 97
      %p349 = pnand %p347, %p348
      %p350 = pneg %p349
      // Predicated region
      $region49: #{resnet_block_forward.7} parent=5 // pred_check
        _
      $region50: #{resnet_block_forward.7} parent=5 // pred_check_branch
        %352 = sbr.rel (%p349) target = $region52
      $region51: #{resnet_block_forward.7} parent=5 // pred_region
        %s353 = ssub.s32 %s17, 1
        %s354 = sadd.s32 %s28, %s29
        %s355 = ssub.s32 %s354, 1
        %p356 = scmp.gt.s32.totalorder %s355, 0
        %s357 = scalar_select %p356, %s355, 0
        %p358 = scmp.lt.s32.totalorder %s357, 15
        %s359 = scalar_select %p358, %s357, 15
        %p360 = scmp.lt.s32.totalorder %s27, 1
        %s361 = scalar_select %p360, %s27, 1
        %p362 = scmp.lt.s32.totalorder %s359, 15
        %s363 = scalar_select %p362, %s359, 15
        %s364 = smul.addr %s363, 2
        %s365 = smul.addr %s361, 32
        %s366 = sadd.s32 %s364, %s365
        %s367 = smul.addr %s366, 4
        %s368 = scalar_lea.vmem %s0, %s367
        %p369 = pneg %p76
        %p370 = pneg %p73
        %p371 = pneg %p97
        %p372 = pneg %p94
        %p373 = pneg %p118
        %p374 = pneg %p115
        %p375 = scmp.lt.s32.totalorder %s27, 1
        %s376 = scalar_select %p375, %s27, 1
        %s377 = scalar_lea.vmem %s3, %s376
        %p378 = pneg %p144
        %p379 = pneg %p141
        %p380 = scmp.lt.s32.totalorder %s27, 1
        %s381 = scalar_select %p380, %s27, 1
        %s382 = scalar_lea.vmem %s4, %s381
        %p383 = pneg %p170
        %p384 = pneg %p167
        %p385 = scmp.lt.s32.totalorder %s27, 1
        %s386 = scalar_select %p385, %s27, 1
        %p387 = scmp.lt.s32.totalorder %s28, 15
        %s388 = scalar_select %p387, %s28, 15
        %s389 = smul.addr %s388, 2
        %s390 = smul.addr %s386, 32
        %s391 = sadd.s32 %s389, %s390
        %s392 = smul.addr %s391, 4
        %s393 = scalar_lea.vmem %s5, %s392
        %p394 = pneg %p198
        %p395 = pneg %p195
        %p396 = pneg %p219
        %p397 = pneg %p216
        %p398 = pneg %p240
        %p399 = pneg %p237
        %p400 = pneg %p268
        %p401 = pneg %p265
        %s402 = sand.u32 %s255, 1
        %s403 = scalar_lea.sflag [#allocation4], %s402
        %s404 = sand.u32 %s255, 1
        %s405 = smul.addr %s404, 16
        %s406 = scalar_lea.vmem [#allocation3], %s405
        %s407 = sadd.s32 %s28, %s29
        %s408 = ssub.s32 %s407, 1
        %p409 = scmp.gt.s32.totalorder %s408, 0
        %s410 = scalar_select %p409, %s408, 0
        %p411 = scmp.lt.s32.totalorder %s410, 15
        %s412 = scalar_select %p411, %s410, 15
        %p413 = scmp.lt.s32.totalorder %s27, 1
        %s414 = scalar_select %p413, %s27, 1
        %p415 = scmp.lt.s32.totalorder %s412, 15
        %s416 = scalar_select %p415, %s412, 15
        %s417 = smul.addr %s416, 2
        %s418 = smul.addr %s414, 32
        %s419 = sadd.s32 %s417, %s418
        %s420 = smul.addr %s419, 4
        %s421 = scalar_lea.vmem %s0, %s420
        %s422 = sadd.s32 %s28, %s29
        %s423 = ssub.s32 %s422, 1
        %p424 = scmp.gt.s32.totalorder %s423, 0
        %s425 = scalar_select %p424, %s423, 0
        %p426 = scmp.lt.s32.totalorder %s425, 15
        %s427 = scalar_select %p426, %s425, 15
        %p428 = scmp.lt.s32.totalorder %s27, 1
        %s429 = scalar_select %p428, %s27, 1
        %s430 = scalar_lea.vmem %s3, %s429
        %p431 = scmp.lt.s32.totalorder %s27, 1
        %s432 = scalar_select %p431, %s27, 1
        %s433 = scalar_lea.vmem %s4, %s432
        %p434 = scmp.lt.s32.totalorder %s27, 1
        %s435 = scalar_select %p434, %s27, 1
        %p436 = scmp.lt.s32.totalorder %s28, 15
        %s437 = scalar_select %p436, %s28, 15
        %s438 = smul.addr %s437, 2
        %s439 = smul.addr %s435, 32
        %s440 = sadd.s32 %s438, %s439
        %s441 = smul.addr %s440, 4
        %s442 = scalar_lea.vmem %s5, %s441
        %p444 = scmp.eq.s32.totalorder %s29, 0
        // Predicated region
        $region53: #{resnet_block_forward.7} parent=51 // pred_check
          %p445 = pneg %p444
        $region54: #{resnet_block_forward.7} parent=51 // pred_check_branch
          %447 = sbr.rel (%p445) target = $region56
        $region55: #{resnet_block_forward.7} parent=51 // pred_region
          %448 = vst [vmem:[#allocation2] sm:$0xff] 0.0
          %449 = vst [vmem:[#allocation2 + $0x8] sm:$0xff] 0.0
        $region56: #{resnet_block_forward.7} parent=51 // pred_fallthru
          _
        %s450 = sadd.s32 %s28, %s29
        %s451 = ssub.s32 %s450, 1
        %p452 = scmp.ge.s32.totalorder %s451, 0
        %p453 = scmp.lt.s32.totalorder %s451, 16
        %p454 = pnand %p452, %p453
        %p455 = pneg %p454
        // Predicated region
        $region57: #{resnet_block_forward.7} parent=51 // pred_check
          _
        $region58: #{resnet_block_forward.7} parent=51 // pred_check_branch
          %457 = sbr.rel (%p454) target = $region60
        $region59: #{resnet_block_forward.7} parent=51 // pred_region
          %v458 = vld [vmem:[%s421] sm:$0xf]
          %v459 = vld [vmem:[%s421 + $0x4] sm:$0xf]
          %v460 = vunpack.c.l.bf16 %v458
          %v461 = vunpack.c.l.bf16 %v459
          %v462 = vld [vmem:[%s430] sm:$0x1]
          %v464 = vlaneseq
          %v465 = vshrl.u32 %v464, 7
          %v466 = vsub.s32 0, %v465
          %v467 = vrot.slane %v462, %v466
          %v469 = vmul.f32 %v460, %v467
          %v470 = vmul.f32 %v461, %v467
          %v471 = vld [vmem:[%s433] sm:$0x1]
          %v473 = vlaneseq
          %v474 = vshrl.u32 %v473, 7
          %v475 = vsub.s32 0, %v474
          %v476 = vrot.slane %v471, %v475
          %v478 = vadd.f32 %v469, %v476
          %v479 = vadd.f32 %v470, %v476
          %v480 = vxor.u32 %v478, 2147483648
          %v481 = vxor.u32 %v479, 2147483648
          %v482 = vmul.f32 %v480, 1.442695
          %v483 = vpow.pop %v482
          %v484 = vmul.f32 %v481, 1.442695
          %v485 = vpow.pop %v484
          %v486 = vadd.f32 %v483, 1.0
          %v487 = vadd.f32 %v485, 1.0
          %v488 = vrcp.pop %v486
          %v489 = vmul.f32 1.0, %v488
          %v490 = vrcp.pop %v487
          %v491 = vmul.f32 1.0, %v490
          %v492 = vmul.f32 %v478, %v489
          %v493 = vmul.f32 %v479, %v491
          %v494 = vpack.c.bf16 %v493, %v492
          %s495 = smul.u32 %s29, 3
          %s496 = smul.u32 %s495, 16
          %s497 = smul.addr %s496, 4
          %s498 = scalar_lea.vmem %s1, %s497
          %v499 = vld [vmem:[%s498] sm:$0xf]
          %v500 = vld [vmem:[%s498 + $0x4] sm:$0xf]
          %v501 = vld [vmem:[%s498 + $0x8] sm:$0xf]
          %v502 = vld [vmem:[%s498 + $0xc] sm:$0xf]
          %v503 = vld [vmem:[%s498 + $0x10] sm:$0xf]
          %v504 = vld [vmem:[%s498 + $0x14] sm:$0xf]
          %v505 = vld [vmem:[%s498 + $0x18] sm:$0xf]
          %v506 = vld [vmem:[%s498 + $0x1c] sm:$0xf]
          %v507 = vld [vmem:[%s498 + $0x20] sm:$0xf]
          %v508 = vld [vmem:[%s498 + $0x24] sm:$0xf]
          %v509 = vld [vmem:[%s498 + $0x28] sm:$0xf]
          %v510 = vld [vmem:[%s498 + $0x2c] sm:$0xf]
          %v511 = vld [vmem:[%s498 + $0x30] sm:$0xf]
          %v512 = vld [vmem:[%s498 + $0x34] sm:$0xf]
          %v513 = vld [vmem:[%s498 + $0x38] sm:$0xf]
          %v514 = vld [vmem:[%s498 + $0x3c] sm:$0xf]
          %v531 = vunpack.c.l.b16 %v499
          %v532 = vunpack.c.l.b16 %v500
          %v533 = vunpack.c.l.b16 %v501
          %v534 = vunpack.c.l.b16 %v502
          %v535 = vunpack.c.l.b16 %v503
          %v536 = vunpack.c.l.b16 %v504
          %v537 = vunpack.c.l.b16 %v505
          %v538 = vunpack.c.l.b16 %v506
          %v539 = vunpack.c.l.b16 %v507
          %v540 = vunpack.c.l.b16 %v508
          %v541 = vunpack.c.l.b16 %v509
          %v542 = vunpack.c.l.b16 %v510
          %v543 = vunpack.c.l.b16 %v511
          %v544 = vunpack.c.l.b16 %v512
          %v545 = vunpack.c.l.b16 %v513
          %v546 = vunpack.c.l.b16 %v514
          %v547 = vpack.c.b16 %v532, %v531
          %v548 = vpack.c.b16 %v534, %v533
          %v549 = vpack.c.b16 %v536, %v535
          %v550 = vpack.c.b16 %v538, %v537
          %v551 = vpack.c.b16 %v540, %v539
          %v552 = vpack.c.b16 %v542, %v541
          %v553 = vpack.c.b16 %v544, %v543
          %v554 = vpack.c.b16 %v546, %v545
          %563 = vmatprep.subr.bf16.mxu0 0
          %564 = vmatpush1.bf16.msra.mxu0 %v554
          %565 = vmatprep.subr.bf16.mxu0 0
          %566 = vmatpush1.bf16.msra.mxu0 %v553
          %567 = vmatprep.subr.bf16.mxu0 0
          %568 = vmatpush1.bf16.msra.mxu0 %v552
          %569 = vmatprep.subr.bf16.mxu0 0
          %570 = vmatpush1.bf16.msra.mxu0 %v551
          %571 = vmatprep.subr.bf16.mxu0 0
          %572 = vmatpush1.bf16.msra.mxu0 %v550
          %573 = vmatprep.subr.bf16.mxu0 0
          %574 = vmatpush1.bf16.msra.mxu0 %v549
          %575 = vmatprep.subr.bf16.mxu0 0
          %576 = vmatpush1.bf16.msra.mxu0 %v548
          %577 = vmatprep.subr.bf16.mxu0 0
          %578 = vmatpush1.bf16.msra.mxu0 %v547
          %579 = vmatprep.subr.bf16.mxu0 0
          %580 = vmatpush2.bf16.msra.mxu0 0
          %581 = vmatprep.subr.bf16.mxu0 0
          %582 = vmatpush2.bf16.msra.mxu0 0
          %583 = vmatprep.subr.bf16.mxu0 0
          %584 = vmatpush2.bf16.msra.mxu0 0
          %585 = vmatprep.subr.bf16.mxu0 0
          %586 = vmatpush2.bf16.msra.mxu0 0
          %587 = vmatprep.subr.bf16.mxu0 0
          %588 = vmatpush2.bf16.msra.mxu0 0
          %589 = vmatprep.subr.bf16.mxu0 0
          %590 = vmatpush2.bf16.msra.mxu0 0
          %591 = vmatprep.subr.bf16.mxu0 0
          %592 = vmatpush2.bf16.msra.mxu0 0
          %593 = vmatprep.subr.bf16.mxu0 0
          %594 = vmatpush2.bf16.msra.mxu0 0
          %595 = vmatprep.mubr.bf16.mxu0 0
          %596 = vmatmul.mubr.bf16.gmra.mxu0 %v494
          %v597 = vpop.f32.mrf.mxu0
          %v598 = vadd.f32 0.0, %v597
          %v599 = vpop.f32.mrf.mxu0
          %v600 = vpop.f32.mrf.mxu0
          %v601 = vadd.f32 0.0, %v600
          %v602 = vpop.f32.mrf.mxu0
          %603 = vdwg.mxu0
          %s604 = sadd.s32 %s495, 1
          %s605 = smul.u32 %s604, 16
          %s606 = smul.addr %s605, 4
          %s607 = scalar_lea.vmem %s1, %s606
          %v608 = vld [vmem:[%s607] sm:$0xf]
          %v609 = vld [vmem:[%s607 + $0x4] sm:$0xf]
          %v610 = vld [vmem:[%s607 + $0x8] sm:$0xf]
          %v611 = vld [vmem:[%s607 + $0xc] sm:$0xf]
          %v612 = vld [vmem:[%s607 + $0x10] sm:$0xf]
          %v613 = vld [vmem:[%s607 + $0x14] sm:$0xf]
          %v614 = vld [vmem:[%s607 + $0x18] sm:$0xf]
          %v615 = vld [vmem:[%s607 + $0x1c] sm:$0xf]
          %v616 = vld [vmem:[%s607 + $0x20] sm:$0xf]
          %v617 = vld [vmem:[%s607 + $0x24] sm:$0xf]
          %v618 = vld [vmem:[%s607 + $0x28] sm:$0xf]
          %v619 = vld [vmem:[%s607 + $0x2c] sm:$0xf]
          %v620 = vld [vmem:[%s607 + $0x30] sm:$0xf]
          %v621 = vld [vmem:[%s607 + $0x34] sm:$0xf]
          %v622 = vld [vmem:[%s607 + $0x38] sm:$0xf]
          %v623 = vld [vmem:[%s607 + $0x3c] sm:$0xf]
          %v640 = vunpack.c.l.b16 %v608
          %v641 = vunpack.c.l.b16 %v609
          %v642 = vunpack.c.l.b16 %v610
          %v643 = vunpack.c.l.b16 %v611
          %v644 = vunpack.c.l.b16 %v612
          %v645 = vunpack.c.l.b16 %v613
          %v646 = vunpack.c.l.b16 %v614
          %v647 = vunpack.c.l.b16 %v615
          %v648 = vunpack.c.l.b16 %v616
          %v649 = vunpack.c.l.b16 %v617
          %v650 = vunpack.c.l.b16 %v618
          %v651 = vunpack.c.l.b16 %v619
          %v652 = vunpack.c.l.b16 %v620
          %v653 = vunpack.c.l.b16 %v621
          %v654 = vunpack.c.l.b16 %v622
          %v655 = vunpack.c.l.b16 %v623
          %v656 = vpack.c.b16 %v641, %v640
          %v657 = vpack.c.b16 %v643, %v642
          %v658 = vpack.c.b16 %v645, %v644
          %v659 = vpack.c.b16 %v647, %v646
          %v660 = vpack.c.b16 %v649, %v648
          %v661 = vpack.c.b16 %v651, %v650
          %v662 = vpack.c.b16 %v653, %v652
          %v663 = vpack.c.b16 %v655, %v654
          %672 = vmatprep.subr.bf16.mxu0 0
          %673 = vmatpush1.bf16.msra.mxu0 %v663
          %674 = vmatprep.subr.bf16.mxu0 0
          %675 = vmatpush1.bf16.msra.mxu0 %v662
          %676 = vmatprep.subr.bf16.mxu0 0
          %677 = vmatpush1.bf16.msra.mxu0 %v661
          %678 = vmatprep.subr.bf16.mxu0 0
          %679 = vmatpush1.bf16.msra.mxu0 %v660
          %680 = vmatprep.subr.bf16.mxu0 0
          %681 = vmatpush1.bf16.msra.mxu0 %v659
          %682 = vmatprep.subr.bf16.mxu0 0
          %683 = vmatpush1.bf16.msra.mxu0 %v658
          %684 = vmatprep.subr.bf16.mxu0 0
          %685 = vmatpush1.bf16.msra.mxu0 %v657
          %686 = vmatprep.subr.bf16.mxu0 0
          %687 = vmatpush1.bf16.msra.mxu0 %v656
          %688 = vmatprep.subr.bf16.mxu0 0
          %689 = vmatpush2.bf16.msra.mxu0 0
          %690 = vmatprep.subr.bf16.mxu0 0
          %691 = vmatpush2.bf16.msra.mxu0 0
          %692 = vmatprep.subr.bf16.mxu0 0
          %693 = vmatpush2.bf16.msra.mxu0 0
          %694 = vmatprep.subr.bf16.mxu0 0
          %695 = vmatpush2.bf16.msra.mxu0 0
          %696 = vmatprep.subr.bf16.mxu0 0
          %697 = vmatpush2.bf16.msra.mxu0 0
          %698 = vmatprep.subr.bf16.mxu0 0
          %699 = vmatpush2.bf16.msra.mxu0 0
          %700 = vmatprep.subr.bf16.mxu0 0
          %701 = vmatpush2.bf16.msra.mxu0 0
          %702 = vmatprep.subr.bf16.mxu0 0
          %703 = vmatpush2.bf16.msra.mxu0 0
          %704 = vmatprep.mubr.bf16.mxu0 0
          %705 = vmatmul.mubr.bf16.gmra.mxu0 %v494
          %v706 = vpop.f32.mrf.mxu0
          %v707 = vadd.f32 0.0, %v706
          %v708 = vpop.f32.mrf.mxu0
          %v709 = vpop.f32.mrf.mxu0
          %v710 = vadd.f32 0.0, %v709
          %v711 = vpop.f32.mrf.mxu0
          %712 = vdwg.mxu0
          %s713 = sadd.s32 %s495, 2
          %s714 = smul.u32 %s713, 16
          %s715 = smul.addr %s714, 4
          %s716 = scalar_lea.vmem %s1, %s715
          %v717 = vld [vmem:[%s716] sm:$0xf]
          %v718 = vld [vmem:[%s716 + $0x4] sm:$0xf]
          %v719 = vld [vmem:[%s716 + $0x8] sm:$0xf]
          %v720 = vld [vmem:[%s716 + $0xc] sm:$0xf]
          %v721 = vld [vmem:[%s716 + $0x10] sm:$0xf]
          %v722 = vld [vmem:[%s716 + $0x14] sm:$0xf]
          %v723 = vld [vmem:[%s716 + $0x18] sm:$0xf]
          %v724 = vld [vmem:[%s716 + $0x1c] sm:$0xf]
          %v725 = vld [vmem:[%s716 + $0x20] sm:$0xf]
          %v726 = vld [vmem:[%s716 + $0x24] sm:$0xf]
          %v727 = vld [vmem:[%s716 + $0x28] sm:$0xf]
          %v728 = vld [vmem:[%s716 + $0x2c] sm:$0xf]
          %v729 = vld [vmem:[%s716 + $0x30] sm:$0xf]
          %v730 = vld [vmem:[%s716 + $0x34] sm:$0xf]
          %v731 = vld [vmem:[%s716 + $0x38] sm:$0xf]
          %v732 = vld [vmem:[%s716 + $0x3c] sm:$0xf]
          %v749 = vunpack.c.l.b16 %v717
          %v750 = vunpack.c.l.b16 %v718
          %v751 = vunpack.c.l.b16 %v719
          %v752 = vunpack.c.l.b16 %v720
          %v753 = vunpack.c.l.b16 %v721
          %v754 = vunpack.c.l.b16 %v722
          %v755 = vunpack.c.l.b16 %v723
          %v756 = vunpack.c.l.b16 %v724
          %v757 = vunpack.c.l.b16 %v725
          %v758 = vunpack.c.l.b16 %v726
          %v759 = vunpack.c.l.b16 %v727
          %v760 = vunpack.c.l.b16 %v728
          %v761 = vunpack.c.l.b16 %v729
          %v762 = vunpack.c.l.b16 %v730
          %v763 = vunpack.c.l.b16 %v731
          %v764 = vunpack.c.l.b16 %v732
          %v765 = vpack.c.b16 %v750, %v749
          %v766 = vpack.c.b16 %v752, %v751
          %v767 = vpack.c.b16 %v754, %v753
          %v768 = vpack.c.b16 %v756, %v755
          %v769 = vpack.c.b16 %v758, %v757
          %v770 = vpack.c.b16 %v760, %v759
          %v771 = vpack.c.b16 %v762, %v761
          %v772 = vpack.c.b16 %v764, %v763
          %781 = vmatprep.subr.bf16.mxu0 0
          %782 = vmatpush1.bf16.msra.mxu0 %v772
          %783 = vmatprep.subr.bf16.mxu0 0
          %784 = vmatpush1.bf16.msra.mxu0 %v771
          %785 = vmatprep.subr.bf16.mxu0 0
          %786 = vmatpush1.bf16.msra.mxu0 %v770
          %787 = vmatprep.subr.bf16.mxu0 0
          %788 = vmatpush1.bf16.msra.mxu0 %v769
          %789 = vmatprep.subr.bf16.mxu0 0
          %790 = vmatpush1.bf16.msra.mxu0 %v768
          %791 = vmatprep.subr.bf16.mxu0 0
          %792 = vmatpush1.bf16.msra.mxu0 %v767
          %793 = vmatprep.subr.bf16.mxu0 0
          %794 = vmatpush1.bf16.msra.mxu0 %v766
          %795 = vmatprep.subr.bf16.mxu0 0
          %796 = vmatpush1.bf16.msra.mxu0 %v765
          %797 = vmatprep.subr.bf16.mxu0 0
          %798 = vmatpush2.bf16.msra.mxu0 0
          %799 = vmatprep.subr.bf16.mxu0 0
          %800 = vmatpush2.bf16.msra.mxu0 0
          %801 = vmatprep.subr.bf16.mxu0 0
          %802 = vmatpush2.bf16.msra.mxu0 0
          %803 = vmatprep.subr.bf16.mxu0 0
          %804 = vmatpush2.bf16.msra.mxu0 0
          %805 = vmatprep.subr.bf16.mxu0 0
          %806 = vmatpush2.bf16.msra.mxu0 0
          %807 = vmatprep.subr.bf16.mxu0 0
          %808 = vmatpush2.bf16.msra.mxu0 0
          %809 = vmatprep.subr.bf16.mxu0 0
          %810 = vmatpush2.bf16.msra.mxu0 0
          %811 = vmatprep.subr.bf16.mxu0 0
          %812 = vmatpush2.bf16.msra.mxu0 0
          %813 = vmatprep.mubr.bf16.mxu0 0
          %814 = vmatmul.mubr.bf16.gmra.mxu0 %v494
          %v815 = vpop.f32.mrf.mxu0
          %v816 = vadd.f32 0.0, %v815
          %v817 = vpop.f32.mrf.mxu0
          %v818 = vpop.f32.mrf.mxu0
          %v819 = vadd.f32 0.0, %v818
          %v820 = vpop.f32.mrf.mxu0
          %821 = vdwg.mxu0
          %v822 = vlaneseq
          %v823 = vshrl.u32 %v822, 7
          %v824 = vadd.s32 %v823, 8
          %vm825 = vcmp.ge.s32.totalorder %v823, 1
          %vm826 = vcmp.ge.s32.totalorder %v824, 1
          %v827 = vrot.slane %v598, 7
          %v828 = vrot.slane %v601, 7
          %vm829 = vcmp.lt.s32.totalorder %v823, 1
          %v830 = vsel %vm829, %v827, %v828
          %v831 = vsel %vm829, %v828, %v827
          %v832 = vsel %vm825, 1, 0
          %v833 = vsel %vm826, 1, 0
          %vm834 = vcmp.eq.s32.totalorder %v832, 1
          %vm835 = vcmp.eq.s32.totalorder %v833, 1
          %v836 = vsel %vm834, %v831, 0.0
          %v837 = vsel %vm835, %v830, 0.0
          %vm838 = vcmp.le.s32.totalorder %v823, 14
          %vm839 = vcmp.le.s32.totalorder %v824, 14
          %v840 = vrot.slane %v816, 1
          %v841 = vrot.slane %v819, 1
          %vm842 = vcmp.lt.s32.totalorder %v823, 7
          %v843 = vsel %vm842, %v840, %v841
          %v844 = vsel %vm842, %v841, %v840
          %v845 = vsel %vm838, 1, 0
          %v846 = vsel %vm839, 1, 0
          %vm847 = vcmp.eq.s32.totalorder %v845, 1
          %vm848 = vcmp.eq.s32.totalorder %v846, 1
          %v849 = vsel %vm847, %v843, 0.0
          %v850 = vsel %vm848, %v844, 0.0
          %v851 = vld [vmem:[#allocation2] sm:$0xff]
          %v852 = vld [vmem:[#allocation2 + $0x8] sm:$0xff]
          %v853 = vadd.f32 %v851, %v836
          %v854 = vadd.f32 %v852, %v837
          %v855 = vadd.f32 %v853, %v707
          %v856 = vadd.f32 %v854, %v710
          %v857 = vadd.f32 %v855, %v849
          %v858 = vadd.f32 %v856, %v850
          %859 = vst [vmem:[#allocation2] sm:$0xff] %v857
          %860 = vst [vmem:[#allocation2 + $0x8] sm:$0xff] %v858
        $region60: #{resnet_block_forward.7} parent=51 // pred_fallthru
          _
        %p861 = scmp.eq.s32.totalorder %s29, 2
        // Predicated region
        $region61: #{resnet_block_forward.7} parent=51 // pred_check
          %p862 = pneg %p861
        $region62: #{resnet_block_forward.7} parent=51 // pred_check_branch
          %864 = sbr.rel (%p862) target = $region64
        $region63: #{resnet_block_forward.7} parent=51 // pred_region
          %v865 = vld [vmem:[#allocation2] sm:$0xff]
          %v866 = vld [vmem:[#allocation2 + $0x8] sm:$0xff]
          %v867 = vld [vmem:[%s2] sm:$0x1]
          %v869 = vlaneseq
          %v870 = vshrl.u32 %v869, 7
          %v871 = vsub.s32 0, %v870
          %v872 = vrot.slane %v867, %v871
          %v874 = vadd.f32 %v865, %v872
          %v875 = vadd.f32 %v866, %v872
          %v876 = vld [vmem:[%s7] sm:$0x1]
          %v878 = vlaneseq
          %v879 = vshrl.u32 %v878, 7
          %v880 = vsub.s32 0, %v879
          %v881 = vrot.slane %v876, %v880
          %v883 = vadd.f32 %v874, %v881
          %v884 = vadd.f32 %v875, %v881
          %v885 = vld [vmem:[%s442] sm:$0xf]
          %v886 = vld [vmem:[%s442 + $0x4] sm:$0xf]
          %v887 = vld [vmem:[%s6] sm:$0xf]
          %v888 = vld [vmem:[%s6 + $0x4] sm:$0xf]
          %v889 = vld [vmem:[%s6 + $0x8] sm:$0xf]
          %v890 = vld [vmem:[%s6 + $0xc] sm:$0xf]
          %v891 = vld [vmem:[%s6 + $0x10] sm:$0xf]
          %v892 = vld [vmem:[%s6 + $0x14] sm:$0xf]
          %v893 = vld [vmem:[%s6 + $0x18] sm:$0xf]
          %v894 = vld [vmem:[%s6 + $0x1c] sm:$0xf]
          %v897 = vunpack.c.l.b16 %v885
          %v898 = vunpack.c.l.b16 %v886
          %v899 = vpack.c.b16 %v898, %v897
          %v908 = vunpack.c.l.b16 %v887
          %v909 = vunpack.c.l.b16 %v888
          %v910 = vunpack.c.l.b16 %v889
          %v911 = vunpack.c.l.b16 %v890
          %v912 = vunpack.c.l.b16 %v891
          %v913 = vunpack.c.l.b16 %v892
          %v914 = vunpack.c.l.b16 %v893
          %v915 = vunpack.c.l.b16 %v894
          %v916 = vpack.c.b16 %v909, %v908
          %v917 = vpack.c.b16 %v911, %v910
          %v918 = vpack.c.b16 %v913, %v912
          %v919 = vpack.c.b16 %v915, %v914
          %vm924 = vcmask 523264
          %v926 = vsel %vm924, %v899, 0
          %928 = vmatprep.subr.bf16.mxu0 0
          %929 = vmatpush1.bf16.msra.mxu0 0
          %930 = vmatprep.subr.bf16.mxu0 0
          %931 = vmatpush1.bf16.msra.mxu0 0
          %932 = vmatprep.subr.bf16.mxu0 0
          %933 = vmatpush1.bf16.msra.mxu0 0
          %934 = vmatprep.subr.bf16.mxu0 0
          %935 = vmatpush1.bf16.msra.mxu0 0
          %936 = vmatprep.subr.bf16.mxu0 0
          %937 = vmatpush1.bf16.msra.mxu0 %v919
          %938 = vmatprep.subr.bf16.mxu0 0
          %939 = vmatpush1.bf16.msra.mxu0 %v918
          %940 = vmatprep.subr.bf16.mxu0 0
          %941 = vmatpush1.bf16.msra.mxu0 %v917
          %942 = vmatprep.subr.bf16.mxu0 0
          %943 = vmatpush1.bf16.msra.mxu0 %v916
          %944 = vmatprep.subr.bf16.mxu0 0
          %945 = vmatpush2.bf16.msra.mxu0 0
          %946 = vmatprep.subr.bf16.mxu0 0
          %947 = vmatpush2.bf16.msra.mxu0 0
          %948 = vmatprep.subr.bf16.mxu0 0
          %949 = vmatpush2.bf16.msra.mxu0 0
          %950 = vmatprep.subr.bf16.mxu0 0
          %951 = vmatpush2.bf16.msra.mxu0 0
          %952 = vmatprep.subr.bf16.mxu0 0
          %953 = vmatpush2.bf16.msra.mxu0 0
          %954 = vmatprep.subr.bf16.mxu0 0
          %955 = vmatpush2.bf16.msra.mxu0 0
          %956 = vmatprep.subr.bf16.mxu0 0
          %957 = vmatpush2.bf16.msra.mxu0 0
          %958 = vmatprep.subr.bf16.mxu0 0
          %959 = vmatpush2.bf16.msra.mxu0 0
          %960 = vmatprep.mubr.bf16.mxu0 0
          %961 = vmatmul.mubr.bf16.gmra.mxu0 %v926
          %v962 = vpop.f32.mrf.mxu0
          %v963 = vadd.f32 0.0, %v962
          %v964 = vpop.f32.mrf.mxu0
          %v965 = vpop.f32.mrf.mxu0
          %v966 = vadd.f32 0.0, %v965
          %v967 = vpop.f32.mrf.mxu0
          %968 = vdwg.mxu0
          %v969 = vadd.f32 %v883, %v963
          %v970 = vadd.f32 %v884, %v966
          %971 = vst [vmem:[%s406] sm:$0xff] %v969
          %972 = vst [vmem:[%s406 + $0x8] sm:$0xff] %v970
        $region64: #{resnet_block_forward.7} parent=51 // pred_fallthru
          _
        %s973 = sand.u32 %s255, 1
        %s974 = scalar_lea.sflag [#allocation4], %s973
        %s975 = sand.u32 %s255, 1
        %s976 = smul.addr %s975, 16
        %s977 = scalar_lea.vmem [#allocation3], %s976
        // Predicated region
        $region65: #{resnet_block_forward.7} parent=51 // pred_check
          %p978 = pneg %p265
        $region66: #{resnet_block_forward.7} parent=51 // pred_check_branch
          %980 = sbr.rel (%p978) target = $region68
        $region67: #{resnet_block_forward.7} parent=51 // pred_region
          %s982 = ssub.s32 256, 256
          %983 = vsyncadd %s974, %s982
          %s984 = smul.addr %s28, 2
          %s985 = smul.addr %s27, 32
          %s986 = sadd.s32 %s984, %s985
          %s987 = smul.addr %s986, 128
          %s988 = scalar_lea.hbm %s8, %s987
          %s989 = sshll.u32 %s977, 4
          %s990 = int_to_ptr.vmem [resolvable:$true] %s989
          %995 = dma.vmem_to_hbm [thread:$0]  %s990, 256, %s988, %s974, 128, 128, 8
        $region68: #{resnet_block_forward.7} parent=51 // pred_fallthru
          _
      $region52: #{resnet_block_forward.7} parent=5 // pred_fallthru
        _
      %p996 = scmp.le.s32.totalorder 2, %s17
      // Predicated region
      $region69: #{resnet_block_forward.7} parent=5 // pred_check
        %p997 = pneg %p996
      $region70: #{resnet_block_forward.7} parent=5 // pred_check_branch
        %999 = sbr.rel (%p997) target = $region72
      $region71: #{resnet_block_forward.7} parent=5 // pred_region
        %s1000 = ssub.s32 %s17, 2
        // Predicated region
        $region73: #{resnet_block_forward.7} parent=71 // pred_check
          %p1001 = pneg %p271
        $region74: #{resnet_block_forward.7} parent=71 // pred_check_branch
          %1003 = sbr.rel (%p1001) target = $region76
        $region75: #{resnet_block_forward.7} parent=71 // pred_region
          %s1004 = sand.u32 %s256, 1
          %s1005 = scalar_lea.sflag [#allocation4], %s1004
          %s1006 = sand.u32 %s256, 1
          %s1007 = smul.addr %s1006, 16
          %s1008 = scalar_lea.vmem [#allocation3], %s1007
          %1009 = dma.done %s1005, 256
        $region76: #{resnet_block_forward.7} parent=71 // pred_fallthru
          _
      $region72: #{resnet_block_forward.7} parent=5 // pred_fallthru
        _
    $region6: #{resnet_block_forward.7} parent=1 // loop_footer
      %s21 = sadd.s32 1, %s17
    $region7: #{resnet_block_forward.7} parent=1 // loop_footer_branch
      %16 = sbr.rel target = $region3
    $region8: #{resnet_block_forward.7} parent=1 // loop_exit
      _
    %1010 = vsyncpa [#allocation4], 1
    %s1011 = scalar_lea.sflag [#allocation4], 1
    %1012 = vsyncpa %s1011, 1

</llo_original>
